<compile_context>
chip_gen: v7x
topology: tpu7x:2x2x1
jax: 0.10.0
libtpu: 0.0.40
codegen_flags: <defaults>
</compile_context>

<pallas_src>
import functools

import jax
import jax.numpy as jnp
from jax.experimental import pallas as pl
from jax.experimental.pallas import tpu as pltpu

# ----------------------------- small config -----------------------------------
B = 2                        # batch
H, W, C = 16, 32, 3
POOL = 4                     # width pooling factor of the "CNN"
T_ENC = W // POOL            # encoder sequence length
D_ENC = 32                   # encoder out_planes
S_DIM = 32                   # decoder state dim   (config.decoder_s_dim ~ 512)
A_DIM = 32                   # attention dim       (config.attention_dim ~ 512)
E_DIM = 16                   # target-embedding dim
NUM_CLASSES = 16             # (config.num_classes ~ 97)
MAX_LEN = 8                  # (config.max_len_labels ~ 100)


# ----------------------------- fused Pallas kernel -----------------------------
def _make_fused_kernel(t_dec):
    """Build the fused (normalize + encode + decode) kernel for static t_dec."""

    def kernel(cols_ref, emb_ref, w_proj_ref, b_proj_ref, pool_ref,
               w_att_enc_ref, w_att_s_ref, v_ref, w_cs_ref, b_s_ref,
               w_out_ref, b_out_ref, rect_ref, logits_ref):
        # ---- normalize (x - 127.5) / 127.5, once, in-register ----------------
        xn = (cols_ref[...] - 127.5) * (1.0 / 127.5)            # [B*W, C*H]
        # rectified images output (STN rectification is identity, see TODO below)
        rect_ref[...] = xn

        # ---- "CNN" column projection (MXU) + tanh (VPU) -----------------------
        y = jnp.tanh(
            jnp.dot(xn, w_proj_ref[...], preferred_element_type=jnp.float32)
            + b_proj_ref[...])                                  # [B*W, D_ENC]

        # ---- width pooling as a single matmul ---------------------------------
        enc2 = jnp.dot(pool_ref[...], y,
                       preferred_element_type=jnp.float32)      # [B*T_ENC, D_ENC]

        # ---- t-invariant attention projection, hoisted out of the decode loop -
        pe2 = jnp.dot(enc2, w_att_enc_ref[...],
                      preferred_element_type=jnp.float32)       # [B*T_ENC, A_DIM]
        enc3 = enc2.reshape(B, T_ENC, D_ENC)
        pe3 = pe2.reshape(B, T_ENC, A_DIM)

        v = v_ref[...]                                          # [1, A_DIM]
        w_att_s = w_att_s_ref[...]                              # [S_DIM, A_DIM]
        w_cs = w_cs_ref[...]                                    # [D_ENC+E_DIM, S_DIM]
        b_s = b_s_ref[...]                                      # [1, S_DIM]
        w_out = w_out_ref[...]                                  # [S_DIM, K]
        b_out = b_out_ref[...]                                  # [1, K]

        # ---- teacher-forced attention decode, fully unrolled ------------------
        s = jnp.zeros((B, S_DIM), jnp.float32)
        outs = []
        for t in range(t_dec):
            # additive (Bahdanau-style) attention
            proj_s = jnp.dot(s, w_att_s,
                             preferred_element_type=jnp.float32)    # [B, A]
            e = jnp.tanh(pe3 + proj_s[:, None, :])                  # [B, T, A]
            scores = jnp.sum(e * v, axis=-1)                        # [B, T]
            m = jnp.max(scores, axis=-1, keepdims=True)
            p = jnp.exp(scores - m)
            inv = pl.reciprocal(jnp.sum(p, axis=-1, keepdims=True), approx=True)
            alpha = p * inv                                         # [B, T]
            ctx = jnp.sum(alpha[:, :, None] * enc3, axis=1)         # [B, D_ENC]

            # recurrent state update: one fused matmul over [ctx | emb]
            emb_t = emb_ref[t]                                      # [B, E_DIM]
            ce = jnp.concatenate([ctx, emb_t], axis=-1)             # [B, D_ENC+E_DIM]
            s = jnp.tanh(
                jnp.dot(ce, w_cs, preferred_element_type=jnp.float32) + b_s)

            outs.append(
                jnp.dot(s, w_out, preferred_element_type=jnp.float32) + b_out)

        # single lane-dense store: [B, t_dec*K]  (= [2, 128] at default dims)
        logits_ref[...] = jnp.concatenate(outs, axis=-1)

    return kernel


# ----------------------------- wrappers -----------------------------------------
def _pool_matrix():
    """[B*T_ENC, B*W] mean-pooling matrix over POOL consecutive width positions."""
    row_b = jnp.arange(B * T_ENC) // T_ENC
    row_t = jnp.arange(B * T_ENC) % T_ENC
    col_b = jnp.arange(B * W) // W
    col_w = jnp.arange(B * W) % W
    mask = ((row_b[:, None] == col_b[None, :])
            & ((col_w[None, :] // POOL) == row_t[:, None]))
    return mask.astype(jnp.float32) * (1.0 / POOL)


def init_params(key):
    """Deterministic kaiming-normal-like init (weights), zeros (biases)."""
    ks = jax.random.split(key, 8)

    def kaiming(k, shape):
        fan_in = shape[0]
        return (jax.random.normal(k, shape, dtype=jnp.float32)
                * jnp.sqrt(2.0 / fan_in))

    return {
        'w_proj': kaiming(ks[0], (C * H, D_ENC)),
        'b_proj': jnp.zeros((1, D_ENC), jnp.float32),
        'w_att_enc': kaiming(ks[1], (D_ENC, A_DIM)),
        'w_att_s': kaiming(ks[2], (S_DIM, A_DIM)),
        'v_att': kaiming(ks[3], (1, A_DIM)),
        'w_ctx': kaiming(ks[4], (D_ENC, S_DIM)),
        'w_emb': kaiming(ks[5], (E_DIM, S_DIM)),
        'b_s': jnp.zeros((1, S_DIM), jnp.float32),
        'w_out': kaiming(ks[6], (S_DIM, NUM_CLASSES)),
        'b_out': jnp.zeros((1, NUM_CLASSES), jnp.float32),
        'emb_table': kaiming(ks[7], (NUM_CLASSES, E_DIM)),
    }


@functools.partial(jax.jit, static_argnames=('max_label_length',))
def text_recognition_forward(params, images, rec_targets, max_label_length=0):
    """Mirrors TextRecognitionModel.forward (inference, teacher-forced path)."""
    t_dec = min(MAX_LEN, max_label_length) if max_label_length > 0 else MAX_LEN
    return_dict = {}

    x = images.astype(jnp.float32)
    # NCHW column features: x[:, :, :, w] flattened; rows ordered (b, w).
    cols = jnp.transpose(x, (0, 2, 3, 1)).reshape(B * W, C * H)

    # previous-token sequence (BOS = 0 at step 0), embedded in plain JAX (gather glue)
    prev = jnp.concatenate(
        [jnp.zeros((B, 1), dtype=rec_targets.dtype), rec_targets[:, :t_dec - 1]],
        axis=1)
    emb = jnp.transpose(jnp.take(params['emb_table'], prev, axis=0),
                        (1, 0, 2))                           # [t_dec, B, E_DIM]

    # trace-time weight prep (free): fused recurrent weight + pooling matrix
    w_cs = jnp.concatenate([params['w_ctx'], params['w_emb']], axis=0)
    pool_t = _pool_matrix()

    z2 = lambda i: (0, 0)
    z3 = lambda i: (0, 0, 0)

    rect_cols, logits_flat = pl.pallas_call(
        _make_fused_kernel(t_dec),
        out_shape=(jax.ShapeDtypeStruct((B * W, C * H), jnp.float32),
                   jax.ShapeDtypeStruct((B, t_dec * NUM_CLASSES), jnp.float32)),
        grid=(1,),
        in_specs=[
            pl.BlockSpec((B * W, C * H), z2),                # raw image columns
            pl.BlockSpec((t_dec, B, E_DIM), z3),             # prev-token embeddings
            pl.BlockSpec((C * H, D_ENC), z2),                # W_proj
            pl.BlockSpec((1, D_ENC), z2),                    # b_proj
            pl.BlockSpec((B * T_ENC, B * W), z2),            # pooling matrix
            pl.BlockSpec((D_ENC, A_DIM), z2),                # W_att_enc
            pl.BlockSpec((S_DIM, A_DIM), z2),                # W_att_state
            pl.BlockSpec((1, A_DIM), z2),                    # v_att
            pl.BlockSpec((D_ENC + E_DIM, S_DIM), z2),        # [W_ctx ; W_emb]
            pl.BlockSpec((1, S_DIM), z2),                    # b_state
            pl.BlockSpec((S_DIM, NUM_CLASSES), z2),          # W_out
            pl.BlockSpec((1, NUM_CLASSES), z2),              # b_out
        ],
        out_specs=(pl.BlockSpec((B * W, C * H), z2),
                   pl.BlockSpec((B, t_dec * NUM_CLASSES), z2)),
        compiler_params=pltpu.CompilerParams(dimension_semantics=("arbitrary",)),
    )(cols, emb, params['w_proj'], params['b_proj'], pool_t,
      params['w_att_enc'], params['w_att_s'], params['v_att'],
      w_cs, params['b_s'], params['w_out'], params['b_out'])

    # TODO(synk): TPS spatial transformer (localization net + grid sample) has no
    # clean Pallas equivalent here; rectification is identity (normalized image).
    return_dict['rectified_images'] = (
        rect_cols.reshape(B, W, C, H).transpose(0, 3, 1, 2))     # [B, H, W, C]

    # TODO(synk): the BiLSTM stack of the CRNN encoder is not implemented.
    # TODO(synk): beam_search branch (with_beam_search=True) not implemented;
    # this is the teacher-forced decoder path.
    return_dict['prediction'] = logits_flat.reshape(B, t_dec, NUM_CLASSES)
    return return_dict


if __name__ == "__main__":
    key = jax.random.PRNGKey(0)
    k_params, k_img, k_tgt = jax.random.split(key, 3)

    params = init_params(k_params)
    images = jax.random.uniform(k_img, (B, H, W, C),
                                minval=0.0, maxval=255.0, dtype=jnp.float32)
    rec_targets = jax.random.randint(k_tgt, (B, MAX_LEN), 0, NUM_CLASSES,
                                     dtype=jnp.int32)

    out = text_recognition_forward(params, images, rec_targets,
                                   max_label_length=MAX_LEN)
    jax.block_until_ready(out)

    assert out['prediction'].shape == (B, MAX_LEN, NUM_CLASSES)
    assert out['rectified_images'].shape == (B, H, W, C)
    print("KERNEL_OK")
</pallas_src>

<mosaic_0001>
module attributes {stable_mosaic.version = 11 : i64} {
  func.func @kernel(%arg0: i32, %arg1: memref<64x48xf32, #tpu.memory_space<vmem>>, %arg2: memref<8x2x16xf32, #tpu.memory_space<vmem>>, %arg3: memref<48x32xf32, #tpu.memory_space<vmem>>, %arg4: memref<1x32xf32, #tpu.memory_space<vmem>>, %arg5: memref<16x64xf32, #tpu.memory_space<vmem>>, %arg6: memref<32x32xf32, #tpu.memory_space<vmem>>, %arg7: memref<32x32xf32, #tpu.memory_space<vmem>>, %arg8: memref<1x32xf32, #tpu.memory_space<vmem>>, %arg9: memref<48x32xf32, #tpu.memory_space<vmem>>, %arg10: memref<1x32xf32, #tpu.memory_space<vmem>>, %arg11: memref<32x16xf32, #tpu.memory_space<vmem>>, %arg12: memref<1x16xf32, #tpu.memory_space<vmem>>, %arg13: memref<64x48xf32, #tpu.memory_space<vmem>>, %arg14: memref<2x128xf32, #tpu.memory_space<vmem>>) attributes {dimension_semantics = [#tpu.dimension_semantics<arbitrary>], iteration_bounds = array<i64: 1>, scalar_prefetch = 0 : i64, scratch_operands = 0 : i64, tpu.core_type = #tpu.core_type<tc>, window_params = [{pipeline_mode = #tpu.pipeline_mode<synchronous>, transform_indices = @transform_0, window_bounds = array<i64: 64, 48>}, {pipeline_mode = #tpu.pipeline_mode<synchronous>, transform_indices = @transform_1, window_bounds = array<i64: 8, 2, 16>}, {pipeline_mode = #tpu.pipeline_mode<synchronous>, transform_indices = @transform_2, window_bounds = array<i64: 48, 32>}, {pipeline_mode = #tpu.pipeline_mode<synchronous>, transform_indices = @transform_3, window_bounds = array<i64: 1, 32>}, {pipeline_mode = #tpu.pipeline_mode<synchronous>, transform_indices = @transform_4, window_bounds = array<i64: 16, 64>}, {pipeline_mode = #tpu.pipeline_mode<synchronous>, transform_indices = @transform_5, window_bounds = array<i64: 32, 32>}, {pipeline_mode = #tpu.pipeline_mode<synchronous>, transform_indices = @transform_6, window_bounds = array<i64: 32, 32>}, {pipeline_mode = #tpu.pipeline_mode<synchronous>, transform_indices = @transform_7, window_bounds = array<i64: 1, 32>}, {pipeline_mode = #tpu.pipeline_mode<synchronous>, transform_indices = @transform_8, window_bounds = array<i64: 48, 32>}, {pipeline_mode = #tpu.pipeline_mode<synchronous>, transform_indices = @transform_9, window_bounds = array<i64: 1, 32>}, {pipeline_mode = #tpu.pipeline_mode<synchronous>, transform_indices = @transform_10, window_bounds = array<i64: 32, 16>}, {pipeline_mode = #tpu.pipeline_mode<synchronous>, transform_indices = @transform_11, window_bounds = array<i64: 1, 16>}, {pipeline_mode = #tpu.pipeline_mode<synchronous>, transform_indices = @transform_12, window_bounds = array<i64: 64, 48>}, {pipeline_mode = #tpu.pipeline_mode<synchronous>, transform_indices = @transform_13, window_bounds = array<i64: 2, 128>}]} {
    %c0 = arith.constant 0 : index
    %c0_0 = arith.constant 0 : index
    %0 = vector.load %arg1[%c0, %c0_0] : memref<64x48xf32, #tpu.memory_space<vmem>>, vector<64x48xf32>
    %cst = arith.constant 1.275000e+02 : f32
    %1 = vector.broadcast %cst : f32 to vector<64x48xf32>
    %2 = arith.subf %0, %1 : vector<64x48xf32>
    %cst_1 = arith.constant 0.00784313772 : f32
    %3 = vector.broadcast %cst_1 : f32 to vector<64x48xf32>
    %4 = arith.mulf %2, %3 : vector<64x48xf32>
    %c0_2 = arith.constant 0 : index
    %c0_3 = arith.constant 0 : index
    %5 = vector.load %arg13[%c0_2, %c0_3] : memref<64x48xf32, #tpu.memory_space<vmem>>, vector<64x48xf32>
    tpu.vector_store %arg13[%c0_2, %c0_3], %4 {strides = array<i32>} : memref<64x48xf32, #tpu.memory_space<vmem>>, vector<64x48xf32>,
    %c0_4 = arith.constant 0 : index
    %c0_5 = arith.constant 0 : index
    %6 = vector.load %arg3[%c0_4, %c0_5] : memref<48x32xf32, #tpu.memory_space<vmem>>, vector<48x32xf32>
    %cst_6 = arith.constant dense<0.000000e+00> : vector<64x32xf32>
    %7 = tpu.matmul %4, %6, %cst_6 {dimension_numbers = #tpu.dot_dimension_numbers<[1], [0], [0], [1], [0, 0, 1, 1], [], []>} : vector<64x48xf32>, vector<48x32xf32>, vector<64x32xf32> -> vector<64x32xf32>
    %c0_7 = arith.constant 0 : index
    %c0_8 = arith.constant 0 : index
    %8 = vector.load %arg4[%c0_7, %c0_8] : memref<1x32xf32, #tpu.memory_space<vmem>>, vector<1x32xf32>
    %9 = vector.broadcast %8 : vector<1x32xf32> to vector<64x32xf32>
    %10 = arith.addf %7, %9 : vector<64x32xf32>
    %11 = math.tanh %10 : vector<64x32xf32>
    %c0_9 = arith.constant 0 : index
    %c0_10 = arith.constant 0 : index
    %12 = vector.load %arg5[%c0_9, %c0_10] : memref<16x64xf32, #tpu.memory_space<vmem>>, vector<16x64xf32>
    %cst_11 = arith.constant dense<0.000000e+00> : vector<16x32xf32>
    %13 = tpu.matmul %12, %11, %cst_11 {dimension_numbers = #tpu.dot_dimension_numbers<[1], [0], [0], [1], [0, 0, 1, 1], [], []>} : vector<16x64xf32>, vector<64x32xf32>, vector<16x32xf32> -> vector<16x32xf32>
    %c0_12 = arith.constant 0 : index
    %c0_13 = arith.constant 0 : index
    %14 = vector.load %arg6[%c0_12, %c0_13] : memref<32x32xf32, #tpu.memory_space<vmem>>, vector<32x32xf32>
    %cst_14 = arith.constant dense<0.000000e+00> : vector<16x32xf32>
    %15 = tpu.matmul %13, %14, %cst_14 {dimension_numbers = #tpu.dot_dimension_numbers<[1], [0], [0], [1], [0, 0, 1, 1], [], []>} : vector<16x32xf32>, vector<32x32xf32>, vector<16x32xf32> -> vector<16x32xf32>
    %16 = vector.shape_cast %13 : vector<16x32xf32> to vector<2x8x32xf32>
    %17 = vector.shape_cast %15 : vector<16x32xf32> to vector<2x8x32xf32>
    %c0_15 = arith.constant 0 : index
    %c0_16 = arith.constant 0 : index
    %18 = vector.load %arg8[%c0_15, %c0_16] : memref<1x32xf32, #tpu.memory_space<vmem>>, vector<1x32xf32>
    %c0_17 = arith.constant 0 : index
    %c0_18 = arith.constant 0 : index
    %19 = vector.load %arg7[%c0_17, %c0_18] : memref<32x32xf32, #tpu.memory_space<vmem>>, vector<32x32xf32>
    %c0_19 = arith.constant 0 : index
    %c0_20 = arith.constant 0 : index
    %20 = vector.load %arg9[%c0_19, %c0_20] : memref<48x32xf32, #tpu.memory_space<vmem>>, vector<48x32xf32>
    %c0_21 = arith.constant 0 : index
    %c0_22 = arith.constant 0 : index
    %21 = vector.load %arg10[%c0_21, %c0_22] : memref<1x32xf32, #tpu.memory_space<vmem>>, vector<1x32xf32>
    %c0_23 = arith.constant 0 : index
    %c0_24 = arith.constant 0 : index
    %22 = vector.load %arg11[%c0_23, %c0_24] : memref<32x16xf32, #tpu.memory_space<vmem>>, vector<32x16xf32>
    %c0_25 = arith.constant 0 : index
    %c0_26 = arith.constant 0 : index
    %23 = vector.load %arg12[%c0_25, %c0_26] : memref<1x16xf32, #tpu.memory_space<vmem>>, vector<1x16xf32>
    %cst_27 = arith.constant 0.000000e+00 : f32
    %24 = vector.broadcast %cst_27 : f32 to vector<2x32xf32>
    %cst_28 = arith.constant dense<0.000000e+00> : vector<2x32xf32>
    %25 = tpu.matmul %24, %19, %cst_28 {dimension_numbers = #tpu.dot_dimension_numbers<[1], [0], [0], [1], [0, 0, 1, 1], [], []>} : vector<2x32xf32>, vector<32x32xf32>, vector<2x32xf32> -> vector<2x32xf32>
    %26 = vector.shape_cast %25 : vector<2x32xf32> to vector<2x1x32xf32>
    %27 = vector.broadcast %26 : vector<2x1x32xf32> to vector<2x8x32xf32>
    %28 = arith.addf %17, %27 : vector<2x8x32xf32>
    %29 = math.tanh %28 : vector<2x8x32xf32>
    %30 = vector.shape_cast %18 : vector<1x32xf32> to vector<1x1x32xf32>
    %31 = vector.broadcast %30 : vector<1x1x32xf32> to vector<2x8x32xf32>
    %32 = arith.mulf %29, %31 : vector<2x8x32xf32>
    %cst_29 = arith.constant dense<0.000000e+00> : vector<2x8xf32>
    %33 = vector.multi_reduction <add>, %32, %cst_29 [2] : vector<2x8x32xf32> to vector<2x8xf32>
    %cst_30 = arith.constant dense<0xFF800000> : vector<2xf32>
    %34 = vector.multi_reduction <maximumf>, %33, %cst_30 [1] : vector<2x8xf32> to vector<2xf32>
    %35 = vector.shape_cast %34 : vector<2xf32> to vector<2x1xf32>
    %36 = vector.broadcast %35 : vector<2x1xf32> to vector<2x8xf32>
    %37 = arith.subf %33, %36 : vector<2x8xf32>
    %38 = math.exp %37 : vector<2x8xf32>
    %cst_31 = arith.constant dense<0.000000e+00> : vector<2xf32>
    %39 = vector.multi_reduction <add>, %38, %cst_31 [1] : vector<2x8xf32> to vector<2xf32>
    %40 = vector.shape_cast %39 : vector<2xf32> to vector<2x1xf32>
    %41 = tpu.reciprocal %40 {approx = true} : vector<2x1xf32> -> vector<2x1xf32>
    %42 = vector.broadcast %41 : vector<2x1xf32> to vector<2x8xf32>
    %43 = arith.mulf %38, %42 : vector<2x8xf32>
    %44 = vector.shape_cast %43 : vector<2x8xf32> to vector<2x8x1xf32>
    %45 = vector.broadcast %44 : vector<2x8x1xf32> to vector<2x8x32xf32>
    %46 = arith.mulf %45, %16 : vector<2x8x32xf32>
    %cst_32 = arith.constant dense<0.000000e+00> : vector<2x32xf32>
    %47 = vector.multi_reduction <add>, %46, %cst_32 [1] : vector<2x8x32xf32> to vector<2x32xf32>
    %c0_33 = arith.constant 0 : index
    %c0_34 = arith.constant 0 : index
    %c0_35 = arith.constant 0 : index
    %48 = vector.load %arg2[%c0_33, %c0_34, %c0_35] : memref<8x2x16xf32, #tpu.memory_space<vmem>>, vector<1x2x16xf32>
    %49 = vector.shape_cast %48 : vector<1x2x16xf32> to vector<2x16xf32>
    %50 = tpu.concatenate %47, %49 in 1 : vector<2x32xf32>, vector<2x16xf32> -> vector<2x48xf32>
    %cst_36 = arith.constant dense<0.000000e+00> : vector<2x32xf32>
    %51 = tpu.matmul %50, %20, %cst_36 {dimension_numbers = #tpu.dot_dimension_numbers<[1], [0], [0], [1], [0, 0, 1, 1], [], []>} : vector<2x48xf32>, vector<48x32xf32>, vector<2x32xf32> -> vector<2x32xf32>
    %52 = vector.broadcast %21 : vector<1x32xf32> to vector<2x32xf32>
    %53 = arith.addf %51, %52 : vector<2x32xf32>
    %54 = math.tanh %53 : vector<2x32xf32>
    %cst_37 = arith.constant dense<0.000000e+00> : vector<2x16xf32>
    %55 = tpu.matmul %54, %22, %cst_37 {dimension_numbers = #tpu.dot_dimension_numbers<[1], [0], [0], [1], [0, 0, 1, 1], [], []>} : vector<2x32xf32>, vector<32x16xf32>, vector<2x16xf32> -> vector<2x16xf32>
    %56 = vector.broadcast %23 : vector<1x16xf32> to vector<2x16xf32>
    %57 = arith.addf %55, %56 : vector<2x16xf32>
    %cst_38 = arith.constant dense<0.000000e+00> : vector<2x32xf32>
    %58 = tpu.matmul %54, %19, %cst_38 {dimension_numbers = #tpu.dot_dimension_numbers<[1], [0], [0], [1], [0, 0, 1, 1], [], []>} : vector<2x32xf32>, vector<32x32xf32>, vector<2x32xf32> -> vector<2x32xf32>
    %59 = vector.shape_cast %58 : vector<2x32xf32> to vector<2x1x32xf32>
    %60 = vector.broadcast %59 : vector<2x1x32xf32> to vector<2x8x32xf32>
    %61 = arith.addf %17, %60 : vector<2x8x32xf32>
    %62 = math.tanh %61 : vector<2x8x32xf32>
    %63 = vector.shape_cast %18 : vector<1x32xf32> to vector<1x1x32xf32>
    %64 = vector.broadcast %63 : vector<1x1x32xf32> to vector<2x8x32xf32>
    %65 = arith.mulf %62, %64 : vector<2x8x32xf32>
    %cst_39 = arith.constant dense<0.000000e+00> : vector<2x8xf32>
    %66 = vector.multi_reduction <add>, %65, %cst_39 [2] : vector<2x8x32xf32> to vector<2x8xf32>
    %cst_40 = arith.constant dense<0xFF800000> : vector<2xf32>
    %67 = vector.multi_reduction <maximumf>, %66, %cst_40 [1] : vector<2x8xf32> to vector<2xf32>
    %68 = vector.shape_cast %67 : vector<2xf32> to vector<2x1xf32>
    %69 = vector.broadcast %68 : vector<2x1xf32> to vector<2x8xf32>
    %70 = arith.subf %66, %69 : vector<2x8xf32>
    %71 = math.exp %70 : vector<2x8xf32>
    %cst_41 = arith.constant dense<0.000000e+00> : vector<2xf32>
    %72 = vector.multi_reduction <add>, %71, %cst_41 [1] : vector<2x8xf32> to vector<2xf32>
    %73 = vector.shape_cast %72 : vector<2xf32> to vector<2x1xf32>
    %74 = tpu.reciprocal %73 {approx = true} : vector<2x1xf32> -> vector<2x1xf32>
    %75 = vector.broadcast %74 : vector<2x1xf32> to vector<2x8xf32>
    %76 = arith.mulf %71, %75 : vector<2x8xf32>
    %77 = vector.shape_cast %76 : vector<2x8xf32> to vector<2x8x1xf32>
    %78 = vector.broadcast %77 : vector<2x8x1xf32> to vector<2x8x32xf32>
    %79 = arith.mulf %78, %16 : vector<2x8x32xf32>
    %cst_42 = arith.constant dense<0.000000e+00> : vector<2x32xf32>
    %80 = vector.multi_reduction <add>, %79, %cst_42 [1] : vector<2x8x32xf32> to vector<2x32xf32>
    %c1 = arith.constant 1 : index
    %c0_43 = arith.constant 0 : index
    %c0_44 = arith.constant 0 : index
    %81 = vector.load %arg2[%c1, %c0_43, %c0_44] : memref<8x2x16xf32, #tpu.memory_space<vmem>>, vector<1x2x16xf32>
    %82 = vector.shape_cast %81 : vector<1x2x16xf32> to vector<2x16xf32>
    %83 = tpu.concatenate %80, %82 in 1 : vector<2x32xf32>, vector<2x16xf32> -> vector<2x48xf32>
    %cst_45 = arith.constant dense<0.000000e+00> : vector<2x32xf32>
    %84 = tpu.matmul %83, %20, %cst_45 {dimension_numbers = #tpu.dot_dimension_numbers<[1], [0], [0], [1], [0, 0, 1, 1], [], []>} : vector<2x48xf32>, vector<48x32xf32>, vector<2x32xf32> -> vector<2x32xf32>
    %85 = vector.broadcast %21 : vector<1x32xf32> to vector<2x32xf32>
    %86 = arith.addf %84, %85 : vector<2x32xf32>
    %87 = math.tanh %86 : vector<2x32xf32>
    %cst_46 = arith.constant dense<0.000000e+00> : vector<2x16xf32>
    %88 = tpu.matmul %87, %22, %cst_46 {dimension_numbers = #tpu.dot_dimension_numbers<[1], [0], [0], [1], [0, 0, 1, 1], [], []>} : vector<2x32xf32>, vector<32x16xf32>, vector<2x16xf32> -> vector<2x16xf32>
    %89 = vector.broadcast %23 : vector<1x16xf32> to vector<2x16xf32>
    %90 = arith.addf %88, %89 : vector<2x16xf32>
    %cst_47 = arith.constant dense<0.000000e+00> : vector<2x32xf32>
    %91 = tpu.matmul %87, %19, %cst_47 {dimension_numbers = #tpu.dot_dimension_numbers<[1], [0], [0], [1], [0, 0, 1, 1], [], []>} : vector<2x32xf32>, vector<32x32xf32>, vector<2x32xf32> -> vector<2x32xf32>
    %92 = vector.shape_cast %91 : vector<2x32xf32> to vector<2x1x32xf32>
    %93 = vector.broadcast %92 : vector<2x1x32xf32> to vector<2x8x32xf32>
    %94 = arith.addf %17, %93 : vector<2x8x32xf32>
    %95 = math.tanh %94 : vector<2x8x32xf32>
    %96 = vector.shape_cast %18 : vector<1x32xf32> to vector<1x1x32xf32>
    %97 = vector.broadcast %96 : vector<1x1x32xf32> to vector<2x8x32xf32>
    %98 = arith.mulf %95, %97 : vector<2x8x32xf32>
    %cst_48 = arith.constant dense<0.000000e+00> : vector<2x8xf32>
    %99 = vector.multi_reduction <add>, %98, %cst_48 [2] : vector<2x8x32xf32> to vector<2x8xf32>
    %cst_49 = arith.constant dense<0xFF800000> : vector<2xf32>
    %100 = vector.multi_reduction <maximumf>, %99, %cst_49 [1] : vector<2x8xf32> to vector<2xf32>
    %101 = vector.shape_cast %100 : vector<2xf32> to vector<2x1xf32>
    %102 = vector.broadcast %101 : vector<2x1xf32> to vector<2x8xf32>
    %103 = arith.subf %99, %102 : vector<2x8xf32>
    %104 = math.exp %103 : vector<2x8xf32>
    %cst_50 = arith.constant dense<0.000000e+00> : vector<2xf32>
    %105 = vector.multi_reduction <add>, %104, %cst_50 [1] : vector<2x8xf32> to vector<2xf32>
    %106 = vector.shape_cast %105 : vector<2xf32> to vector<2x1xf32>
    %107 = tpu.reciprocal %106 {approx = true} : vector<2x1xf32> -> vector<2x1xf32>
    %108 = vector.broadcast %107 : vector<2x1xf32> to vector<2x8xf32>
    %109 = arith.mulf %104, %108 : vector<2x8xf32>
    %110 = vector.shape_cast %109 : vector<2x8xf32> to vector<2x8x1xf32>
    %111 = vector.broadcast %110 : vector<2x8x1xf32> to vector<2x8x32xf32>
    %112 = arith.mulf %111, %16 : vector<2x8x32xf32>
    %cst_51 = arith.constant dense<0.000000e+00> : vector<2x32xf32>
    %113 = vector.multi_reduction <add>, %112, %cst_51 [1] : vector<2x8x32xf32> to vector<2x32xf32>
    %c2 = arith.constant 2 : index
    %c0_52 = arith.constant 0 : index
    %c0_53 = arith.constant 0 : index
    %114 = vector.load %arg2[%c2, %c0_52, %c0_53] : memref<8x2x16xf32, #tpu.memory_space<vmem>>, vector<1x2x16xf32>
    %115 = vector.shape_cast %114 : vector<1x2x16xf32> to vector<2x16xf32>
    %116 = tpu.concatenate %113, %115 in 1 : vector<2x32xf32>, vector<2x16xf32> -> vector<2x48xf32>
    %cst_54 = arith.constant dense<0.000000e+00> : vector<2x32xf32>
    %117 = tpu.matmul %116, %20, %cst_54 {dimension_numbers = #tpu.dot_dimension_numbers<[1], [0], [0], [1], [0, 0, 1, 1], [], []>} : vector<2x48xf32>, vector<48x32xf32>, vector<2x32xf32> -> vector<2x32xf32>
    %118 = vector.broadcast %21 : vector<1x32xf32> to vector<2x32xf32>
    %119 = arith.addf %117, %118 : vector<2x32xf32>
    %120 = math.tanh %119 : vector<2x32xf32>
    %cst_55 = arith.constant dense<0.000000e+00> : vector<2x16xf32>
    %121 = tpu.matmul %120, %22, %cst_55 {dimension_numbers = #tpu.dot_dimension_numbers<[1], [0], [0], [1], [0, 0, 1, 1], [], []>} : vector<2x32xf32>, vector<32x16xf32>, vector<2x16xf32> -> vector<2x16xf32>
    %122 = vector.broadcast %23 : vector<1x16xf32> to vector<2x16xf32>
    %123 = arith.addf %121, %122 : vector<2x16xf32>
    %cst_56 = arith.constant dense<0.000000e+00> : vector<2x32xf32>
    %124 = tpu.matmul %120, %19, %cst_56 {dimension_numbers = #tpu.dot_dimension_numbers<[1], [0], [0], [1], [0, 0, 1, 1], [], []>} : vector<2x32xf32>, vector<32x32xf32>, vector<2x32xf32> -> vector<2x32xf32>
    %125 = vector.shape_cast %124 : vector<2x32xf32> to vector<2x1x32xf32>
    %126 = vector.broadcast %125 : vector<2x1x32xf32> to vector<2x8x32xf32>
    %127 = arith.addf %17, %126 : vector<2x8x32xf32>
    %128 = math.tanh %127 : vector<2x8x32xf32>
    %129 = vector.shape_cast %18 : vector<1x32xf32> to vector<1x1x32xf32>
    %130 = vector.broadcast %129 : vector<1x1x32xf32> to vector<2x8x32xf32>
    %131 = arith.mulf %128, %130 : vector<2x8x32xf32>
    %cst_57 = arith.constant dense<0.000000e+00> : vector<2x8xf32>
    %132 = vector.multi_reduction <add>, %131, %cst_57 [2] : vector<2x8x32xf32> to vector<2x8xf32>
    %cst_58 = arith.constant dense<0xFF800000> : vector<2xf32>
    %133 = vector.multi_reduction <maximumf>, %132, %cst_58 [1] : vector<2x8xf32> to vector<2xf32>
    %134 = vector.shape_cast %133 : vector<2xf32> to vector<2x1xf32>
    %135 = vector.broadcast %134 : vector<2x1xf32> to vector<2x8xf32>
    %136 = arith.subf %132, %135 : vector<2x8xf32>
    %137 = math.exp %136 : vector<2x8xf32>
    %cst_59 = arith.constant dense<0.000000e+00> : vector<2xf32>
    %138 = vector.multi_reduction <add>, %137, %cst_59 [1] : vector<2x8xf32> to vector<2xf32>
    %139 = vector.shape_cast %138 : vector<2xf32> to vector<2x1xf32>
    %140 = tpu.reciprocal %139 {approx = true} : vector<2x1xf32> -> vector<2x1xf32>
    %141 = vector.broadcast %140 : vector<2x1xf32> to vector<2x8xf32>
    %142 = arith.mulf %137, %141 : vector<2x8xf32>
    %143 = vector.shape_cast %142 : vector<2x8xf32> to vector<2x8x1xf32>
    %144 = vector.broadcast %143 : vector<2x8x1xf32> to vector<2x8x32xf32>
    %145 = arith.mulf %144, %16 : vector<2x8x32xf32>
    %cst_60 = arith.constant dense<0.000000e+00> : vector<2x32xf32>
    %146 = vector.multi_reduction <add>, %145, %cst_60 [1] : vector<2x8x32xf32> to vector<2x32xf32>
    %c3 = arith.constant 3 : index
    %c0_61 = arith.constant 0 : index
    %c0_62 = arith.constant 0 : index
    %147 = vector.load %arg2[%c3, %c0_61, %c0_62] : memref<8x2x16xf32, #tpu.memory_space<vmem>>, vector<1x2x16xf32>
    %148 = vector.shape_cast %147 : vector<1x2x16xf32> to vector<2x16xf32>
    %149 = tpu.concatenate %146, %148 in 1 : vector<2x32xf32>, vector<2x16xf32> -> vector<2x48xf32>
    %cst_63 = arith.constant dense<0.000000e+00> : vector<2x32xf32>
    %150 = tpu.matmul %149, %20, %cst_63 {dimension_numbers = #tpu.dot_dimension_numbers<[1], [0], [0], [1], [0, 0, 1, 1], [], []>} : vector<2x48xf32>, vector<48x32xf32>, vector<2x32xf32> -> vector<2x32xf32>
    %151 = vector.broadcast %21 : vector<1x32xf32> to vector<2x32xf32>
    %152 = arith.addf %150, %151 : vector<2x32xf32>
    %153 = math.tanh %152 : vector<2x32xf32>
    %cst_64 = arith.constant dense<0.000000e+00> : vector<2x16xf32>
    %154 = tpu.matmul %153, %22, %cst_64 {dimension_numbers = #tpu.dot_dimension_numbers<[1], [0], [0], [1], [0, 0, 1, 1], [], []>} : vector<2x32xf32>, vector<32x16xf32>, vector<2x16xf32> -> vector<2x16xf32>
    %155 = vector.broadcast %23 : vector<1x16xf32> to vector<2x16xf32>
    %156 = arith.addf %154, %155 : vector<2x16xf32>
    %cst_65 = arith.constant dense<0.000000e+00> : vector<2x32xf32>
    %157 = tpu.matmul %153, %19, %cst_65 {dimension_numbers = #tpu.dot_dimension_numbers<[1], [0], [0], [1], [0, 0, 1, 1], [], []>} : vector<2x32xf32>, vector<32x32xf32>, vector<2x32xf32> -> vector<2x32xf32>
    %158 = vector.shape_cast %157 : vector<2x32xf32> to vector<2x1x32xf32>
    %159 = vector.broadcast %158 : vector<2x1x32xf32> to vector<2x8x32xf32>
    %160 = arith.addf %17, %159 : vector<2x8x32xf32>
    %161 = math.tanh %160 : vector<2x8x32xf32>
    %162 = vector.shape_cast %18 : vector<1x32xf32> to vector<1x1x32xf32>
    %163 = vector.broadcast %162 : vector<1x1x32xf32> to vector<2x8x32xf32>
    %164 = arith.mulf %161, %163 : vector<2x8x32xf32>
    %cst_66 = arith.constant dense<0.000000e+00> : vector<2x8xf32>
    %165 = vector.multi_reduction <add>, %164, %cst_66 [2] : vector<2x8x32xf32> to vector<2x8xf32>
    %cst_67 = arith.constant dense<0xFF800000> : vector<2xf32>
    %166 = vector.multi_reduction <maximumf>, %165, %cst_67 [1] : vector<2x8xf32> to vector<2xf32>
    %167 = vector.shape_cast %166 : vector<2xf32> to vector<2x1xf32>
    %168 = vector.broadcast %167 : vector<2x1xf32> to vector<2x8xf32>
    %169 = arith.subf %165, %168 : vector<2x8xf32>
    %170 = math.exp %169 : vector<2x8xf32>
    %cst_68 = arith.constant dense<0.000000e+00> : vector<2xf32>
    %171 = vector.multi_reduction <add>, %170, %cst_68 [1] : vector<2x8xf32> to vector<2xf32>
    %172 = vector.shape_cast %171 : vector<2xf32> to vector<2x1xf32>
    %173 = tpu.reciprocal %172 {approx = true} : vector<2x1xf32> -> vector<2x1xf32>
    %174 = vector.broadcast %173 : vector<2x1xf32> to vector<2x8xf32>
    %175 = arith.mulf %170, %174 : vector<2x8xf32>
    %176 = vector.shape_cast %175 : vector<2x8xf32> to vector<2x8x1xf32>
    %177 = vector.broadcast %176 : vector<2x8x1xf32> to vector<2x8x32xf32>
    %178 = arith.mulf %177, %16 : vector<2x8x32xf32>
    %cst_69 = arith.constant dense<0.000000e+00> : vector<2x32xf32>
    %179 = vector.multi_reduction <add>, %178, %cst_69 [1] : vector<2x8x32xf32> to vector<2x32xf32>
    %c4 = arith.constant 4 : index
    %c0_70 = arith.constant 0 : index
    %c0_71 = arith.constant 0 : index
    %180 = vector.load %arg2[%c4, %c0_70, %c0_71] : memref<8x2x16xf32, #tpu.memory_space<vmem>>, vector<1x2x16xf32>
    %181 = vector.shape_cast %180 : vector<1x2x16xf32> to vector<2x16xf32>
    %182 = tpu.concatenate %179, %181 in 1 : vector<2x32xf32>, vector<2x16xf32> -> vector<2x48xf32>
    %cst_72 = arith.constant dense<0.000000e+00> : vector<2x32xf32>
    %183 = tpu.matmul %182, %20, %cst_72 {dimension_numbers = #tpu.dot_dimension_numbers<[1], [0], [0], [1], [0, 0, 1, 1], [], []>} : vector<2x48xf32>, vector<48x32xf32>, vector<2x32xf32> -> vector<2x32xf32>
    %184 = vector.broadcast %21 : vector<1x32xf32> to vector<2x32xf32>
    %185 = arith.addf %183, %184 : vector<2x32xf32>
    %186 = math.tanh %185 : vector<2x32xf32>
    %cst_73 = arith.constant dense<0.000000e+00> : vector<2x16xf32>
    %187 = tpu.matmul %186, %22, %cst_73 {dimension_numbers = #tpu.dot_dimension_numbers<[1], [0], [0], [1], [0, 0, 1, 1], [], []>} : vector<2x32xf32>, vector<32x16xf32>, vector<2x16xf32> -> vector<2x16xf32>
    %188 = vector.broadcast %23 : vector<1x16xf32> to vector<2x16xf32>
    %189 = arith.addf %187, %188 : vector<2x16xf32>
    %cst_74 = arith.constant dense<0.000000e+00> : vector<2x32xf32>
    %190 = tpu.matmul %186, %19, %cst_74 {dimension_numbers = #tpu.dot_dimension_numbers<[1], [0], [0], [1], [0, 0, 1, 1], [], []>} : vector<2x32xf32>, vector<32x32xf32>, vector<2x32xf32> -> vector<2x32xf32>
    %191 = vector.shape_cast %190 : vector<2x32xf32> to vector<2x1x32xf32>
    %192 = vector.broadcast %191 : vector<2x1x32xf32> to vector<2x8x32xf32>
    %193 = arith.addf %17, %192 : vector<2x8x32xf32>
    %194 = math.tanh %193 : vector<2x8x32xf32>
    %195 = vector.shape_cast %18 : vector<1x32xf32> to vector<1x1x32xf32>
    %196 = vector.broadcast %195 : vector<1x1x32xf32> to vector<2x8x32xf32>
    %197 = arith.mulf %194, %196 : vector<2x8x32xf32>
    %cst_75 = arith.constant dense<0.000000e+00> : vector<2x8xf32>
    %198 = vector.multi_reduction <add>, %197, %cst_75 [2] : vector<2x8x32xf32> to vector<2x8xf32>
    %cst_76 = arith.constant dense<0xFF800000> : vector<2xf32>
    %199 = vector.multi_reduction <maximumf>, %198, %cst_76 [1] : vector<2x8xf32> to vector<2xf32>
    %200 = vector.shape_cast %199 : vector<2xf32> to vector<2x1xf32>
    %201 = vector.broadcast %200 : vector<2x1xf32> to vector<2x8xf32>
    %202 = arith.subf %198, %201 : vector<2x8xf32>
    %203 = math.exp %202 : vector<2x8xf32>
    %cst_77 = arith.constant dense<0.000000e+00> : vector<2xf32>
    %204 = vector.multi_reduction <add>, %203, %cst_77 [1] : vector<2x8xf32> to vector<2xf32>
    %205 = vector.shape_cast %204 : vector<2xf32> to vector<2x1xf32>
    %206 = tpu.reciprocal %205 {approx = true} : vector<2x1xf32> -> vector<2x1xf32>
    %207 = vector.broadcast %206 : vector<2x1xf32> to vector<2x8xf32>
    %208 = arith.mulf %203, %207 : vector<2x8xf32>
    %209 = vector.shape_cast %208 : vector<2x8xf32> to vector<2x8x1xf32>
    %210 = vector.broadcast %209 : vector<2x8x1xf32> to vector<2x8x32xf32>
    %211 = arith.mulf %210, %16 : vector<2x8x32xf32>
    %cst_78 = arith.constant dense<0.000000e+00> : vector<2x32xf32>
    %212 = vector.multi_reduction <add>, %211, %cst_78 [1] : vector<2x8x32xf32> to vector<2x32xf32>
    %c5 = arith.constant 5 : index
    %c0_79 = arith.constant 0 : index
    %c0_80 = arith.constant 0 : index
    %213 = vector.load %arg2[%c5, %c0_79, %c0_80] : memref<8x2x16xf32, #tpu.memory_space<vmem>>, vector<1x2x16xf32>
    %214 = vector.shape_cast %213 : vector<1x2x16xf32> to vector<2x16xf32>
    %215 = tpu.concatenate %212, %214 in 1 : vector<2x32xf32>, vector<2x16xf32> -> vector<2x48xf32>
    %cst_81 = arith.constant dense<0.000000e+00> : vector<2x32xf32>
    %216 = tpu.matmul %215, %20, %cst_81 {dimension_numbers = #tpu.dot_dimension_numbers<[1], [0], [0], [1], [0, 0, 1, 1], [], []>} : vector<2x48xf32>, vector<48x32xf32>, vector<2x32xf32> -> vector<2x32xf32>
    %217 = vector.broadcast %21 : vector<1x32xf32> to vector<2x32xf32>
    %218 = arith.addf %216, %217 : vector<2x32xf32>
    %219 = math.tanh %218 : vector<2x32xf32>
    %cst_82 = arith.constant dense<0.000000e+00> : vector<2x16xf32>
    %220 = tpu.matmul %219, %22, %cst_82 {dimension_numbers = #tpu.dot_dimension_numbers<[1], [0], [0], [1], [0, 0, 1, 1], [], []>} : vector<2x32xf32>, vector<32x16xf32>, vector<2x16xf32> -> vector<2x16xf32>
    %221 = vector.broadcast %23 : vector<1x16xf32> to vector<2x16xf32>
    %222 = arith.addf %220, %221 : vector<2x16xf32>
    %cst_83 = arith.constant dense<0.000000e+00> : vector<2x32xf32>
    %223 = tpu.matmul %219, %19, %cst_83 {dimension_numbers = #tpu.dot_dimension_numbers<[1], [0], [0], [1], [0, 0, 1, 1], [], []>} : vector<2x32xf32>, vector<32x32xf32>, vector<2x32xf32> -> vector<2x32xf32>
    %224 = vector.shape_cast %223 : vector<2x32xf32> to vector<2x1x32xf32>
    %225 = vector.broadcast %224 : vector<2x1x32xf32> to vector<2x8x32xf32>
    %226 = arith.addf %17, %225 : vector<2x8x32xf32>
    %227 = math.tanh %226 : vector<2x8x32xf32>
    %228 = vector.shape_cast %18 : vector<1x32xf32> to vector<1x1x32xf32>
    %229 = vector.broadcast %228 : vector<1x1x32xf32> to vector<2x8x32xf32>
    %230 = arith.mulf %227, %229 : vector<2x8x32xf32>
    %cst_84 = arith.constant dense<0.000000e+00> : vector<2x8xf32>
    %231 = vector.multi_reduction <add>, %230, %cst_84 [2] : vector<2x8x32xf32> to vector<2x8xf32>
    %cst_85 = arith.constant dense<0xFF800000> : vector<2xf32>
    %232 = vector.multi_reduction <maximumf>, %231, %cst_85 [1] : vector<2x8xf32> to vector<2xf32>
    %233 = vector.shape_cast %232 : vector<2xf32> to vector<2x1xf32>
    %234 = vector.broadcast %233 : vector<2x1xf32> to vector<2x8xf32>
    %235 = arith.subf %231, %234 : vector<2x8xf32>
    %236 = math.exp %235 : vector<2x8xf32>
    %cst_86 = arith.constant dense<0.000000e+00> : vector<2xf32>
    %237 = vector.multi_reduction <add>, %236, %cst_86 [1] : vector<2x8xf32> to vector<2xf32>
    %238 = vector.shape_cast %237 : vector<2xf32> to vector<2x1xf32>
    %239 = tpu.reciprocal %238 {approx = true} : vector<2x1xf32> -> vector<2x1xf32>
    %240 = vector.broadcast %239 : vector<2x1xf32> to vector<2x8xf32>
    %241 = arith.mulf %236, %240 : vector<2x8xf32>
    %242 = vector.shape_cast %241 : vector<2x8xf32> to vector<2x8x1xf32>
    %243 = vector.broadcast %242 : vector<2x8x1xf32> to vector<2x8x32xf32>
    %244 = arith.mulf %243, %16 : vector<2x8x32xf32>
    %cst_87 = arith.constant dense<0.000000e+00> : vector<2x32xf32>
    %245 = vector.multi_reduction <add>, %244, %cst_87 [1] : vector<2x8x32xf32> to vector<2x32xf32>
    %c6 = arith.constant 6 : index
    %c0_88 = arith.constant 0 : index
    %c0_89 = arith.constant 0 : index
    %246 = vector.load %arg2[%c6, %c0_88, %c0_89] : memref<8x2x16xf32, #tpu.memory_space<vmem>>, vector<1x2x16xf32>
    %247 = vector.shape_cast %246 : vector<1x2x16xf32> to vector<2x16xf32>
    %248 = tpu.concatenate %245, %247 in 1 : vector<2x32xf32>, vector<2x16xf32> -> vector<2x48xf32>
    %cst_90 = arith.constant dense<0.000000e+00> : vector<2x32xf32>
    %249 = tpu.matmul %248, %20, %cst_90 {dimension_numbers = #tpu.dot_dimension_numbers<[1], [0], [0], [1], [0, 0, 1, 1], [], []>} : vector<2x48xf32>, vector<48x32xf32>, vector<2x32xf32> -> vector<2x32xf32>
    %250 = vector.broadcast %21 : vector<1x32xf32> to vector<2x32xf32>
    %251 = arith.addf %249, %250 : vector<2x32xf32>
    %252 = math.tanh %251 : vector<2x32xf32>
    %cst_91 = arith.constant dense<0.000000e+00> : vector<2x16xf32>
    %253 = tpu.matmul %252, %22, %cst_91 {dimension_numbers = #tpu.dot_dimension_numbers<[1], [0], [0], [1], [0, 0, 1, 1], [], []>} : vector<2x32xf32>, vector<32x16xf32>, vector<2x16xf32> -> vector<2x16xf32>
    %254 = vector.broadcast %23 : vector<1x16xf32> to vector<2x16xf32>
    %255 = arith.addf %253, %254 : vector<2x16xf32>
    %cst_92 = arith.constant dense<0.000000e+00> : vector<2x32xf32>
    %256 = tpu.matmul %252, %19, %cst_92 {dimension_numbers = #tpu.dot_dimension_numbers<[1], [0], [0], [1], [0, 0, 1, 1], [], []>} : vector<2x32xf32>, vector<32x32xf32>, vector<2x32xf32> -> vector<2x32xf32>
    %257 = vector.shape_cast %256 : vector<2x32xf32> to vector<2x1x32xf32>
    %258 = vector.broadcast %257 : vector<2x1x32xf32> to vector<2x8x32xf32>
    %259 = arith.addf %17, %258 : vector<2x8x32xf32>
    %260 = math.tanh %259 : vector<2x8x32xf32>
    %261 = vector.shape_cast %18 : vector<1x32xf32> to vector<1x1x32xf32>
    %262 = vector.broadcast %261 : vector<1x1x32xf32> to vector<2x8x32xf32>
    %263 = arith.mulf %260, %262 : vector<2x8x32xf32>
    %cst_93 = arith.constant dense<0.000000e+00> : vector<2x8xf32>
    %264 = vector.multi_reduction <add>, %263, %cst_93 [2] : vector<2x8x32xf32> to vector<2x8xf32>
    %cst_94 = arith.constant dense<0xFF800000> : vector<2xf32>
    %265 = vector.multi_reduction <maximumf>, %264, %cst_94 [1] : vector<2x8xf32> to vector<2xf32>
    %266 = vector.shape_cast %265 : vector<2xf32> to vector<2x1xf32>
    %267 = vector.broadcast %266 : vector<2x1xf32> to vector<2x8xf32>
    %268 = arith.subf %264, %267 : vector<2x8xf32>
    %269 = math.exp %268 : vector<2x8xf32>
    %cst_95 = arith.constant dense<0.000000e+00> : vector<2xf32>
    %270 = vector.multi_reduction <add>, %269, %cst_95 [1] : vector<2x8xf32> to vector<2xf32>
    %271 = vector.shape_cast %270 : vector<2xf32> to vector<2x1xf32>
    %272 = tpu.reciprocal %271 {approx = true} : vector<2x1xf32> -> vector<2x1xf32>
    %273 = vector.broadcast %272 : vector<2x1xf32> to vector<2x8xf32>
    %274 = arith.mulf %269, %273 : vector<2x8xf32>
    %275 = vector.shape_cast %274 : vector<2x8xf32> to vector<2x8x1xf32>
    %276 = vector.broadcast %275 : vector<2x8x1xf32> to vector<2x8x32xf32>
    %277 = arith.mulf %276, %16 : vector<2x8x32xf32>
    %cst_96 = arith.constant dense<0.000000e+00> : vector<2x32xf32>
    %278 = vector.multi_reduction <add>, %277, %cst_96 [1] : vector<2x8x32xf32> to vector<2x32xf32>
    %c7 = arith.constant 7 : index
    %c0_97 = arith.constant 0 : index
    %c0_98 = arith.constant 0 : index
    %279 = vector.load %arg2[%c7, %c0_97, %c0_98] : memref<8x2x16xf32, #tpu.memory_space<vmem>>, vector<1x2x16xf32>
    %280 = vector.shape_cast %279 : vector<1x2x16xf32> to vector<2x16xf32>
    %281 = tpu.concatenate %278, %280 in 1 : vector<2x32xf32>, vector<2x16xf32> -> vector<2x48xf32>
    %cst_99 = arith.constant dense<0.000000e+00> : vector<2x32xf32>
    %282 = tpu.matmul %281, %20, %cst_99 {dimension_numbers = #tpu.dot_dimension_numbers<[1], [0], [0], [1], [0, 0, 1, 1], [], []>} : vector<2x48xf32>, vector<48x32xf32>, vector<2x32xf32> -> vector<2x32xf32>
    %283 = vector.broadcast %21 : vector<1x32xf32> to vector<2x32xf32>
    %284 = arith.addf %282, %283 : vector<2x32xf32>
    %285 = math.tanh %284 : vector<2x32xf32>
    %cst_100 = arith.constant dense<0.000000e+00> : vector<2x16xf32>
    %286 = tpu.matmul %285, %22, %cst_100 {dimension_numbers = #tpu.dot_dimension_numbers<[1], [0], [0], [1], [0, 0, 1, 1], [], []>} : vector<2x32xf32>, vector<32x16xf32>, vector<2x16xf32> -> vector<2x16xf32>
    %287 = vector.broadcast %23 : vector<1x16xf32> to vector<2x16xf32>
    %288 = arith.addf %286, %287 : vector<2x16xf32>
    %289 = tpu.concatenate %57, %90, %123, %156, %189, %222, %255, %288 in 1 : vector<2x16xf32>, vector<2x16xf32>, vector<2x16xf32>, vector<2x16xf32>, vector<2x16xf32>, vector<2x16xf32>, vector<2x16xf32>, vector<2x16xf32> -> vector<2x128xf32>
    %c0_101 = arith.constant 0 : index
    %c0_102 = arith.constant 0 : index
    %290 = vector.load %arg14[%c0_101, %c0_102] : memref<2x128xf32, #tpu.memory_space<vmem>>, vector<2x128xf32>
    tpu.vector_store %arg14[%c0_101, %c0_102], %289 {strides = array<i32>} : memref<2x128xf32, #tpu.memory_space<vmem>>, vector<2x128xf32>,
    return
  }
  func.func @transform_0(%arg0: i32) -> (i32, i32) {
    %c0_i32 = arith.constant 0 : i32
    %c0_i32_0 = arith.constant 0 : i32
    %c0_i32_1 = arith.constant 0 : i32
    return %c0_i32, %c0_i32_0 : i32, i32
  }
  func.func @transform_1(%arg0: i32) -> (i32, i32, i32) {
    %c0_i32 = arith.constant 0 : i32
    %c0_i32_0 = arith.constant 0 : i32
    %c0_i32_1 = arith.constant 0 : i32
    %c0_i32_2 = arith.constant 0 : i32
    return %c0_i32, %c0_i32_0, %c0_i32_1 : i32, i32, i32
  }
  func.func @transform_2(%arg0: i32) -> (i32, i32) {
    %c0_i32 = arith.constant 0 : i32
    %c0_i32_0 = arith.constant 0 : i32
    %c0_i32_1 = arith.constant 0 : i32
    return %c0_i32, %c0_i32_0 : i32, i32
  }
  func.func @transform_3(%arg0: i32) -> (i32, i32) {
    %c0_i32 = arith.constant 0 : i32
    %c0_i32_0 = arith.constant 0 : i32
    %c0_i32_1 = arith.constant 0 : i32
    return %c0_i32, %c0_i32_0 : i32, i32
  }
  func.func @transform_4(%arg0: i32) -> (i32, i32) {
    %c0_i32 = arith.constant 0 : i32
    %c0_i32_0 = arith.constant 0 : i32
    %c0_i32_1 = arith.constant 0 : i32
    return %c0_i32, %c0_i32_0 : i32, i32
  }
  func.func @transform_5(%arg0: i32) -> (i32, i32) {
    %c0_i32 = arith.constant 0 : i32
    %c0_i32_0 = arith.constant 0 : i32
    %c0_i32_1 = arith.constant 0 : i32
    return %c0_i32, %c0_i32_0 : i32, i32
  }
  func.func @transform_6(%arg0: i32) -> (i32, i32) {
    %c0_i32 = arith.constant 0 : i32
    %c0_i32_0 = arith.constant 0 : i32
    %c0_i32_1 = arith.constant 0 : i32
    return %c0_i32, %c0_i32_0 : i32, i32
  }
  func.func @transform_7(%arg0: i32) -> (i32, i32) {
    %c0_i32 = arith.constant 0 : i32
    %c0_i32_0 = arith.constant 0 : i32
    %c0_i32_1 = arith.constant 0 : i32
    return %c0_i32, %c0_i32_0 : i32, i32
  }
  func.func @transform_8(%arg0: i32) -> (i32, i32) {
    %c0_i32 = arith.constant 0 : i32
    %c0_i32_0 = arith.constant 0 : i32
    %c0_i32_1 = arith.constant 0 : i32
    return %c0_i32, %c0_i32_0 : i32, i32
  }
  func.func @transform_9(%arg0: i32) -> (i32, i32) {
    %c0_i32 = arith.constant 0 : i32
    %c0_i32_0 = arith.constant 0 : i32
    %c0_i32_1 = arith.constant 0 : i32
    return %c0_i32, %c0_i32_0 : i32, i32
  }
  func.func @transform_10(%arg0: i32) -> (i32, i32) {
    %c0_i32 = arith.constant 0 : i32
    %c0_i32_0 = arith.constant 0 : i32
    %c0_i32_1 = arith.constant 0 : i32
    return %c0_i32, %c0_i32_0 : i32, i32
  }
  func.func @transform_11(%arg0: i32) -> (i32, i32) {
    %c0_i32 = arith.constant 0 : i32
    %c0_i32_0 = arith.constant 0 : i32
    %c0_i32_1 = arith.constant 0 : i32
    return %c0_i32, %c0_i32_0 : i32, i32
  }
  func.func @transform_12(%arg0: i32) -> (i32, i32) {
    %c0_i32 = arith.constant 0 : i32
    %c0_i32_0 = arith.constant 0 : i32
    %c0_i32_1 = arith.constant 0 : i32
    return %c0_i32, %c0_i32_0 : i32, i32
  }
  func.func @transform_13(%arg0: i32) -> (i32, i32) {
    %c0_i32 = arith.constant 0 : i32
    %c0_i32_0 = arith.constant 0 : i32
    %c0_i32_1 = arith.constant 0 : i32
    return %c0_i32, %c0_i32_0 : i32, i32
  }
}

</mosaic_0001>

<llo_original>
// kernel: text_recognition_forward.1
$region0: #{text_recognition_forward.1}
  #allocation0 [shape = 'u32[]', space=smem, size = 0x4, offset = 0x4, fixed_abs, tag = 'smem constant byte address 0x4 - core index']
  #allocation1 [shape = 'u32[144,128]{1,0:T(1,128)}', space=vmem, size = 0x12000, scoped, tag = 'internal scratch']
  %s0 = inlined_call_operand.vmem [shape: f32[64,48], index: 0, kind: input, shape index: {}]
  %s1 = inlined_call_operand.vmem [shape: f32[8,2,16], index: 1, kind: input, shape index: {}]
  %s2 = inlined_call_operand.vmem [shape: f32[48,32], index: 2, kind: input, shape index: {}]
  %s3 = inlined_call_operand.vmem [shape: f32[1,32], index: 3, kind: input, shape index: {}]
  %s4 = inlined_call_operand.vmem [shape: f32[16,64], index: 4, kind: input, shape index: {}]
  %s5 = inlined_call_operand.vmem [shape: f32[32,32], index: 5, kind: input, shape index: {}]
  %s6 = inlined_call_operand.vmem [shape: f32[32,32], index: 6, kind: input, shape index: {}]
  %s7 = inlined_call_operand.vmem [shape: f32[1,32], index: 7, kind: input, shape index: {}]
  %s8 = inlined_call_operand.vmem [shape: f32[48,32], index: 8, kind: input, shape index: {}]
  %s9 = inlined_call_operand.vmem [shape: f32[1,32], index: 9, kind: input, shape index: {}]
  %s10 = inlined_call_operand.vmem [shape: f32[32,16], index: 10, kind: input, shape index: {}]
  %s11 = inlined_call_operand.vmem [shape: f32[1,16], index: 11, kind: input, shape index: {}]
  %s12 = inlined_call_operand.vmem [shape: f32[64,48], index: 12, kind: output, shape index: {0}]
  %s13 = inlined_call_operand.vmem [shape: f32[2,128], index: 13, kind: output, shape index: {1}]
  %14 = xla_tuple %s12, %s13
  %s15 = sld [smem:[#allocation0]]
  $region66: #{text_recognition_forward.1} parent=0
    _
  %s17 = ssub.s32 1, %s15
  %s18 = scalar_select 0, %s17, %s15
  // Predicated region
  $region2: #{text_recognition_forward.1} parent=0 // pred_check
    _
  $region3: #{text_recognition_forward.1} parent=0 // pred_check_branch
    %20 = sbr.rel (0) target = $region5
  $region4: #{text_recognition_forward.1} parent=0 // pred_region
    _
  $region5: #{text_recognition_forward.1} parent=0 // pred_fallthru
    _
  // Predicated region
  $region6: #{text_recognition_forward.1} parent=0 // pred_check
    _
  $region7: #{text_recognition_forward.1} parent=0 // pred_check_branch
    %22 = sbr.rel (0) target = $region9
  $region8: #{text_recognition_forward.1} parent=0 // pred_region
    _
  $region9: #{text_recognition_forward.1} parent=0 // pred_fallthru
    _
  // Predicated region
  $region10: #{text_recognition_forward.1} parent=0 // pred_check
    _
  $region11: #{text_recognition_forward.1} parent=0 // pred_check_branch
    %24 = sbr.rel (0) target = $region13
  $region12: #{text_recognition_forward.1} parent=0 // pred_region
    _
  $region13: #{text_recognition_forward.1} parent=0 // pred_fallthru
    _
  // Predicated region
  $region14: #{text_recognition_forward.1} parent=0 // pred_check
    _
  $region15: #{text_recognition_forward.1} parent=0 // pred_check_branch
    %26 = sbr.rel (0) target = $region17
  $region16: #{text_recognition_forward.1} parent=0 // pred_region
    _
  $region17: #{text_recognition_forward.1} parent=0 // pred_fallthru
    _
  // Predicated region
  $region18: #{text_recognition_forward.1} parent=0 // pred_check
    _
  $region19: #{text_recognition_forward.1} parent=0 // pred_check_branch
    %28 = sbr.rel (0) target = $region21
  $region20: #{text_recognition_forward.1} parent=0 // pred_region
    _
  $region21: #{text_recognition_forward.1} parent=0 // pred_fallthru
    _
  // Predicated region
  $region22: #{text_recognition_forward.1} parent=0 // pred_check
    _
  $region23: #{text_recognition_forward.1} parent=0 // pred_check_branch
    %30 = sbr.rel (0) target = $region25
  $region24: #{text_recognition_forward.1} parent=0 // pred_region
    _
  $region25: #{text_recognition_forward.1} parent=0 // pred_fallthru
    _
  // Predicated region
  $region26: #{text_recognition_forward.1} parent=0 // pred_check
    _
  $region27: #{text_recognition_forward.1} parent=0 // pred_check_branch
    %32 = sbr.rel (0) target = $region29
  $region28: #{text_recognition_forward.1} parent=0 // pred_region
    _
  $region29: #{text_recognition_forward.1} parent=0 // pred_fallthru
    _
  // Predicated region
  $region30: #{text_recognition_forward.1} parent=0 // pred_check
    _
  $region31: #{text_recognition_forward.1} parent=0 // pred_check_branch
    %34 = sbr.rel (0) target = $region33
  $region32: #{text_recognition_forward.1} parent=0 // pred_region
    _
  $region33: #{text_recognition_forward.1} parent=0 // pred_fallthru
    _
  // Predicated region
  $region34: #{text_recognition_forward.1} parent=0 // pred_check
    _
  $region35: #{text_recognition_forward.1} parent=0 // pred_check_branch
    %36 = sbr.rel (0) target = $region37
  $region36: #{text_recognition_forward.1} parent=0 // pred_region
    _
  $region37: #{text_recognition_forward.1} parent=0 // pred_fallthru
    _
  // Predicated region
  $region38: #{text_recognition_forward.1} parent=0 // pred_check
    _
  $region39: #{text_recognition_forward.1} parent=0 // pred_check_branch
    %38 = sbr.rel (0) target = $region41
  $region40: #{text_recognition_forward.1} parent=0 // pred_region
    _
  $region41: #{text_recognition_forward.1} parent=0 // pred_fallthru
    _
  // Predicated region
  $region42: #{text_recognition_forward.1} parent=0 // pred_check
    _
  $region43: #{text_recognition_forward.1} parent=0 // pred_check_branch
    %40 = sbr.rel (0) target = $region45
  $region44: #{text_recognition_forward.1} parent=0 // pred_region
    _
  $region45: #{text_recognition_forward.1} parent=0 // pred_fallthru
    _
  // Predicated region
  $region46: #{text_recognition_forward.1} parent=0 // pred_check
    _
  $region47: #{text_recognition_forward.1} parent=0 // pred_check_branch
    %42 = sbr.rel (0) target = $region49
  $region48: #{text_recognition_forward.1} parent=0 // pred_region
    _
  $region49: #{text_recognition_forward.1} parent=0 // pred_fallthru
    _
  %v43 = vld [vmem:[%s0] sm:$0xff]
  %v44 = vld [vmem:[%s0 + $0x8] sm:$0xff]
  %v45 = vld [vmem:[%s0 + $0x10] sm:$0xff]
  %v46 = vld [vmem:[%s0 + $0x18] sm:$0xff]
  %v47 = vld [vmem:[%s0 + $0x20] sm:$0xff]
  %v48 = vld [vmem:[%s0 + $0x28] sm:$0xff]
  %v49 = vld [vmem:[%s0 + $0x30] sm:$0xff]
  %v50 = vld [vmem:[%s0 + $0x38] sm:$0xff]
  %v51 = vsub.f32 %v43, 127.5
  %v52 = vsub.f32 %v44, 127.5
  %v53 = vsub.f32 %v45, 127.5
  %v54 = vsub.f32 %v46, 127.5
  %v55 = vsub.f32 %v47, 127.5
  %v56 = vsub.f32 %v48, 127.5
  %v57 = vsub.f32 %v49, 127.5
  %v58 = vsub.f32 %v50, 127.5
  %v59 = vmul.f32 %v51, 0.007843138
  %v60 = vmul.f32 %v52, 0.007843138
  %v61 = vmul.f32 %v53, 0.007843138
  %v62 = vmul.f32 %v54, 0.007843138
  %v63 = vmul.f32 %v55, 0.007843138
  %v64 = vmul.f32 %v56, 0.007843138
  %v65 = vmul.f32 %v57, 0.007843138
  %v66 = vmul.f32 %v58, 0.007843138
  %vm67 = vcmask 392192
  %68 = vst.msk [vmem:[%s12] sm:$0xff] %vm67, %v59
  %69 = vst.msk [vmem:[%s12 + $0x8] sm:$0xff] %vm67, %v60
  %70 = vst.msk [vmem:[%s12 + $0x10] sm:$0xff] %vm67, %v61
  %71 = vst.msk [vmem:[%s12 + $0x18] sm:$0xff] %vm67, %v62
  %72 = vst.msk [vmem:[%s12 + $0x20] sm:$0xff] %vm67, %v63
  %73 = vst.msk [vmem:[%s12 + $0x28] sm:$0xff] %vm67, %v64
  %74 = vst.msk [vmem:[%s12 + $0x30] sm:$0xff] %vm67, %v65
  %75 = vst.msk [vmem:[%s12 + $0x38] sm:$0xff] %vm67, %v66
  %v76 = vld [vmem:[%s2] sm:$0xff]
  %v77 = vld [vmem:[%s2 + $0x8] sm:$0xff]
  %v78 = vld [vmem:[%s2 + $0x10] sm:$0xff]
  %v79 = vld [vmem:[%s2 + $0x18] sm:$0xff]
  %v80 = vld [vmem:[%s2 + $0x20] sm:$0xff]
  %v81 = vld [vmem:[%s2 + $0x28] sm:$0xff]
  %v82 = vld [vmem:[%s3] sm:$0x1]
  %v84 = vlaneseq
  %v85 = vshrl.u32 %v84, 7
  %v86 = vsub.s32 0, %v85
  %v87 = vrot.slane %v82, %v86
  %v90 = vsel %vm67, %v59, 0
  %v93 = vsel %vm67, %v60, 0
  %v96 = vsel %vm67, %v61, 0
  %v99 = vsel %vm67, %v62, 0
  %v102 = vsel %vm67, %v63, 0
  %v105 = vsel %vm67, %v64, 0
  %v108 = vsel %vm67, %v65, 0
  %v111 = vsel %vm67, %v66, 0
  %113 = vmatprep.subr.mxu0 0.0
  %114 = vmatpush1.msra.mxu0 %v76
  %115 = vmatprep.subr.mxu0 0.0
  %116 = vmatpush1.msra.mxu0 %v77
  %117 = vmatprep.subr.mxu0 0.0
  %118 = vmatpush1.msra.mxu0 %v78
  %119 = vmatprep.subr.mxu0 0.0
  %120 = vmatpush1.msra.mxu0 %v79
  %121 = vmatprep.subr.mxu0 0.0
  %122 = vmatpush1.msra.mxu0 %v80
  %123 = vmatprep.subr.mxu0 0.0
  %124 = vmatpush1.msra.mxu0 %v81
  %125 = vmatprep.subr.mxu0 0.0
  %126 = vmatpush1.msra.mxu0 0.0
  %127 = vmatprep.subr.mxu0 0.0
  %128 = vmatpush1.msra.mxu0 0.0
  %129 = vmatprep.subr.mxu0 0.0
  %130 = vmatpush1.msra.mxu0 0.0
  %131 = vmatprep.subr.mxu0 0.0
  %132 = vmatpush1.msra.mxu0 0.0
  %133 = vmatprep.subr.mxu0 0.0
  %134 = vmatpush1.msra.mxu0 0.0
  %135 = vmatprep.subr.mxu0 0.0
  %136 = vmatpush1.msra.mxu0 0.0
  %137 = vmatprep.subr.mxu0 0.0
  %138 = vmatpush1.msra.mxu0 0.0
  %139 = vmatprep.subr.mxu0 0.0
  %140 = vmatpush1.msra.mxu0 0.0
  %141 = vmatprep.subr.mxu0 0.0
  %142 = vmatpush1.msra.mxu0 0.0
  %143 = vmatprep.subr.mxu0 0.0
  %144 = vmatpush1.msra.mxu0 0.0
  %145 = vmatprep.subr.mxu0 0.0
  %146 = vmatpush1.msra.mxu0 0.0
  %147 = vmatprep.subr.mxu0 0.0
  %148 = vmatpush1.msra.mxu0 0.0
  %149 = vmatprep.subr.mxu0 0.0
  %150 = vmatpush1.msra.mxu0 0.0
  %151 = vmatprep.subr.mxu0 0.0
  %152 = vmatpush1.msra.mxu0 0.0
  %153 = vmatprep.subr.mxu0 0.0
  %154 = vmatpush1.msra.mxu0 0.0
  %155 = vmatprep.subr.mxu0 0.0
  %156 = vmatpush1.msra.mxu0 0.0
  %157 = vmatprep.subr.mxu0 0.0
  %158 = vmatpush1.msra.mxu0 0.0
  %159 = vmatprep.subr.mxu0 0.0
  %160 = vmatpush1.msra.mxu0 0.0
  %161 = vmatprep.subr.mxu0 0.0
  %162 = vmatpush1.msra.mxu0 0.0
  %163 = vmatprep.subr.mxu0 0.0
  %164 = vmatpush1.msra.mxu0 0.0
  %165 = vmatprep.subr.mxu0 0.0
  %166 = vmatpush1.msra.mxu0 0.0
  %167 = vmatprep.subr.mxu0 0.0
  %168 = vmatpush1.msra.mxu0 0.0
  %169 = vmatprep.subr.mxu0 0.0
  %170 = vmatpush1.msra.mxu0 0.0
  %171 = vmatprep.subr.mxu0 0.0
  %172 = vmatpush1.msra.mxu0 0.0
  %173 = vmatprep.subr.mxu0 0.0
  %174 = vmatpush1.msra.mxu0 0.0
  %175 = vmatprep.subr.mxu0 0.0
  %176 = vmatpush1.msra.mxu0 0.0
  %177 = vmatprep.mubr.f32.mxu0 0.0
  %178 = vmatmul.mubr.f32.gmra.mrb[0].mxu0 %v90
  %v179 = vpop.f32.mrb[0].mxu0
  %v180 = vadd.f32 %v87, %v179
  %v181 = vpop.f32.mrb[0].mxu0
  %182 = vmatprep.mubr.f32.mxu0 0.0
  %183 = vmatmul.mubr.f32.gmra.mrb[0].mxu0 %v93
  %v184 = vpop.f32.mrb[0].mxu0
  %v185 = vadd.f32 %v87, %v184
  %v186 = vpop.f32.mrb[0].mxu0
  %187 = vmatprep.mubr.f32.mxu0 0.0
  %188 = vmatmul.mubr.f32.gmra.mrb[0].mxu0 %v96
  %v189 = vpop.f32.mrb[0].mxu0
  %v190 = vadd.f32 %v87, %v189
  %v191 = vpop.f32.mrb[0].mxu0
  %192 = vmatprep.mubr.f32.mxu0 0.0
  %193 = vmatmul.mubr.f32.gmra.mrb[0].mxu0 %v99
  %v194 = vpop.f32.mrb[0].mxu0
  %v195 = vadd.f32 %v87, %v194
  %v196 = vpop.f32.mrb[0].mxu0
  %197 = vmatprep.mubr.f32.mxu0 0.0
  %198 = vmatmul.mubr.f32.gmra.mrb[0].mxu0 %v102
  %v199 = vpop.f32.mrb[0].mxu0
  %v200 = vadd.f32 %v87, %v199
  %v201 = vpop.f32.mrb[0].mxu0
  %202 = vmatprep.mubr.f32.mxu0 0.0
  %203 = vmatmul.mubr.f32.gmra.mrb[0].mxu0 %v105
  %v204 = vpop.f32.mrb[0].mxu0
  %v205 = vadd.f32 %v87, %v204
  %v206 = vpop.f32.mrb[0].mxu0
  %207 = vmatprep.mubr.f32.mxu0 0.0
  %208 = vmatmul.mubr.f32.gmra.mrb[0].mxu0 %v108
  %v209 = vpop.f32.mrb[0].mxu0
  %v210 = vadd.f32 %v87, %v209
  %v211 = vpop.f32.mrb[0].mxu0
  %212 = vmatprep.mubr.f32.mxu0 0.0
  %213 = vmatmul.mubr.f32.gmra.mrb[0].mxu0 %v111
  %v214 = vpop.f32.mrb[0].mxu0
  %v215 = vadd.f32 %v87, %v214
  %v216 = vpop.f32.mrb[0].mxu0
  %217 = vdwg.mxu0
  %v218 = vtanh.pop %v180
  %v219 = vtanh.pop %v185
  %v220 = vtanh.pop %v190
  %v221 = vtanh.pop %v195
  %v222 = vtanh.pop %v200
  %v223 = vtanh.pop %v205
  %v224 = vtanh.pop %v210
  %v225 = vtanh.pop %v215
  %v226 = vld [vmem:[%s4] sm:$0xff]
  %v227 = vld [vmem:[%s4 + $0x8] sm:$0xff]
  %vm228 = vcmask 523264
  %v230 = vsel %vm228, %v226, 0
  %v233 = vsel %vm228, %v227, 0
  %235 = vmatprep.subr.mxu0 0.0
  %236 = vmatpush1.msra.mxu0 %v218
  %237 = vmatprep.subr.mxu0 0.0
  %238 = vmatpush1.msra.mxu0 %v219
  %239 = vmatprep.subr.mxu0 0.0
  %240 = vmatpush1.msra.mxu0 %v220
  %241 = vmatprep.subr.mxu0 0.0
  %242 = vmatpush1.msra.mxu0 %v221
  %243 = vmatprep.subr.mxu0 0.0
  %244 = vmatpush1.msra.mxu0 %v222
  %245 = vmatprep.subr.mxu0 0.0
  %246 = vmatpush1.msra.mxu0 %v223
  %247 = vmatprep.subr.mxu0 0.0
  %248 = vmatpush1.msra.mxu0 %v224
  %249 = vmatprep.subr.mxu0 0.0
  %250 = vmatpush1.msra.mxu0 %v225
  %251 = vmatprep.subr.mxu0 0.0
  %252 = vmatpush1.msra.mxu0 0.0
  %253 = vmatprep.subr.mxu0 0.0
  %254 = vmatpush1.msra.mxu0 0.0
  %255 = vmatprep.subr.mxu0 0.0
  %256 = vmatpush1.msra.mxu0 0.0
  %257 = vmatprep.subr.mxu0 0.0
  %258 = vmatpush1.msra.mxu0 0.0
  %259 = vmatprep.subr.mxu0 0.0
  %260 = vmatpush1.msra.mxu0 0.0
  %261 = vmatprep.subr.mxu0 0.0
  %262 = vmatpush1.msra.mxu0 0.0
  %263 = vmatprep.subr.mxu0 0.0
  %264 = vmatpush1.msra.mxu0 0.0
  %265 = vmatprep.subr.mxu0 0.0
  %266 = vmatpush1.msra.mxu0 0.0
  %267 = vmatprep.subr.mxu0 0.0
  %268 = vmatpush1.msra.mxu0 0.0
  %269 = vmatprep.subr.mxu0 0.0
  %270 = vmatpush1.msra.mxu0 0.0
  %271 = vmatprep.subr.mxu0 0.0
  %272 = vmatpush1.msra.mxu0 0.0
  %273 = vmatprep.subr.mxu0 0.0
  %274 = vmatpush1.msra.mxu0 0.0
  %275 = vmatprep.subr.mxu0 0.0
  %276 = vmatpush1.msra.mxu0 0.0
  %277 = vmatprep.subr.mxu0 0.0
  %278 = vmatpush1.msra.mxu0 0.0
  %279 = vmatprep.subr.mxu0 0.0
  %280 = vmatpush1.msra.mxu0 0.0
  %281 = vmatprep.subr.mxu0 0.0
  %282 = vmatpush1.msra.mxu0 0.0
  %283 = vmatprep.subr.mxu0 0.0
  %284 = vmatpush1.msra.mxu0 0.0
  %285 = vmatprep.subr.mxu0 0.0
  %286 = vmatpush1.msra.mxu0 0.0
  %287 = vmatprep.subr.mxu0 0.0
  %288 = vmatpush1.msra.mxu0 0.0
  %289 = vmatprep.subr.mxu0 0.0
  %290 = vmatpush1.msra.mxu0 0.0
  %291 = vmatprep.subr.mxu0 0.0
  %292 = vmatpush1.msra.mxu0 0.0
  %293 = vmatprep.subr.mxu0 0.0
  %294 = vmatpush1.msra.mxu0 0.0
  %295 = vmatprep.subr.mxu0 0.0
  %296 = vmatpush1.msra.mxu0 0.0
  %297 = vmatprep.subr.mxu0 0.0
  %298 = vmatpush1.msra.mxu0 0.0
  %299 = vmatprep.mubr.f32.mxu0 0.0
  %300 = vmatmul.mubr.f32.gmra.mrb[0].mxu0 %v230
  %v301 = vpop.f32.mrb[0].mxu0
  %v302 = vadd.f32 0.0, %v301
  %v303 = vpop.f32.mrb[0].mxu0
  %304 = vmatprep.mubr.f32.mxu0 0.0
  %305 = vmatmul.mubr.f32.gmra.mrb[0].mxu0 %v233
  %v306 = vpop.f32.mrb[0].mxu0
  %v307 = vadd.f32 0.0, %v306
  %v308 = vpop.f32.mrb[0].mxu0
  %309 = vdwg.mxu0
  %v310 = vld [vmem:[%s5] sm:$0xff]
  %v311 = vld [vmem:[%s5 + $0x8] sm:$0xff]
  %v312 = vld [vmem:[%s5 + $0x10] sm:$0xff]
  %v313 = vld [vmem:[%s5 + $0x18] sm:$0xff]
  %vm314 = vcmask 261120
  %v316 = vsel %vm314, %v302, 0
  %v319 = vsel %vm314, %v307, 0
  %321 = vmatprep.subr.mxu0 0.0
  %322 = vmatpush1.msra.mxu0 %v310
  %323 = vmatprep.subr.mxu0 0.0
  %324 = vmatpush1.msra.mxu0 %v311
  %325 = vmatprep.subr.mxu0 0.0
  %326 = vmatpush1.msra.mxu0 %v312
  %327 = vmatprep.subr.mxu0 0.0
  %328 = vmatpush1.msra.mxu0 %v313
  %329 = vmatprep.subr.mxu0 0.0
  %330 = vmatpush1.msra.mxu0 0.0
  %331 = vmatprep.subr.mxu0 0.0
  %332 = vmatpush1.msra.mxu0 0.0
  %333 = vmatprep.subr.mxu0 0.0
  %334 = vmatpush1.msra.mxu0 0.0
  %335 = vmatprep.subr.mxu0 0.0
  %336 = vmatpush1.msra.mxu0 0.0
  %337 = vmatprep.subr.mxu0 0.0
  %338 = vmatpush1.msra.mxu0 0.0
  %339 = vmatprep.subr.mxu0 0.0
  %340 = vmatpush1.msra.mxu0 0.0
  %341 = vmatprep.subr.mxu0 0.0
  %342 = vmatpush1.msra.mxu0 0.0
  %343 = vmatprep.subr.mxu0 0.0
  %344 = vmatpush1.msra.mxu0 0.0
  %345 = vmatprep.subr.mxu0 0.0
  %346 = vmatpush1.msra.mxu0 0.0
  %347 = vmatprep.subr.mxu0 0.0
  %348 = vmatpush1.msra.mxu0 0.0
  %349 = vmatprep.subr.mxu0 0.0
  %350 = vmatpush1.msra.mxu0 0.0
  %351 = vmatprep.subr.mxu0 0.0
  %352 = vmatpush1.msra.mxu0 0.0
  %353 = vmatprep.subr.mxu0 0.0
  %354 = vmatpush1.msra.mxu0 0.0
  %355 = vmatprep.subr.mxu0 0.0
  %356 = vmatpush1.msra.mxu0 0.0
  %357 = vmatprep.subr.mxu0 0.0
  %358 = vmatpush1.msra.mxu0 0.0
  %359 = vmatprep.subr.mxu0 0.0
  %360 = vmatpush1.msra.mxu0 0.0
  %361 = vmatprep.subr.mxu0 0.0
  %362 = vmatpush1.msra.mxu0 0.0
  %363 = vmatprep.subr.mxu0 0.0
  %364 = vmatpush1.msra.mxu0 0.0
  %365 = vmatprep.subr.mxu0 0.0
  %366 = vmatpush1.msra.mxu0 0.0
  %367 = vmatprep.subr.mxu0 0.0
  %368 = vmatpush1.msra.mxu0 0.0
  %369 = vmatprep.subr.mxu0 0.0
  %370 = vmatpush1.msra.mxu0 0.0
  %371 = vmatprep.subr.mxu0 0.0
  %372 = vmatpush1.msra.mxu0 0.0
  %373 = vmatprep.subr.mxu0 0.0
  %374 = vmatpush1.msra.mxu0 0.0
  %375 = vmatprep.subr.mxu0 0.0
  %376 = vmatpush1.msra.mxu0 0.0
  %377 = vmatprep.subr.mxu0 0.0
  %378 = vmatpush1.msra.mxu0 0.0
  %379 = vmatprep.subr.mxu0 0.0
  %380 = vmatpush1.msra.mxu0 0.0
  %381 = vmatprep.subr.mxu0 0.0
  %382 = vmatpush1.msra.mxu0 0.0
  %383 = vmatprep.subr.mxu0 0.0
  %384 = vmatpush1.msra.mxu0 0.0
  %385 = vmatprep.mubr.f32.mxu0 0.0
  %386 = vmatmul.mubr.f32.gmra.mrb[0].mxu0 %v316
  %v387 = vpop.f32.mrb[0].mxu0
  %v388 = vadd.f32 0.0, %v387
  %v389 = vpop.f32.mrb[0].mxu0
  %390 = vmatprep.mubr.f32.mxu0 0.0
  %391 = vmatmul.mubr.f32.gmra.mrb[0].mxu0 %v319
  %v392 = vpop.f32.mrb[0].mxu0
  %v393 = vadd.f32 0.0, %v392
  %v394 = vpop.f32.mrb[0].mxu0
  %395 = vdwg.mxu0
  %v396 = vld [vmem:[%s7] sm:$0x1]
  %v397 = vld [vmem:[%s6] sm:$0xff]
  %v398 = vld [vmem:[%s6 + $0x8] sm:$0xff]
  %v399 = vld [vmem:[%s6 + $0x10] sm:$0xff]
  %v400 = vld [vmem:[%s6 + $0x18] sm:$0xff]
  %v401 = vld [vmem:[%s8] sm:$0xff]
  %v402 = vld [vmem:[%s8 + $0x8] sm:$0xff]
  %v403 = vld [vmem:[%s8 + $0x10] sm:$0xff]
  %v404 = vld [vmem:[%s8 + $0x18] sm:$0xff]
  %v405 = vld [vmem:[%s8 + $0x20] sm:$0xff]
  %v406 = vld [vmem:[%s8 + $0x28] sm:$0xff]
  %v407 = vld [vmem:[%s9] sm:$0x1]
  %v408 = vld [vmem:[%s10] sm:$0xff]
  %v409 = vld [vmem:[%s10 + $0x8] sm:$0xff]
  %v410 = vld [vmem:[%s10 + $0x10] sm:$0xff]
  %v411 = vld [vmem:[%s10 + $0x18] sm:$0xff]
  %v412 = vld [vmem:[%s11] sm:$0x1]
  %v414 = vsel %vm314, 0.0, 0
  %416 = vmatprep.subr.mxu0 0.0
  %417 = vmatpush1.msra.mxu0 %v397
  %418 = vmatprep.subr.mxu0 0.0
  %419 = vmatpush1.msra.mxu0 %v398
  %420 = vmatprep.subr.mxu0 0.0
  %421 = vmatpush1.msra.mxu0 %v399
  %422 = vmatprep.subr.mxu0 0.0
  %423 = vmatpush1.msra.mxu0 %v400
  %424 = vmatprep.subr.mxu0 0.0
  %425 = vmatpush1.msra.mxu0 0.0
  %426 = vmatprep.subr.mxu0 0.0
  %427 = vmatpush1.msra.mxu0 0.0
  %428 = vmatprep.subr.mxu0 0.0
  %429 = vmatpush1.msra.mxu0 0.0
  %430 = vmatprep.subr.mxu0 0.0
  %431 = vmatpush1.msra.mxu0 0.0
  %432 = vmatprep.subr.mxu0 0.0
  %433 = vmatpush1.msra.mxu0 0.0
  %434 = vmatprep.subr.mxu0 0.0
  %435 = vmatpush1.msra.mxu0 0.0
  %436 = vmatprep.subr.mxu0 0.0
  %437 = vmatpush1.msra.mxu0 0.0
  %438 = vmatprep.subr.mxu0 0.0
  %439 = vmatpush1.msra.mxu0 0.0
  %440 = vmatprep.subr.mxu0 0.0
  %441 = vmatpush1.msra.mxu0 0.0
  %442 = vmatprep.subr.mxu0 0.0
  %443 = vmatpush1.msra.mxu0 0.0
  %444 = vmatprep.subr.mxu0 0.0
  %445 = vmatpush1.msra.mxu0 0.0
  %446 = vmatprep.subr.mxu0 0.0
  %447 = vmatpush1.msra.mxu0 0.0
  %448 = vmatprep.subr.mxu0 0.0
  %449 = vmatpush1.msra.mxu0 0.0
  %450 = vmatprep.subr.mxu0 0.0
  %451 = vmatpush1.msra.mxu0 0.0
  %452 = vmatprep.subr.mxu0 0.0
  %453 = vmatpush1.msra.mxu0 0.0
  %454 = vmatprep.subr.mxu0 0.0
  %455 = vmatpush1.msra.mxu0 0.0
  %456 = vmatprep.subr.mxu0 0.0
  %457 = vmatpush1.msra.mxu0 0.0
  %458 = vmatprep.subr.mxu0 0.0
  %459 = vmatpush1.msra.mxu0 0.0
  %460 = vmatprep.subr.mxu0 0.0
  %461 = vmatpush1.msra.mxu0 0.0
  %462 = vmatprep.subr.mxu0 0.0
  %463 = vmatpush1.msra.mxu0 0.0
  %464 = vmatprep.subr.mxu0 0.0
  %465 = vmatpush1.msra.mxu0 0.0
  %466 = vmatprep.subr.mxu0 0.0
  %467 = vmatpush1.msra.mxu0 0.0
  %468 = vmatprep.subr.mxu0 0.0
  %469 = vmatpush1.msra.mxu0 0.0
  %470 = vmatprep.subr.mxu0 0.0
  %471 = vmatpush1.msra.mxu0 0.0
  %472 = vmatprep.subr.mxu0 0.0
  %473 = vmatpush1.msra.mxu0 0.0
  %474 = vmatprep.subr.mxu0 0.0
  %475 = vmatpush1.msra.mxu0 0.0
  %476 = vmatprep.subr.mxu0 0.0
  %477 = vmatpush1.msra.mxu0 0.0
  %478 = vmatprep.subr.mxu0 0.0
  %479 = vmatpush1.msra.mxu0 0.0
  %480 = vmatprep.mubr.f32.mxu0 0.0
  %481 = vmatmul.mubr.f32.gmra.mrb[0].mxu0 %v414
  %v482 = vpop.f32.mrb[0].mxu0
  %v483 = vadd.f32 0.0, %v482
  %v484 = vpop.f32.mrb[0].mxu0
  %485 = vdwg.mxu0
  %v488 = vunpack.c.l.s4 1966171168
  %v489 = vunpack.c.0.s8 %v488
  %v490 = vlaneseq
  %v491 = vshrl.u32 %v490, 7
  %v492 = vsub.s32 %v489, %v491
  %v493 = vrot.slane %v483, %v492
  %v494 = vcombine.high %v493, %v493
  %v496 = vunpack.c.l.s4 1966171168
  %v497 = vunpack.c.0.s8 %v496
  %v498 = vlaneseq
  %v499 = vshrl.u32 %v498, 7
  %v500 = vsub.s32 %v497, %v499
  %v501 = vrot.slane %v493, %v500
  %v503 = vunpack.c.l.s4 1966171168
  %v504 = vunpack.c.0.s8 %v503
  %v505 = vlaneseq
  %v506 = vshrl.u32 %v505, 7
  %v507 = vsub.s32 %v504, %v506
  %v508 = vrot.slane %v494, %v507
  %v509 = vlaneseq
  %v510 = vshrl.u32 %v509, 7
  %v511 = vsub.s32 0, %v510
  %v512 = vrot.slane %v501, %v511
  %v513 = vlaneseq
  %v514 = vshrl.u32 %v513, 7
  %v515 = vsub.s32 0, %v514
  %v516 = vrot.slane %v508, %v515
  %v519 = vadd.f32 %v388, %v512
  %v520 = vadd.f32 %v393, %v516
  %v521 = vtanh.pop %v519
  %v522 = vtanh.pop %v520
  %v524 = vlaneseq
  %v525 = vshrl.u32 %v524, 7
  %v526 = vsub.s32 0, %v525
  %v527 = vrot.slane %v396, %v526
  %v529 = vmul.f32 %v521, %v527
  %v530 = vmul.f32 %v522, %v527
  %v531 = vsel %vm314, %v529, 0.0
  %532 = vadd.xlane.f32.xlu0 %v531
  %v533 = vpop.xlane.xlu0 %532
  %v534 = vsel %vm314, %v530, 0.0
  %535 = vadd.xlane.f32.xlu0 %v534
  %v536 = vpop.xlane.xlu0 %535
  %v539 = vlaneseq
  %v540 = vand.u32 %v539, 127
  %v541 = vlaneseq
  %v542 = vshrl.u32 %v541, 7
  %v543 = vsub.s32 %v540, %v542
  %v544 = vrot.slane %v533, %v543
  %v545 = vlaneseq
  %v546 = vshrl.u32 %v545, 7
  %v547 = vsub.s32 %v540, %v546
  %v548 = vrot.slane %v536, %v547
  %vm549 = vcmask 1041409
  %v550 = vsel %vm549, %v548, %v544
  %vm552 = vcmask 58368
  %v553 = vsel %vm552, %v550, -inf
  %554 = vmax.xlane.f32.xlu0 %v553
  %v555 = vpop.xlane.xlu0 %554
  %v557 = vlaneseq
  %v558 = vshrl.u32 %v557, 7
  %v559 = vsub.s32 0, %v558
  %v560 = vrot.slane %v555, %v559
  %v561 = vlaneseq
  %v562 = vshrl.u32 %v561, 7
  %v563 = vsub.s32 1, %v562
  %v564 = vrot.slane %v555, %v563
  %v567 = vsub.f32 %v533, %v560
  %v568 = vsub.f32 %v536, %v564
  %v569 = vmul.f32 %v567, 1.442695
  %v570 = vpow.pop %v569
  %v571 = vmul.f32 %v568, 1.442695
  %v572 = vpow.pop %v571
  %575 = vset.pattern.permute.xlu0 0
  %576 = vperm.xlu0 %575, %v570
  %v577 = vpop.permute.xlu0 %576
  %578 = vset.pattern.permute.xlu0 0
  %579 = vperm.xlu0 %578, %v572
  %v580 = vpop.permute.xlu0 %579
  %v581 = vlaneseq
  %v582 = vshrl.u32 %v581, 7
  %v583 = vsub.s32 %v540, %v582
  %v584 = vrot.slane %v577, %v583
  %v585 = vlaneseq
  %v586 = vshrl.u32 %v585, 7
  %v587 = vsub.s32 %v540, %v586
  %v588 = vrot.slane %v580, %v587
  %v589 = vsel %vm549, %v588, %v584
  %v591 = vsel %vm552, %v589, 0.0
  %592 = vadd.xlane.f32.xlu0 %v591
  %v593 = vpop.xlane.xlu0 %592
  %v594 = vrcp.pop %v593
  %v596 = vlaneseq
  %v597 = vshrl.u32 %v596, 7
  %v598 = vsub.s32 0, %v597
  %v599 = vrot.slane %v594, %v598
  %v600 = vlaneseq
  %v601 = vshrl.u32 %v600, 7
  %v602 = vsub.s32 1, %v601
  %v603 = vrot.slane %v594, %v602
  %v606 = vmul.f32 %v570, %v599
  %v607 = vmul.f32 %v572, %v603
  %609 = vset.pattern.permute.xlu0 0
  %610 = vperm.xlu0 %609, %v606
  %v611 = vpop.permute.xlu0 %610
  %614 = vset.pattern.permute.xlu0 0
  %615 = vperm.xlu0 %614, %v607
  %v616 = vpop.permute.xlu0 %615
  %v618 = vmul.f32 %v611, %v302
  %v619 = vmul.f32 %v616, %v307
  %v620 = vsel %vm314, %v618, 0.0
  %v621 = vrot.slane %v620, 4
  %v622 = vadd.f32 %v620, %v621
  %v623 = vrot.slane %v622, 2
  %v624 = vadd.f32 %v622, %v623
  %v625 = vrot.slane %v624, 1
  %v626 = vadd.f32 %v624, %v625
  %v627 = vsel %vm314, %v619, 0.0
  %v628 = vrot.slane %v627, 4
  %v629 = vadd.f32 %v627, %v628
  %v630 = vrot.slane %v629, 2
  %v631 = vadd.f32 %v629, %v630
  %v632 = vrot.slane %v631, 1
  %v633 = vadd.f32 %v631, %v632
  %v634 = vld [vmem:[%s1] sm:$0x3]
  %v637 = vsel %vm549, %v633, %v626
  %640 = vrot.lane.b32.xlu0 %v634, 32
  %v641 = vpop.permute.xlu0 %640
  %v643 = vsel %vm314, %v637, %v641
  %v645 = vlaneseq
  %v646 = vshrl.u32 %v645, 7
  %v647 = vsub.s32 0, %v646
  %v648 = vrot.slane %v407, %v647
  %v651 = vsel %vm67, %v643, 0
  %653 = vmatprep.subr.mxu0 0.0
  %654 = vmatpush1.msra.mxu0 %v401
  %655 = vmatprep.subr.mxu0 0.0
  %656 = vmatpush1.msra.mxu0 %v402
  %657 = vmatprep.subr.mxu0 0.0
  %658 = vmatpush1.msra.mxu0 %v403
  %659 = vmatprep.subr.mxu0 0.0
  %660 = vmatpush1.msra.mxu0 %v404
  %661 = vmatprep.subr.mxu0 0.0
  %662 = vmatpush1.msra.mxu0 %v405
  %663 = vmatprep.subr.mxu0 0.0
  %664 = vmatpush1.msra.mxu0 %v406
  %665 = vmatprep.subr.mxu0 0.0
  %666 = vmatpush1.msra.mxu0 0.0
  %667 = vmatprep.subr.mxu0 0.0
  %668 = vmatpush1.msra.mxu0 0.0
  %669 = vmatprep.subr.mxu0 0.0
  %670 = vmatpush1.msra.mxu0 0.0
  %671 = vmatprep.subr.mxu0 0.0
  %672 = vmatpush1.msra.mxu0 0.0
  %673 = vmatprep.subr.mxu0 0.0
  %674 = vmatpush1.msra.mxu0 0.0
  %675 = vmatprep.subr.mxu0 0.0
  %676 = vmatpush1.msra.mxu0 0.0
  %677 = vmatprep.subr.mxu0 0.0
  %678 = vmatpush1.msra.mxu0 0.0
  %679 = vmatprep.subr.mxu0 0.0
  %680 = vmatpush1.msra.mxu0 0.0
  %681 = vmatprep.subr.mxu0 0.0
  %682 = vmatpush1.msra.mxu0 0.0
  %683 = vmatprep.subr.mxu0 0.0
  %684 = vmatpush1.msra.mxu0 0.0
  %685 = vmatprep.subr.mxu0 0.0
  %686 = vmatpush1.msra.mxu0 0.0
  %687 = vmatprep.subr.mxu0 0.0
  %688 = vmatpush1.msra.mxu0 0.0
  %689 = vmatprep.subr.mxu0 0.0
  %690 = vmatpush1.msra.mxu0 0.0
  %691 = vmatprep.subr.mxu0 0.0
  %692 = vmatpush1.msra.mxu0 0.0
  %693 = vmatprep.subr.mxu0 0.0
  %694 = vmatpush1.msra.mxu0 0.0
  %695 = vmatprep.subr.mxu0 0.0
  %696 = vmatpush1.msra.mxu0 0.0
  %697 = vmatprep.subr.mxu0 0.0
  %698 = vmatpush1.msra.mxu0 0.0
  %699 = vmatprep.subr.mxu0 0.0
  %700 = vmatpush1.msra.mxu0 0.0
  %701 = vmatprep.subr.mxu0 0.0
  %702 = vmatpush1.msra.mxu0 0.0
  %703 = vmatprep.subr.mxu0 0.0
  %704 = vmatpush1.msra.mxu0 0.0
  %705 = vmatprep.subr.mxu0 0.0
  %706 = vmatpush1.msra.mxu0 0.0
  %707 = vmatprep.subr.mxu0 0.0
  %708 = vmatpush1.msra.mxu0 0.0
  %709 = vmatprep.subr.mxu0 0.0
  %710 = vmatpush1.msra.mxu0 0.0
  %711 = vmatprep.subr.mxu0 0.0
  %712 = vmatpush1.msra.mxu0 0.0
  %713 = vmatprep.subr.mxu0 0.0
  %714 = vmatpush1.msra.mxu0 0.0
  %715 = vmatprep.subr.mxu0 0.0
  %716 = vmatpush1.msra.mxu0 0.0
  %717 = vmatprep.mubr.f32.mxu0 0.0
  %718 = vmatmul.mubr.f32.gmra.mrb[0].mxu0 %v651
  %v719 = vpop.f32.mrb[0].mxu0
  %v720 = vadd.f32 %v648, %v719
  %v721 = vpop.f32.mrb[0].mxu0
  %722 = vdwg.mxu0
  %v723 = vtanh.pop %v720
  %v725 = vlaneseq
  %v726 = vshrl.u32 %v725, 7
  %v727 = vsub.s32 0, %v726
  %v728 = vrot.slane %v412, %v727
  %v731 = vsel %vm314, %v723, 0
  %733 = vmatprep.subr.mxu0 0.0
  %734 = vmatpush1.msra.mxu0 %v408
  %735 = vmatprep.subr.mxu0 0.0
  %736 = vmatpush1.msra.mxu0 %v409
  %737 = vmatprep.subr.mxu0 0.0
  %738 = vmatpush1.msra.mxu0 %v410
  %739 = vmatprep.subr.mxu0 0.0
  %740 = vmatpush1.msra.mxu0 %v411
  %741 = vmatprep.subr.mxu0 0.0
  %742 = vmatpush1.msra.mxu0 0.0
  %743 = vmatprep.subr.mxu0 0.0
  %744 = vmatpush1.msra.mxu0 0.0
  %745 = vmatprep.subr.mxu0 0.0
  %746 = vmatpush1.msra.mxu0 0.0
  %747 = vmatprep.subr.mxu0 0.0
  %748 = vmatpush1.msra.mxu0 0.0
  %749 = vmatprep.subr.mxu0 0.0
  %750 = vmatpush1.msra.mxu0 0.0
  %751 = vmatprep.subr.mxu0 0.0
  %752 = vmatpush1.msra.mxu0 0.0
  %753 = vmatprep.subr.mxu0 0.0
  %754 = vmatpush1.msra.mxu0 0.0
  %755 = vmatprep.subr.mxu0 0.0
  %756 = vmatpush1.msra.mxu0 0.0
  %757 = vmatprep.subr.mxu0 0.0
  %758 = vmatpush1.msra.mxu0 0.0
  %759 = vmatprep.subr.mxu0 0.0
  %760 = vmatpush1.msra.mxu0 0.0
  %761 = vmatprep.subr.mxu0 0.0
  %762 = vmatpush1.msra.mxu0 0.0
  %763 = vmatprep.subr.mxu0 0.0
  %764 = vmatpush1.msra.mxu0 0.0
  %765 = vmatprep.subr.mxu0 0.0
  %766 = vmatpush1.msra.mxu0 0.0
  %767 = vmatprep.subr.mxu0 0.0
  %768 = vmatpush1.msra.mxu0 0.0
  %769 = vmatprep.subr.mxu0 0.0
  %770 = vmatpush1.msra.mxu0 0.0
  %771 = vmatprep.subr.mxu0 0.0
  %772 = vmatpush1.msra.mxu0 0.0
  %773 = vmatprep.subr.mxu0 0.0
  %774 = vmatpush1.msra.mxu0 0.0
  %775 = vmatprep.subr.mxu0 0.0
  %776 = vmatpush1.msra.mxu0 0.0
  %777 = vmatprep.subr.mxu0 0.0
  %778 = vmatpush1.msra.mxu0 0.0
  %779 = vmatprep.subr.mxu0 0.0
  %780 = vmatpush1.msra.mxu0 0.0
  %781 = vmatprep.subr.mxu0 0.0
  %782 = vmatpush1.msra.mxu0 0.0
  %783 = vmatprep.subr.mxu0 0.0
  %784 = vmatpush1.msra.mxu0 0.0
  %785 = vmatprep.subr.mxu0 0.0
  %786 = vmatpush1.msra.mxu0 0.0
  %787 = vmatprep.subr.mxu0 0.0
  %788 = vmatpush1.msra.mxu0 0.0
  %789 = vmatprep.subr.mxu0 0.0
  %790 = vmatpush1.msra.mxu0 0.0
  %791 = vmatprep.subr.mxu0 0.0
  %792 = vmatpush1.msra.mxu0 0.0
  %793 = vmatprep.subr.mxu0 0.0
  %794 = vmatpush1.msra.mxu0 0.0
  %795 = vmatprep.subr.mxu0 0.0
  %796 = vmatpush1.msra.mxu0 0.0
  %797 = vmatprep.mubr.f32.mxu0 0.0
  %798 = vmatmul.mubr.f32.gmra.mrb[0].mxu0 %v731
  %v799 = vpop.f32.mrb[0].mxu0
  %v800 = vadd.f32 %v728, %v799
  %v801 = vpop.f32.mrb[0].mxu0
  %802 = vdwg.mxu0
  %803 = vmatprep.subr.mxu0 0.0
  %804 = vmatpush1.msra.mxu0 %v397
  %805 = vmatprep.subr.mxu0 0.0
  %806 = vmatpush1.msra.mxu0 %v398
  %807 = vmatprep.subr.mxu0 0.0
  %808 = vmatpush1.msra.mxu0 %v399
  %809 = vmatprep.subr.mxu0 0.0
  %810 = vmatpush1.msra.mxu0 %v400
  %811 = vmatprep.subr.mxu0 0.0
  %812 = vmatpush1.msra.mxu0 0.0
  %813 = vmatprep.subr.mxu0 0.0
  %814 = vmatpush1.msra.mxu0 0.0
  %815 = vmatprep.subr.mxu0 0.0
  %816 = vmatpush1.msra.mxu0 0.0
  %817 = vmatprep.subr.mxu0 0.0
  %818 = vmatpush1.msra.mxu0 0.0
  %819 = vmatprep.subr.mxu0 0.0
  %820 = vmatpush1.msra.mxu0 0.0
  %821 = vmatprep.subr.mxu0 0.0
  %822 = vmatpush1.msra.mxu0 0.0
  %823 = vmatprep.subr.mxu0 0.0
  %824 = vmatpush1.msra.mxu0 0.0
  %825 = vmatprep.subr.mxu0 0.0
  %826 = vmatpush1.msra.mxu0 0.0
  %827 = vmatprep.subr.mxu0 0.0
  %828 = vmatpush1.msra.mxu0 0.0
  %829 = vmatprep.subr.mxu0 0.0
  %830 = vmatpush1.msra.mxu0 0.0
  %831 = vmatprep.subr.mxu0 0.0
  %832 = vmatpush1.msra.mxu0 0.0
  %833 = vmatprep.subr.mxu0 0.0
  %834 = vmatpush1.msra.mxu0 0.0
  %835 = vmatprep.subr.mxu0 0.0
  %836 = vmatpush1.msra.mxu0 0.0
  %837 = vmatprep.subr.mxu0 0.0
  %838 = vmatpush1.msra.mxu0 0.0
  %839 = vmatprep.subr.mxu0 0.0
  %840 = vmatpush1.msra.mxu0 0.0
  %841 = vmatprep.subr.mxu0 0.0
  %842 = vmatpush1.msra.mxu0 0.0
  %843 = vmatprep.subr.mxu0 0.0
  %844 = vmatpush1.msra.mxu0 0.0
  %845 = vmatprep.subr.mxu0 0.0
  %846 = vmatpush1.msra.mxu0 0.0
  %847 = vmatprep.subr.mxu0 0.0
  %848 = vmatpush1.msra.mxu0 0.0
  %849 = vmatprep.subr.mxu0 0.0
  %850 = vmatpush1.msra.mxu0 0.0
  %851 = vmatprep.subr.mxu0 0.0
  %852 = vmatpush1.msra.mxu0 0.0
  %853 = vmatprep.subr.mxu0 0.0
  %854 = vmatpush1.msra.mxu0 0.0
  %855 = vmatprep.subr.mxu0 0.0
  %856 = vmatpush1.msra.mxu0 0.0
  %857 = vmatprep.subr.mxu0 0.0
  %858 = vmatpush1.msra.mxu0 0.0
  %859 = vmatprep.subr.mxu0 0.0
  %860 = vmatpush1.msra.mxu0 0.0
  %861 = vmatprep.subr.mxu0 0.0
  %862 = vmatpush1.msra.mxu0 0.0
  %863 = vmatprep.subr.mxu0 0.0
  %864 = vmatpush1.msra.mxu0 0.0
  %865 = vmatprep.subr.mxu0 0.0
  %866 = vmatpush1.msra.mxu0 0.0
  %867 = vmatprep.mubr.f32.mxu0 0.0
  %868 = vmatmul.mubr.f32.gmra.mrb[0].mxu0 %v731
  %v869 = vpop.f32.mrb[0].mxu0
  %v870 = vadd.f32 0.0, %v869
  %v871 = vpop.f32.mrb[0].mxu0
  %872 = vdwg.mxu0
  %v875 = vunpack.c.l.s4 1966171168
  %v876 = vunpack.c.0.s8 %v875
  %v877 = vlaneseq
  %v878 = vshrl.u32 %v877, 7
  %v879 = vsub.s32 %v876, %v878
  %v880 = vrot.slane %v870, %v879
  %v881 = vcombine.high %v880, %v880
  %v883 = vunpack.c.l.s4 1966171168
  %v884 = vunpack.c.0.s8 %v883
  %v885 = vlaneseq
  %v886 = vshrl.u32 %v885, 7
  %v887 = vsub.s32 %v884, %v886
  %v888 = vrot.slane %v880, %v887
  %v890 = vunpack.c.l.s4 1966171168
  %v891 = vunpack.c.0.s8 %v890
  %v892 = vlaneseq
  %v893 = vshrl.u32 %v892, 7
  %v894 = vsub.s32 %v891, %v893
  %v895 = vrot.slane %v881, %v894
  %v896 = vlaneseq
  %v897 = vshrl.u32 %v896, 7
  %v898 = vsub.s32 0, %v897
  %v899 = vrot.slane %v888, %v898
  %v900 = vlaneseq
  %v901 = vshrl.u32 %v900, 7
  %v902 = vsub.s32 0, %v901
  %v903 = vrot.slane %v895, %v902
  %v906 = vadd.f32 %v388, %v899
  %v907 = vadd.f32 %v393, %v903
  %v908 = vtanh.pop %v906
  %v909 = vtanh.pop %v907
  %v910 = vmul.f32 %v908, %v527
  %v911 = vmul.f32 %v909, %v527
  %v912 = vsel %vm314, %v910, 0.0
  %913 = vadd.xlane.f32.xlu0 %v912
  %v914 = vpop.xlane.xlu0 %913
  %v915 = vsel %vm314, %v911, 0.0
  %916 = vadd.xlane.f32.xlu0 %v915
  %v917 = vpop.xlane.xlu0 %916
  %v920 = vlaneseq
  %v921 = vshrl.u32 %v920, 7
  %v922 = vsub.s32 %v540, %v921
  %v923 = vrot.slane %v914, %v922
  %v924 = vlaneseq
  %v925 = vshrl.u32 %v924, 7
  %v926 = vsub.s32 %v540, %v925
  %v927 = vrot.slane %v917, %v926
  %v928 = vsel %vm549, %v927, %v923
  %v930 = vsel %vm552, %v928, -inf
  %931 = vmax.xlane.f32.xlu0 %v930
  %v932 = vpop.xlane.xlu0 %931
  %v934 = vlaneseq
  %v935 = vshrl.u32 %v934, 7
  %v936 = vsub.s32 0, %v935
  %v937 = vrot.slane %v932, %v936
  %v938 = vlaneseq
  %v939 = vshrl.u32 %v938, 7
  %v940 = vsub.s32 1, %v939
  %v941 = vrot.slane %v932, %v940
  %v944 = vsub.f32 %v914, %v937
  %v945 = vsub.f32 %v917, %v941
  %v946 = vmul.f32 %v944, 1.442695
  %v947 = vpow.pop %v946
  %v948 = vmul.f32 %v945, 1.442695
  %v949 = vpow.pop %v948
  %952 = vset.pattern.permute.xlu0 0
  %953 = vperm.xlu0 %952, %v947
  %v954 = vpop.permute.xlu0 %953
  %955 = vset.pattern.permute.xlu0 0
  %956 = vperm.xlu0 %955, %v949
  %v957 = vpop.permute.xlu0 %956
  %v958 = vlaneseq
  %v959 = vshrl.u32 %v958, 7
  %v960 = vsub.s32 %v540, %v959
  %v961 = vrot.slane %v954, %v960
  %v962 = vlaneseq
  %v963 = vshrl.u32 %v962, 7
  %v964 = vsub.s32 %v540, %v963
  %v965 = vrot.slane %v957, %v964
  %v966 = vsel %vm549, %v965, %v961
  %v968 = vsel %vm552, %v966, 0.0
  %969 = vadd.xlane.f32.xlu0 %v968
  %v970 = vpop.xlane.xlu0 %969
  %v971 = vrcp.pop %v970
  %v973 = vlaneseq
  %v974 = vshrl.u32 %v973, 7
  %v975 = vsub.s32 0, %v974
  %v976 = vrot.slane %v971, %v975
  %v977 = vlaneseq
  %v978 = vshrl.u32 %v977, 7
  %v979 = vsub.s32 1, %v978
  %v980 = vrot.slane %v971, %v979
  %v983 = vmul.f32 %v947, %v976
  %v984 = vmul.f32 %v949, %v980
  %986 = vset.pattern.permute.xlu0 0
  %987 = vperm.xlu0 %986, %v983
  %v988 = vpop.permute.xlu0 %987
  %991 = vset.pattern.permute.xlu0 0
  %992 = vperm.xlu0 %991, %v984
  %v993 = vpop.permute.xlu0 %992
  %v995 = vmul.f32 %v988, %v302
  %v996 = vmul.f32 %v993, %v307
  %v997 = vsel %vm314, %v995, 0.0
  %v998 = vrot.slane %v997, 4
  %v999 = vadd.f32 %v997, %v998
  %v1000 = vrot.slane %v999, 2
  %v1001 = vadd.f32 %v999, %v1000
  %v1002 = vrot.slane %v1001, 1
  %v1003 = vadd.f32 %v1001, %v1002
  %v1004 = vsel %vm314, %v996, 0.0
  %v1005 = vrot.slane %v1004, 4
  %v1006 = vadd.f32 %v1004, %v1005
  %v1007 = vrot.slane %v1006, 2
  %v1008 = vadd.f32 %v1006, %v1007
  %v1009 = vrot.slane %v1008, 1
  %v1010 = vadd.f32 %v1008, %v1009
  %s1011 = scalar_lea.vmem %s1, 2
  %v1012 = vld [vmem:[%s1011] sm:$0x3]
  %v1015 = vsel %vm549, %v1010, %v1003
  %1018 = vrot.lane.b32.xlu0 %v1012, 32
  %v1019 = vpop.permute.xlu0 %1018
  %v1021 = vsel %vm314, %v1015, %v1019
  %v1023 = vsel %vm67, %v1021, 0
  %1025 = vmatprep.subr.mxu0 0.0
  %1026 = vmatpush1.msra.mxu0 %v401
  %1027 = vmatprep.subr.mxu0 0.0
  %1028 = vmatpush1.msra.mxu0 %v402
  %1029 = vmatprep.subr.mxu0 0.0
  %1030 = vmatpush1.msra.mxu0 %v403
  %1031 = vmatprep.subr.mxu0 0.0
  %1032 = vmatpush1.msra.mxu0 %v404
  %1033 = vmatprep.subr.mxu0 0.0
  %1034 = vmatpush1.msra.mxu0 %v405
  %1035 = vmatprep.subr.mxu0 0.0
  %1036 = vmatpush1.msra.mxu0 %v406
  %1037 = vmatprep.subr.mxu0 0.0
  %1038 = vmatpush1.msra.mxu0 0.0
  %1039 = vmatprep.subr.mxu0 0.0
  %1040 = vmatpush1.msra.mxu0 0.0
  %1041 = vmatprep.subr.mxu0 0.0
  %1042 = vmatpush1.msra.mxu0 0.0
  %1043 = vmatprep.subr.mxu0 0.0
  %1044 = vmatpush1.msra.mxu0 0.0
  %1045 = vmatprep.subr.mxu0 0.0
  %1046 = vmatpush1.msra.mxu0 0.0
  %1047 = vmatprep.subr.mxu0 0.0
  %1048 = vmatpush1.msra.mxu0 0.0
  %1049 = vmatprep.subr.mxu0 0.0
  %1050 = vmatpush1.msra.mxu0 0.0
  %1051 = vmatprep.subr.mxu0 0.0
  %1052 = vmatpush1.msra.mxu0 0.0
  %1053 = vmatprep.subr.mxu0 0.0
  %1054 = vmatpush1.msra.mxu0 0.0
  %1055 = vmatprep.subr.mxu0 0.0
  %1056 = vmatpush1.msra.mxu0 0.0
  %1057 = vmatprep.subr.mxu0 0.0
  %1058 = vmatpush1.msra.mxu0 0.0
  %1059 = vmatprep.subr.mxu0 0.0
  %1060 = vmatpush1.msra.mxu0 0.0
  %1061 = vmatprep.subr.mxu0 0.0
  %1062 = vmatpush1.msra.mxu0 0.0
  %1063 = vmatprep.subr.mxu0 0.0
  %1064 = vmatpush1.msra.mxu0 0.0
  %1065 = vmatprep.subr.mxu0 0.0
  %1066 = vmatpush1.msra.mxu0 0.0
  %1067 = vmatprep.subr.mxu0 0.0
  %1068 = vmatpush1.msra.mxu0 0.0
  %1069 = vmatprep.subr.mxu0 0.0
  %1070 = vmatpush1.msra.mxu0 0.0
  %1071 = vmatprep.subr.mxu0 0.0
  %1072 = vmatpush1.msra.mxu0 0.0
  %1073 = vmatprep.subr.mxu0 0.0
  %1074 = vmatpush1.msra.mxu0 0.0
  %1075 = vmatprep.subr.mxu0 0.0
  %1076 = vmatpush1.msra.mxu0 0.0
  %1077 = vmatprep.subr.mxu0 0.0
  %1078 = vmatpush1.msra.mxu0 0.0
  %1079 = vmatprep.subr.mxu0 0.0
  %1080 = vmatpush1.msra.mxu0 0.0
  %1081 = vmatprep.subr.mxu0 0.0
  %1082 = vmatpush1.msra.mxu0 0.0
  %1083 = vmatprep.subr.mxu0 0.0
  %1084 = vmatpush1.msra.mxu0 0.0
  %1085 = vmatprep.subr.mxu0 0.0
  %1086 = vmatpush1.msra.mxu0 0.0
  %1087 = vmatprep.subr.mxu0 0.0
  %1088 = vmatpush1.msra.mxu0 0.0
  %1089 = vmatprep.mubr.f32.mxu0 0.0
  %1090 = vmatmul.mubr.f32.gmra.mrb[0].mxu0 %v1023
  %v1091 = vpop.f32.mrb[0].mxu0
  %v1092 = vadd.f32 %v648, %v1091
  %v1093 = vpop.f32.mrb[0].mxu0
  %1094 = vdwg.mxu0
  %v1095 = vtanh.pop %v1092
  %v1097 = vsel %vm314, %v1095, 0
  %1099 = vmatprep.subr.mxu0 0.0
  %1100 = vmatpush1.msra.mxu0 %v408
  %1101 = vmatprep.subr.mxu0 0.0
  %1102 = vmatpush1.msra.mxu0 %v409
  %1103 = vmatprep.subr.mxu0 0.0
  %1104 = vmatpush1.msra.mxu0 %v410
  %1105 = vmatprep.subr.mxu0 0.0
  %1106 = vmatpush1.msra.mxu0 %v411
  %1107 = vmatprep.subr.mxu0 0.0
  %1108 = vmatpush1.msra.mxu0 0.0
  %1109 = vmatprep.subr.mxu0 0.0
  %1110 = vmatpush1.msra.mxu0 0.0
  %1111 = vmatprep.subr.mxu0 0.0
  %1112 = vmatpush1.msra.mxu0 0.0
  %1113 = vmatprep.subr.mxu0 0.0
  %1114 = vmatpush1.msra.mxu0 0.0
  %1115 = vmatprep.subr.mxu0 0.0
  %1116 = vmatpush1.msra.mxu0 0.0
  %1117 = vmatprep.subr.mxu0 0.0
  %1118 = vmatpush1.msra.mxu0 0.0
  %1119 = vmatprep.subr.mxu0 0.0
  %1120 = vmatpush1.msra.mxu0 0.0
  %1121 = vmatprep.subr.mxu0 0.0
  %1122 = vmatpush1.msra.mxu0 0.0
  %1123 = vmatprep.subr.mxu0 0.0
  %1124 = vmatpush1.msra.mxu0 0.0
  %1125 = vmatprep.subr.mxu0 0.0
  %1126 = vmatpush1.msra.mxu0 0.0
  %1127 = vmatprep.subr.mxu0 0.0
  %1128 = vmatpush1.msra.mxu0 0.0
  %1129 = vmatprep.subr.mxu0 0.0
  %1130 = vmatpush1.msra.mxu0 0.0
  %1131 = vmatprep.subr.mxu0 0.0
  %1132 = vmatpush1.msra.mxu0 0.0
  %1133 = vmatprep.subr.mxu0 0.0
  %1134 = vmatpush1.msra.mxu0 0.0
  %1135 = vmatprep.subr.mxu0 0.0
  %1136 = vmatpush1.msra.mxu0 0.0
  %1137 = vmatprep.subr.mxu0 0.0
  %1138 = vmatpush1.msra.mxu0 0.0
  %1139 = vmatprep.subr.mxu0 0.0
  %1140 = vmatpush1.msra.mxu0 0.0
  %1141 = vmatprep.subr.mxu0 0.0
  %1142 = vmatpush1.msra.mxu0 0.0
  %1143 = vmatprep.subr.mxu0 0.0
  %1144 = vmatpush1.msra.mxu0 0.0
  %1145 = vmatprep.subr.mxu0 0.0
  %1146 = vmatpush1.msra.mxu0 0.0
  %1147 = vmatprep.subr.mxu0 0.0
  %1148 = vmatpush1.msra.mxu0 0.0
  %1149 = vmatprep.subr.mxu0 0.0
  %1150 = vmatpush1.msra.mxu0 0.0
  %1151 = vmatprep.subr.mxu0 0.0
  %1152 = vmatpush1.msra.mxu0 0.0
  %1153 = vmatprep.subr.mxu0 0.0
  %1154 = vmatpush1.msra.mxu0 0.0
  %1155 = vmatprep.subr.mxu0 0.0
  %1156 = vmatpush1.msra.mxu0 0.0
  %1157 = vmatprep.subr.mxu0 0.0
  %1158 = vmatpush1.msra.mxu0 0.0
  %1159 = vmatprep.subr.mxu0 0.0
  %1160 = vmatpush1.msra.mxu0 0.0
  %1161 = vmatprep.subr.mxu0 0.0
  %1162 = vmatpush1.msra.mxu0 0.0
  %1163 = vmatprep.mubr.f32.mxu0 0.0
  %1164 = vmatmul.mubr.f32.gmra.mrb[0].mxu0 %v1097
  %v1165 = vpop.f32.mrb[0].mxu0
  %v1166 = vadd.f32 %v728, %v1165
  %v1167 = vpop.f32.mrb[0].mxu0
  %1168 = vdwg.mxu0
  %1169 = vmatprep.subr.mxu0 0.0
  %1170 = vmatpush1.msra.mxu0 %v397
  %1171 = vmatprep.subr.mxu0 0.0
  %1172 = vmatpush1.msra.mxu0 %v398
  %1173 = vmatprep.subr.mxu0 0.0
  %1174 = vmatpush1.msra.mxu0 %v399
  %1175 = vmatprep.subr.mxu0 0.0
  %1176 = vmatpush1.msra.mxu0 %v400
  %1177 = vmatprep.subr.mxu0 0.0
  %1178 = vmatpush1.msra.mxu0 0.0
  %1179 = vmatprep.subr.mxu0 0.0
  %1180 = vmatpush1.msra.mxu0 0.0
  %1181 = vmatprep.subr.mxu0 0.0
  %1182 = vmatpush1.msra.mxu0 0.0
  %1183 = vmatprep.subr.mxu0 0.0
  %1184 = vmatpush1.msra.mxu0 0.0
  %1185 = vmatprep.subr.mxu0 0.0
  %1186 = vmatpush1.msra.mxu0 0.0
  %1187 = vmatprep.subr.mxu0 0.0
  %1188 = vmatpush1.msra.mxu0 0.0
  %1189 = vmatprep.subr.mxu0 0.0
  %1190 = vmatpush1.msra.mxu0 0.0
  %1191 = vmatprep.subr.mxu0 0.0
  %1192 = vmatpush1.msra.mxu0 0.0
  %1193 = vmatprep.subr.mxu0 0.0
  %1194 = vmatpush1.msra.mxu0 0.0
  %1195 = vmatprep.subr.mxu0 0.0
  %1196 = vmatpush1.msra.mxu0 0.0
  %1197 = vmatprep.subr.mxu0 0.0
  %1198 = vmatpush1.msra.mxu0 0.0
  %1199 = vmatprep.subr.mxu0 0.0
  %1200 = vmatpush1.msra.mxu0 0.0
  %1201 = vmatprep.subr.mxu0 0.0
  %1202 = vmatpush1.msra.mxu0 0.0
  %1203 = vmatprep.subr.mxu0 0.0
  %1204 = vmatpush1.msra.mxu0 0.0
  %1205 = vmatprep.subr.mxu0 0.0
  %1206 = vmatpush1.msra.mxu0 0.0
  %1207 = vmatprep.subr.mxu0 0.0
  %1208 = vmatpush1.msra.mxu0 0.0
  %1209 = vmatprep.subr.mxu0 0.0
  %1210 = vmatpush1.msra.mxu0 0.0
  %1211 = vmatprep.subr.mxu0 0.0
  %1212 = vmatpush1.msra.mxu0 0.0
  %1213 = vmatprep.subr.mxu0 0.0
  %1214 = vmatpush1.msra.mxu0 0.0
  %1215 = vmatprep.subr.mxu0 0.0
  %1216 = vmatpush1.msra.mxu0 0.0
  %1217 = vmatprep.subr.mxu0 0.0
  %1218 = vmatpush1.msra.mxu0 0.0
  %1219 = vmatprep.subr.mxu0 0.0
  %1220 = vmatpush1.msra.mxu0 0.0
  %1221 = vmatprep.subr.mxu0 0.0
  %1222 = vmatpush1.msra.mxu0 0.0
  %1223 = vmatprep.subr.mxu0 0.0
  %1224 = vmatpush1.msra.mxu0 0.0
  %1225 = vmatprep.subr.mxu0 0.0
  %1226 = vmatpush1.msra.mxu0 0.0
  %1227 = vmatprep.subr.mxu0 0.0
  %1228 = vmatpush1.msra.mxu0 0.0
  %1229 = vmatprep.subr.mxu0 0.0
  %1230 = vmatpush1.msra.mxu0 0.0
  %1231 = vmatprep.subr.mxu0 0.0
  %1232 = vmatpush1.msra.mxu0 0.0
  %1233 = vmatprep.mubr.f32.mxu0 0.0
  %1234 = vmatmul.mubr.f32.gmra.mrb[0].mxu0 %v1097
  %v1235 = vpop.f32.mrb[0].mxu0
  %v1236 = vadd.f32 0.0, %v1235
  %v1237 = vpop.f32.mrb[0].mxu0
  %1238 = vdwg.mxu0
  %v1241 = vunpack.c.l.s4 1966171168
  %v1242 = vunpack.c.0.s8 %v1241
  %v1243 = vlaneseq
  %v1244 = vshrl.u32 %v1243, 7
  %v1245 = vsub.s32 %v1242, %v1244
  %v1246 = vrot.slane %v1236, %v1245
  %v1247 = vcombine.high %v1246, %v1246
  %v1249 = vunpack.c.l.s4 1966171168
  %v1250 = vunpack.c.0.s8 %v1249
  %v1251 = vlaneseq
  %v1252 = vshrl.u32 %v1251, 7
  %v1253 = vsub.s32 %v1250, %v1252
  %v1254 = vrot.slane %v1246, %v1253
  %v1256 = vunpack.c.l.s4 1966171168
  %v1257 = vunpack.c.0.s8 %v1256
  %v1258 = vlaneseq
  %v1259 = vshrl.u32 %v1258, 7
  %v1260 = vsub.s32 %v1257, %v1259
  %v1261 = vrot.slane %v1247, %v1260
  %v1262 = vlaneseq
  %v1263 = vshrl.u32 %v1262, 7
  %v1264 = vsub.s32 0, %v1263
  %v1265 = vrot.slane %v1254, %v1264
  %v1266 = vlaneseq
  %v1267 = vshrl.u32 %v1266, 7
  %v1268 = vsub.s32 0, %v1267
  %v1269 = vrot.slane %v1261, %v1268
  %v1272 = vadd.f32 %v388, %v1265
  %v1273 = vadd.f32 %v393, %v1269
  %v1274 = vtanh.pop %v1272
  %v1275 = vtanh.pop %v1273
  %v1276 = vmul.f32 %v1274, %v527
  %v1277 = vmul.f32 %v1275, %v527
  %v1278 = vsel %vm314, %v1276, 0.0
  %1279 = vadd.xlane.f32.xlu0 %v1278
  %v1280 = vpop.xlane.xlu0 %1279
  %v1281 = vsel %vm314, %v1277, 0.0
  %1282 = vadd.xlane.f32.xlu0 %v1281
  %v1283 = vpop.xlane.xlu0 %1282
  %v1286 = vlaneseq
  %v1287 = vshrl.u32 %v1286, 7
  %v1288 = vsub.s32 %v540, %v1287
  %v1289 = vrot.slane %v1280, %v1288
  %v1290 = vlaneseq
  %v1291 = vshrl.u32 %v1290, 7
  %v1292 = vsub.s32 %v540, %v1291
  %v1293 = vrot.slane %v1283, %v1292
  %v1294 = vsel %vm549, %v1293, %v1289
  %v1296 = vsel %vm552, %v1294, -inf
  %1297 = vmax.xlane.f32.xlu0 %v1296
  %v1298 = vpop.xlane.xlu0 %1297
  %v1300 = vlaneseq
  %v1301 = vshrl.u32 %v1300, 7
  %v1302 = vsub.s32 0, %v1301
  %v1303 = vrot.slane %v1298, %v1302
  %v1304 = vlaneseq
  %v1305 = vshrl.u32 %v1304, 7
  %v1306 = vsub.s32 1, %v1305
  %v1307 = vrot.slane %v1298, %v1306
  %v1310 = vsub.f32 %v1280, %v1303
  %v1311 = vsub.f32 %v1283, %v1307
  %v1312 = vmul.f32 %v1310, 1.442695
  %v1313 = vpow.pop %v1312
  %v1314 = vmul.f32 %v1311, 1.442695
  %v1315 = vpow.pop %v1314
  %1318 = vset.pattern.permute.xlu0 0
  %1319 = vperm.xlu0 %1318, %v1313
  %v1320 = vpop.permute.xlu0 %1319
  %1321 = vset.pattern.permute.xlu0 0
  %1322 = vperm.xlu0 %1321, %v1315
  %v1323 = vpop.permute.xlu0 %1322
  %v1324 = vlaneseq
  %v1325 = vshrl.u32 %v1324, 7
  %v1326 = vsub.s32 %v540, %v1325
  %v1327 = vrot.slane %v1320, %v1326
  %v1328 = vlaneseq
  %v1329 = vshrl.u32 %v1328, 7
  %v1330 = vsub.s32 %v540, %v1329
  %v1331 = vrot.slane %v1323, %v1330
  %v1332 = vsel %vm549, %v1331, %v1327
  %v1334 = vsel %vm552, %v1332, 0.0
  %1335 = vadd.xlane.f32.xlu0 %v1334
  %v1336 = vpop.xlane.xlu0 %1335
  %v1337 = vrcp.pop %v1336
  %v1339 = vlaneseq
  %v1340 = vshrl.u32 %v1339, 7
  %v1341 = vsub.s32 0, %v1340
  %v1342 = vrot.slane %v1337, %v1341
  %v1343 = vlaneseq
  %v1344 = vshrl.u32 %v1343, 7
  %v1345 = vsub.s32 1, %v1344
  %v1346 = vrot.slane %v1337, %v1345
  %v1349 = vmul.f32 %v1313, %v1342
  %v1350 = vmul.f32 %v1315, %v1346
  %1352 = vset.pattern.permute.xlu0 0
  %1353 = vperm.xlu0 %1352, %v1349
  %v1354 = vpop.permute.xlu0 %1353
  %1357 = vset.pattern.permute.xlu0 0
  %1358 = vperm.xlu0 %1357, %v1350
  %v1359 = vpop.permute.xlu0 %1358
  %v1361 = vmul.f32 %v1354, %v302
  %v1362 = vmul.f32 %v1359, %v307
  %v1363 = vsel %vm314, %v1361, 0.0
  %v1364 = vrot.slane %v1363, 4
  %v1365 = vadd.f32 %v1363, %v1364
  %v1366 = vrot.slane %v1365, 2
  %v1367 = vadd.f32 %v1365, %v1366
  %v1368 = vrot.slane %v1367, 1
  %v1369 = vadd.f32 %v1367, %v1368
  %v1370 = vsel %vm314, %v1362, 0.0
  %v1371 = vrot.slane %v1370, 4
  %v1372 = vadd.f32 %v1370, %v1371
  %v1373 = vrot.slane %v1372, 2
  %v1374 = vadd.f32 %v1372, %v1373
  %v1375 = vrot.slane %v1374, 1
  %v1376 = vadd.f32 %v1374, %v1375
  %s1377 = scalar_lea.vmem %s1, 4
  %v1378 = vld [vmem:[%s1377] sm:$0x3]
  %v1381 = vsel %vm549, %v1376, %v1369
  %1384 = vrot.lane.b32.xlu0 %v1378, 32
  %v1385 = vpop.permute.xlu0 %1384
  %v1387 = vsel %vm314, %v1381, %v1385
  %v1389 = vsel %vm67, %v1387, 0
  %1391 = vmatprep.subr.mxu0 0.0
  %1392 = vmatpush1.msra.mxu0 %v401
  %1393 = vmatprep.subr.mxu0 0.0
  %1394 = vmatpush1.msra.mxu0 %v402
  %1395 = vmatprep.subr.mxu0 0.0
  %1396 = vmatpush1.msra.mxu0 %v403
  %1397 = vmatprep.subr.mxu0 0.0
  %1398 = vmatpush1.msra.mxu0 %v404
  %1399 = vmatprep.subr.mxu0 0.0
  %1400 = vmatpush1.msra.mxu0 %v405
  %1401 = vmatprep.subr.mxu0 0.0
  %1402 = vmatpush1.msra.mxu0 %v406
  %1403 = vmatprep.subr.mxu0 0.0
  %1404 = vmatpush1.msra.mxu0 0.0
  %1405 = vmatprep.subr.mxu0 0.0
  %1406 = vmatpush1.msra.mxu0 0.0
  %1407 = vmatprep.subr.mxu0 0.0
  %1408 = vmatpush1.msra.mxu0 0.0
  %1409 = vmatprep.subr.mxu0 0.0
  %1410 = vmatpush1.msra.mxu0 0.0
  %1411 = vmatprep.subr.mxu0 0.0
  %1412 = vmatpush1.msra.mxu0 0.0
  %1413 = vmatprep.subr.mxu0 0.0
  %1414 = vmatpush1.msra.mxu0 0.0
  %1415 = vmatprep.subr.mxu0 0.0
  %1416 = vmatpush1.msra.mxu0 0.0
  %1417 = vmatprep.subr.mxu0 0.0
  %1418 = vmatpush1.msra.mxu0 0.0
  %1419 = vmatprep.subr.mxu0 0.0
  %1420 = vmatpush1.msra.mxu0 0.0
  %1421 = vmatprep.subr.mxu0 0.0
  %1422 = vmatpush1.msra.mxu0 0.0
  %1423 = vmatprep.subr.mxu0 0.0
  %1424 = vmatpush1.msra.mxu0 0.0
  %1425 = vmatprep.subr.mxu0 0.0
  %1426 = vmatpush1.msra.mxu0 0.0
  %1427 = vmatprep.subr.mxu0 0.0
  %1428 = vmatpush1.msra.mxu0 0.0
  %1429 = vmatprep.subr.mxu0 0.0
  %1430 = vmatpush1.msra.mxu0 0.0
  %1431 = vmatprep.subr.mxu0 0.0
  %1432 = vmatpush1.msra.mxu0 0.0
  %1433 = vmatprep.subr.mxu0 0.0
  %1434 = vmatpush1.msra.mxu0 0.0
  %1435 = vmatprep.subr.mxu0 0.0
  %1436 = vmatpush1.msra.mxu0 0.0
  %1437 = vmatprep.subr.mxu0 0.0
  %1438 = vmatpush1.msra.mxu0 0.0
  %1439 = vmatprep.subr.mxu0 0.0
  %1440 = vmatpush1.msra.mxu0 0.0
  %1441 = vmatprep.subr.mxu0 0.0
  %1442 = vmatpush1.msra.mxu0 0.0
  %1443 = vmatprep.subr.mxu0 0.0
  %1444 = vmatpush1.msra.mxu0 0.0
  %1445 = vmatprep.subr.mxu0 0.0
  %1446 = vmatpush1.msra.mxu0 0.0
  %1447 = vmatprep.subr.mxu0 0.0
  %1448 = vmatpush1.msra.mxu0 0.0
  %1449 = vmatprep.subr.mxu0 0.0
  %1450 = vmatpush1.msra.mxu0 0.0
  %1451 = vmatprep.subr.mxu0 0.0
  %1452 = vmatpush1.msra.mxu0 0.0
  %1453 = vmatprep.subr.mxu0 0.0
  %1454 = vmatpush1.msra.mxu0 0.0
  %1455 = vmatprep.mubr.f32.mxu0 0.0
  %1456 = vmatmul.mubr.f32.gmra.mrb[0].mxu0 %v1389
  %v1457 = vpop.f32.mrb[0].mxu0
  %v1458 = vadd.f32 %v648, %v1457
  %v1459 = vpop.f32.mrb[0].mxu0
  %1460 = vdwg.mxu0
  %v1461 = vtanh.pop %v1458
  %v1463 = vsel %vm314, %v1461, 0
  %1465 = vmatprep.subr.mxu0 0.0
  %1466 = vmatpush1.msra.mxu0 %v408
  %1467 = vmatprep.subr.mxu0 0.0
  %1468 = vmatpush1.msra.mxu0 %v409
  %1469 = vmatprep.subr.mxu0 0.0
  %1470 = vmatpush1.msra.mxu0 %v410
  %1471 = vmatprep.subr.mxu0 0.0
  %1472 = vmatpush1.msra.mxu0 %v411
  %1473 = vmatprep.subr.mxu0 0.0
  %1474 = vmatpush1.msra.mxu0 0.0
  %1475 = vmatprep.subr.mxu0 0.0
  %1476 = vmatpush1.msra.mxu0 0.0
  %1477 = vmatprep.subr.mxu0 0.0
  %1478 = vmatpush1.msra.mxu0 0.0
  %1479 = vmatprep.subr.mxu0 0.0
  %1480 = vmatpush1.msra.mxu0 0.0
  %1481 = vmatprep.subr.mxu0 0.0
  %1482 = vmatpush1.msra.mxu0 0.0
  %1483 = vmatprep.subr.mxu0 0.0
  %1484 = vmatpush1.msra.mxu0 0.0
  %1485 = vmatprep.subr.mxu0 0.0
  %1486 = vmatpush1.msra.mxu0 0.0
  %1487 = vmatprep.subr.mxu0 0.0
  %1488 = vmatpush1.msra.mxu0 0.0
  %1489 = vmatprep.subr.mxu0 0.0
  %1490 = vmatpush1.msra.mxu0 0.0
  %1491 = vmatprep.subr.mxu0 0.0
  %1492 = vmatpush1.msra.mxu0 0.0
  %1493 = vmatprep.subr.mxu0 0.0
  %1494 = vmatpush1.msra.mxu0 0.0
  %1495 = vmatprep.subr.mxu0 0.0
  %1496 = vmatpush1.msra.mxu0 0.0
  %1497 = vmatprep.subr.mxu0 0.0
  %1498 = vmatpush1.msra.mxu0 0.0
  %1499 = vmatprep.subr.mxu0 0.0
  %1500 = vmatpush1.msra.mxu0 0.0
  %1501 = vmatprep.subr.mxu0 0.0
  %1502 = vmatpush1.msra.mxu0 0.0
  %1503 = vmatprep.subr.mxu0 0.0
  %1504 = vmatpush1.msra.mxu0 0.0
  %1505 = vmatprep.subr.mxu0 0.0
  %1506 = vmatpush1.msra.mxu0 0.0
  %1507 = vmatprep.subr.mxu0 0.0
  %1508 = vmatpush1.msra.mxu0 0.0
  %1509 = vmatprep.subr.mxu0 0.0
  %1510 = vmatpush1.msra.mxu0 0.0
  %1511 = vmatprep.subr.mxu0 0.0
  %1512 = vmatpush1.msra.mxu0 0.0
  %1513 = vmatprep.subr.mxu0 0.0
  %1514 = vmatpush1.msra.mxu0 0.0
  %1515 = vmatprep.subr.mxu0 0.0
  %1516 = vmatpush1.msra.mxu0 0.0
  %1517 = vmatprep.subr.mxu0 0.0
  %1518 = vmatpush1.msra.mxu0 0.0
  %1519 = vmatprep.subr.mxu0 0.0
  %1520 = vmatpush1.msra.mxu0 0.0
  %1521 = vmatprep.subr.mxu0 0.0
  %1522 = vmatpush1.msra.mxu0 0.0
  %1523 = vmatprep.subr.mxu0 0.0
  %1524 = vmatpush1.msra.mxu0 0.0
  %1525 = vmatprep.subr.mxu0 0.0
  %1526 = vmatpush1.msra.mxu0 0.0
  %1527 = vmatprep.subr.mxu0 0.0
  %1528 = vmatpush1.msra.mxu0 0.0
  %1529 = vmatprep.mubr.f32.mxu0 0.0
  %1530 = vmatmul.mubr.f32.gmra.mrb[0].mxu0 %v1463
  %v1531 = vpop.f32.mrb[0].mxu0
  %v1532 = vadd.f32 %v728, %v1531
  %v1533 = vpop.f32.mrb[0].mxu0
  %1534 = vdwg.mxu0
  %1535 = vmatprep.subr.mxu0 0.0
  %1536 = vmatpush1.msra.mxu0 %v397
  %1537 = vmatprep.subr.mxu0 0.0
  %1538 = vmatpush1.msra.mxu0 %v398
  %1539 = vmatprep.subr.mxu0 0.0
  %1540 = vmatpush1.msra.mxu0 %v399
  %1541 = vmatprep.subr.mxu0 0.0
  %1542 = vmatpush1.msra.mxu0 %v400
  %1543 = vmatprep.subr.mxu0 0.0
  %1544 = vmatpush1.msra.mxu0 0.0
  %1545 = vmatprep.subr.mxu0 0.0
  %1546 = vmatpush1.msra.mxu0 0.0
  %1547 = vmatprep.subr.mxu0 0.0
  %1548 = vmatpush1.msra.mxu0 0.0
  %1549 = vmatprep.subr.mxu0 0.0
  %1550 = vmatpush1.msra.mxu0 0.0
  %1551 = vmatprep.subr.mxu0 0.0
  %1552 = vmatpush1.msra.mxu0 0.0
  %1553 = vmatprep.subr.mxu0 0.0
  %1554 = vmatpush1.msra.mxu0 0.0
  %1555 = vmatprep.subr.mxu0 0.0
  %1556 = vmatpush1.msra.mxu0 0.0
  %1557 = vmatprep.subr.mxu0 0.0
  %1558 = vmatpush1.msra.mxu0 0.0
  %1559 = vmatprep.subr.mxu0 0.0
  %1560 = vmatpush1.msra.mxu0 0.0
  %1561 = vmatprep.subr.mxu0 0.0
  %1562 = vmatpush1.msra.mxu0 0.0
  %1563 = vmatprep.subr.mxu0 0.0
  %1564 = vmatpush1.msra.mxu0 0.0
  %1565 = vmatprep.subr.mxu0 0.0
  %1566 = vmatpush1.msra.mxu0 0.0
  %1567 = vmatprep.subr.mxu0 0.0
  %1568 = vmatpush1.msra.mxu0 0.0
  %1569 = vmatprep.subr.mxu0 0.0
  %1570 = vmatpush1.msra.mxu0 0.0
  %1571 = vmatprep.subr.mxu0 0.0
  %1572 = vmatpush1.msra.mxu0 0.0
  %1573 = vmatprep.subr.mxu0 0.0
  %1574 = vmatpush1.msra.mxu0 0.0
  %1575 = vmatprep.subr.mxu0 0.0
  %1576 = vmatpush1.msra.mxu0 0.0
  %1577 = vmatprep.subr.mxu0 0.0
  %1578 = vmatpush1.msra.mxu0 0.0
  %1579 = vmatprep.subr.mxu0 0.0
  %1580 = vmatpush1.msra.mxu0 0.0
  %1581 = vmatprep.subr.mxu0 0.0
  %1582 = vmatpush1.msra.mxu0 0.0
  %1583 = vmatprep.subr.mxu0 0.0
  %1584 = vmatpush1.msra.mxu0 0.0
  %1585 = vmatprep.subr.mxu0 0.0
  %1586 = vmatpush1.msra.mxu0 0.0
  %1587 = vmatprep.subr.mxu0 0.0
  %1588 = vmatpush1.msra.mxu0 0.0
  %1589 = vmatprep.subr.mxu0 0.0
  %1590 = vmatpush1.msra.mxu0 0.0
  %1591 = vmatprep.subr.mxu0 0.0
  %1592 = vmatpush1.msra.mxu0 0.0
  %1593 = vmatprep.subr.mxu0 0.0
  %1594 = vmatpush1.msra.mxu0 0.0
  %1595 = vmatprep.subr.mxu0 0.0
  %1596 = vmatpush1.msra.mxu0 0.0
  %1597 = vmatprep.subr.mxu0 0.0
  %1598 = vmatpush1.msra.mxu0 0.0
  %1599 = vmatprep.mubr.f32.mxu0 0.0
  %1600 = vmatmul.mubr.f32.gmra.mrb[0].mxu0 %v1463
  %v1601 = vpop.f32.mrb[0].mxu0
  %v1602 = vadd.f32 0.0, %v1601
  %v1603 = vpop.f32.mrb[0].mxu0
  %1604 = vdwg.mxu0
  %v1607 = vunpack.c.l.s4 1966171168
  %v1608 = vunpack.c.0.s8 %v1607
  %v1609 = vlaneseq
  %v1610 = vshrl.u32 %v1609, 7
  %v1611 = vsub.s32 %v1608, %v1610
  %v1612 = vrot.slane %v1602, %v1611
  %v1613 = vcombine.high %v1612, %v1612
  %v1615 = vunpack.c.l.s4 1966171168
  %v1616 = vunpack.c.0.s8 %v1615
  %v1617 = vlaneseq
  %v1618 = vshrl.u32 %v1617, 7
  %v1619 = vsub.s32 %v1616, %v1618
  %v1620 = vrot.slane %v1612, %v1619
  %v1622 = vunpack.c.l.s4 1966171168
  %v1623 = vunpack.c.0.s8 %v1622
  %v1624 = vlaneseq
  %v1625 = vshrl.u32 %v1624, 7
  %v1626 = vsub.s32 %v1623, %v1625
  %v1627 = vrot.slane %v1613, %v1626
  %v1628 = vlaneseq
  %v1629 = vshrl.u32 %v1628, 7
  %v1630 = vsub.s32 0, %v1629
  %v1631 = vrot.slane %v1620, %v1630
  %v1632 = vlaneseq
  %v1633 = vshrl.u32 %v1632, 7
  %v1634 = vsub.s32 0, %v1633
  %v1635 = vrot.slane %v1627, %v1634
  %v1638 = vadd.f32 %v388, %v1631
  %v1639 = vadd.f32 %v393, %v1635
  %v1640 = vtanh.pop %v1638
  %v1641 = vtanh.pop %v1639
  %v1642 = vmul.f32 %v1640, %v527
  %v1643 = vmul.f32 %v1641, %v527
  %v1644 = vsel %vm314, %v1642, 0.0
  %1645 = vadd.xlane.f32.xlu0 %v1644
  %v1646 = vpop.xlane.xlu0 %1645
  %v1647 = vsel %vm314, %v1643, 0.0
  %1648 = vadd.xlane.f32.xlu0 %v1647
  %v1649 = vpop.xlane.xlu0 %1648
  %v1652 = vlaneseq
  %v1653 = vshrl.u32 %v1652, 7
  %v1654 = vsub.s32 %v540, %v1653
  %v1655 = vrot.slane %v1646, %v1654
  %v1656 = vlaneseq
  %v1657 = vshrl.u32 %v1656, 7
  %v1658 = vsub.s32 %v540, %v1657
  %v1659 = vrot.slane %v1649, %v1658
  %v1660 = vsel %vm549, %v1659, %v1655
  %v1662 = vsel %vm552, %v1660, -inf
  %1663 = vmax.xlane.f32.xlu0 %v1662
  %v1664 = vpop.xlane.xlu0 %1663
  %v1666 = vlaneseq
  %v1667 = vshrl.u32 %v1666, 7
  %v1668 = vsub.s32 0, %v1667
  %v1669 = vrot.slane %v1664, %v1668
  %v1670 = vlaneseq
  %v1671 = vshrl.u32 %v1670, 7
  %v1672 = vsub.s32 1, %v1671
  %v1673 = vrot.slane %v1664, %v1672
  %v1676 = vsub.f32 %v1646, %v1669
  %v1677 = vsub.f32 %v1649, %v1673
  %v1678 = vmul.f32 %v1676, 1.442695
  %v1679 = vpow.pop %v1678
  %v1680 = vmul.f32 %v1677, 1.442695
  %v1681 = vpow.pop %v1680
  %1684 = vset.pattern.permute.xlu0 0
  %1685 = vperm.xlu0 %1684, %v1679
  %v1686 = vpop.permute.xlu0 %1685
  %1687 = vset.pattern.permute.xlu0 0
  %1688 = vperm.xlu0 %1687, %v1681
  %v1689 = vpop.permute.xlu0 %1688
  %v1690 = vlaneseq
  %v1691 = vshrl.u32 %v1690, 7
  %v1692 = vsub.s32 %v540, %v1691
  %v1693 = vrot.slane %v1686, %v1692
  %v1694 = vlaneseq
  %v1695 = vshrl.u32 %v1694, 7
  %v1696 = vsub.s32 %v540, %v1695
  %v1697 = vrot.slane %v1689, %v1696
  %v1698 = vsel %vm549, %v1697, %v1693
  %v1700 = vsel %vm552, %v1698, 0.0
  %1701 = vadd.xlane.f32.xlu0 %v1700
  %v1702 = vpop.xlane.xlu0 %1701
  %v1703 = vrcp.pop %v1702
  %v1705 = vlaneseq
  %v1706 = vshrl.u32 %v1705, 7
  %v1707 = vsub.s32 0, %v1706
  %v1708 = vrot.slane %v1703, %v1707
  %v1709 = vlaneseq
  %v1710 = vshrl.u32 %v1709, 7
  %v1711 = vsub.s32 1, %v1710
  %v1712 = vrot.slane %v1703, %v1711
  %v1715 = vmul.f32 %v1679, %v1708
  %v1716 = vmul.f32 %v1681, %v1712
  %1718 = vset.pattern.permute.xlu0 0
  %1719 = vperm.xlu0 %1718, %v1715
  %v1720 = vpop.permute.xlu0 %1719
  %1723 = vset.pattern.permute.xlu0 0
  %1724 = vperm.xlu0 %1723, %v1716
  %v1725 = vpop.permute.xlu0 %1724
  %v1727 = vmul.f32 %v1720, %v302
  %v1728 = vmul.f32 %v1725, %v307
  %v1729 = vsel %vm314, %v1727, 0.0
  %v1730 = vrot.slane %v1729, 4
  %v1731 = vadd.f32 %v1729, %v1730
  %v1732 = vrot.slane %v1731, 2
  %v1733 = vadd.f32 %v1731, %v1732
  %v1734 = vrot.slane %v1733, 1
  %v1735 = vadd.f32 %v1733, %v1734
  %v1736 = vsel %vm314, %v1728, 0.0
  %v1737 = vrot.slane %v1736, 4
  %v1738 = vadd.f32 %v1736, %v1737
  %v1739 = vrot.slane %v1738, 2
  %v1740 = vadd.f32 %v1738, %v1739
  %v1741 = vrot.slane %v1740, 1
  %v1742 = vadd.f32 %v1740, %v1741
  %s1743 = scalar_lea.vmem %s1, 6
  %v1744 = vld [vmem:[%s1743] sm:$0x3]
  %v1747 = vsel %vm549, %v1742, %v1735
  %1750 = vrot.lane.b32.xlu0 %v1744, 32
  %v1751 = vpop.permute.xlu0 %1750
  %v1753 = vsel %vm314, %v1747, %v1751
  %v1755 = vsel %vm67, %v1753, 0
  %1757 = vmatprep.subr.mxu0 0.0
  %1758 = vmatpush1.msra.mxu0 %v401
  %1759 = vmatprep.subr.mxu0 0.0
  %1760 = vmatpush1.msra.mxu0 %v402
  %1761 = vmatprep.subr.mxu0 0.0
  %1762 = vmatpush1.msra.mxu0 %v403
  %1763 = vmatprep.subr.mxu0 0.0
  %1764 = vmatpush1.msra.mxu0 %v404
  %1765 = vmatprep.subr.mxu0 0.0
  %1766 = vmatpush1.msra.mxu0 %v405
  %1767 = vmatprep.subr.mxu0 0.0
  %1768 = vmatpush1.msra.mxu0 %v406
  %1769 = vmatprep.subr.mxu0 0.0
  %1770 = vmatpush1.msra.mxu0 0.0
  %1771 = vmatprep.subr.mxu0 0.0
  %1772 = vmatpush1.msra.mxu0 0.0
  %1773 = vmatprep.subr.mxu0 0.0
  %1774 = vmatpush1.msra.mxu0 0.0
  %1775 = vmatprep.subr.mxu0 0.0
  %1776 = vmatpush1.msra.mxu0 0.0
  %1777 = vmatprep.subr.mxu0 0.0
  %1778 = vmatpush1.msra.mxu0 0.0
  %1779 = vmatprep.subr.mxu0 0.0
  %1780 = vmatpush1.msra.mxu0 0.0
  %1781 = vmatprep.subr.mxu0 0.0
  %1782 = vmatpush1.msra.mxu0 0.0
  %1783 = vmatprep.subr.mxu0 0.0
  %1784 = vmatpush1.msra.mxu0 0.0
  %1785 = vmatprep.subr.mxu0 0.0
  %1786 = vmatpush1.msra.mxu0 0.0
  %1787 = vmatprep.subr.mxu0 0.0
  %1788 = vmatpush1.msra.mxu0 0.0
  %1789 = vmatprep.subr.mxu0 0.0
  %1790 = vmatpush1.msra.mxu0 0.0
  %1791 = vmatprep.subr.mxu0 0.0
  %1792 = vmatpush1.msra.mxu0 0.0
  %1793 = vmatprep.subr.mxu0 0.0
  %1794 = vmatpush1.msra.mxu0 0.0
  %1795 = vmatprep.subr.mxu0 0.0
  %1796 = vmatpush1.msra.mxu0 0.0
  %1797 = vmatprep.subr.mxu0 0.0
  %1798 = vmatpush1.msra.mxu0 0.0
  %1799 = vmatprep.subr.mxu0 0.0
  %1800 = vmatpush1.msra.mxu0 0.0
  %1801 = vmatprep.subr.mxu0 0.0
  %1802 = vmatpush1.msra.mxu0 0.0
  %1803 = vmatprep.subr.mxu0 0.0
  %1804 = vmatpush1.msra.mxu0 0.0
  %1805 = vmatprep.subr.mxu0 0.0
  %1806 = vmatpush1.msra.mxu0 0.0
  %1807 = vmatprep.subr.mxu0 0.0
  %1808 = vmatpush1.msra.mxu0 0.0
  %1809 = vmatprep.subr.mxu0 0.0
  %1810 = vmatpush1.msra.mxu0 0.0
  %1811 = vmatprep.subr.mxu0 0.0
  %1812 = vmatpush1.msra.mxu0 0.0
  %1813 = vmatprep.subr.mxu0 0.0
  %1814 = vmatpush1.msra.mxu0 0.0
  %1815 = vmatprep.subr.mxu0 0.0
  %1816 = vmatpush1.msra.mxu0 0.0
  %1817 = vmatprep.subr.mxu0 0.0
  %1818 = vmatpush1.msra.mxu0 0.0
  %1819 = vmatprep.subr.mxu0 0.0
  %1820 = vmatpush1.msra.mxu0 0.0
  %1821 = vmatprep.mubr.f32.mxu0 0.0
  %1822 = vmatmul.mubr.f32.gmra.mrb[0].mxu0 %v1755
  %v1823 = vpop.f32.mrb[0].mxu0
  %v1824 = vadd.f32 %v648, %v1823
  %v1825 = vpop.f32.mrb[0].mxu0
  %1826 = vdwg.mxu0
  %v1827 = vtanh.pop %v1824
  %v1829 = vsel %vm314, %v1827, 0
  %1831 = vmatprep.subr.mxu0 0.0
  %1832 = vmatpush1.msra.mxu0 %v408
  %1833 = vmatprep.subr.mxu0 0.0
  %1834 = vmatpush1.msra.mxu0 %v409
  %1835 = vmatprep.subr.mxu0 0.0
  %1836 = vmatpush1.msra.mxu0 %v410
  %1837 = vmatprep.subr.mxu0 0.0
  %1838 = vmatpush1.msra.mxu0 %v411
  %1839 = vmatprep.subr.mxu0 0.0
  %1840 = vmatpush1.msra.mxu0 0.0
  %1841 = vmatprep.subr.mxu0 0.0
  %1842 = vmatpush1.msra.mxu0 0.0
  %1843 = vmatprep.subr.mxu0 0.0
  %1844 = vmatpush1.msra.mxu0 0.0
  %1845 = vmatprep.subr.mxu0 0.0
  %1846 = vmatpush1.msra.mxu0 0.0
  %1847 = vmatprep.subr.mxu0 0.0
  %1848 = vmatpush1.msra.mxu0 0.0
  %1849 = vmatprep.subr.mxu0 0.0
  %1850 = vmatpush1.msra.mxu0 0.0
  %1851 = vmatprep.subr.mxu0 0.0
  %1852 = vmatpush1.msra.mxu0 0.0
  %1853 = vmatprep.subr.mxu0 0.0
  %1854 = vmatpush1.msra.mxu0 0.0
  %1855 = vmatprep.subr.mxu0 0.0
  %1856 = vmatpush1.msra.mxu0 0.0
  %1857 = vmatprep.subr.mxu0 0.0
  %1858 = vmatpush1.msra.mxu0 0.0
  %1859 = vmatprep.subr.mxu0 0.0
  %1860 = vmatpush1.msra.mxu0 0.0
  %1861 = vmatprep.subr.mxu0 0.0
  %1862 = vmatpush1.msra.mxu0 0.0
  %1863 = vmatprep.subr.mxu0 0.0
  %1864 = vmatpush1.msra.mxu0 0.0
  %1865 = vmatprep.subr.mxu0 0.0
  %1866 = vmatpush1.msra.mxu0 0.0
  %1867 = vmatprep.subr.mxu0 0.0
  %1868 = vmatpush1.msra.mxu0 0.0
  %1869 = vmatprep.subr.mxu0 0.0
  %1870 = vmatpush1.msra.mxu0 0.0
  %1871 = vmatprep.subr.mxu0 0.0
  %1872 = vmatpush1.msra.mxu0 0.0
  %1873 = vmatprep.subr.mxu0 0.0
  %1874 = vmatpush1.msra.mxu0 0.0
  %1875 = vmatprep.subr.mxu0 0.0
  %1876 = vmatpush1.msra.mxu0 0.0
  %1877 = vmatprep.subr.mxu0 0.0
  %1878 = vmatpush1.msra.mxu0 0.0
  %1879 = vmatprep.subr.mxu0 0.0
  %1880 = vmatpush1.msra.mxu0 0.0
  %1881 = vmatprep.subr.mxu0 0.0
  %1882 = vmatpush1.msra.mxu0 0.0
  %1883 = vmatprep.subr.mxu0 0.0
  %1884 = vmatpush1.msra.mxu0 0.0
  %1885 = vmatprep.subr.mxu0 0.0
  %1886 = vmatpush1.msra.mxu0 0.0
  %1887 = vmatprep.subr.mxu0 0.0
  %1888 = vmatpush1.msra.mxu0 0.0
  %1889 = vmatprep.subr.mxu0 0.0
  %1890 = vmatpush1.msra.mxu0 0.0
  %1891 = vmatprep.subr.mxu0 0.0
  %1892 = vmatpush1.msra.mxu0 0.0
  %1893 = vmatprep.subr.mxu0 0.0
  %1894 = vmatpush1.msra.mxu0 0.0
  %1895 = vmatprep.mubr.f32.mxu0 0.0
  %1896 = vmatmul.mubr.f32.gmra.mrb[0].mxu0 %v1829
  %v1897 = vpop.f32.mrb[0].mxu0
  %v1898 = vadd.f32 %v728, %v1897
  %v1899 = vpop.f32.mrb[0].mxu0
  %1900 = vdwg.mxu0
  %1901 = vmatprep.subr.mxu0 0.0
  %1902 = vmatpush1.msra.mxu0 %v397
  %1903 = vmatprep.subr.mxu0 0.0
  %1904 = vmatpush1.msra.mxu0 %v398
  %1905 = vmatprep.subr.mxu0 0.0
  %1906 = vmatpush1.msra.mxu0 %v399
  %1907 = vmatprep.subr.mxu0 0.0
  %1908 = vmatpush1.msra.mxu0 %v400
  %1909 = vmatprep.subr.mxu0 0.0
  %1910 = vmatpush1.msra.mxu0 0.0
  %1911 = vmatprep.subr.mxu0 0.0
  %1912 = vmatpush1.msra.mxu0 0.0
  %1913 = vmatprep.subr.mxu0 0.0
  %1914 = vmatpush1.msra.mxu0 0.0
  %1915 = vmatprep.subr.mxu0 0.0
  %1916 = vmatpush1.msra.mxu0 0.0
  %1917 = vmatprep.subr.mxu0 0.0
  %1918 = vmatpush1.msra.mxu0 0.0
  %1919 = vmatprep.subr.mxu0 0.0
  %1920 = vmatpush1.msra.mxu0 0.0
  %1921 = vmatprep.subr.mxu0 0.0
  %1922 = vmatpush1.msra.mxu0 0.0
  %1923 = vmatprep.subr.mxu0 0.0
  %1924 = vmatpush1.msra.mxu0 0.0
  %1925 = vmatprep.subr.mxu0 0.0
  %1926 = vmatpush1.msra.mxu0 0.0
  %1927 = vmatprep.subr.mxu0 0.0
  %1928 = vmatpush1.msra.mxu0 0.0
  %1929 = vmatprep.subr.mxu0 0.0
  %1930 = vmatpush1.msra.mxu0 0.0
  %1931 = vmatprep.subr.mxu0 0.0
  %1932 = vmatpush1.msra.mxu0 0.0
  %1933 = vmatprep.subr.mxu0 0.0
  %1934 = vmatpush1.msra.mxu0 0.0
  %1935 = vmatprep.subr.mxu0 0.0
  %1936 = vmatpush1.msra.mxu0 0.0
  %1937 = vmatprep.subr.mxu0 0.0
  %1938 = vmatpush1.msra.mxu0 0.0
  %1939 = vmatprep.subr.mxu0 0.0
  %1940 = vmatpush1.msra.mxu0 0.0
  %1941 = vmatprep.subr.mxu0 0.0
  %1942 = vmatpush1.msra.mxu0 0.0
  %1943 = vmatprep.subr.mxu0 0.0
  %1944 = vmatpush1.msra.mxu0 0.0
  %1945 = vmatprep.subr.mxu0 0.0
  %1946 = vmatpush1.msra.mxu0 0.0
  %1947 = vmatprep.subr.mxu0 0.0
  %1948 = vmatpush1.msra.mxu0 0.0
  %1949 = vmatprep.subr.mxu0 0.0
  %1950 = vmatpush1.msra.mxu0 0.0
  %1951 = vmatprep.subr.mxu0 0.0
  %1952 = vmatpush1.msra.mxu0 0.0
  %1953 = vmatprep.subr.mxu0 0.0
  %1954 = vmatpush1.msra.mxu0 0.0
  %1955 = vmatprep.subr.mxu0 0.0
  %1956 = vmatpush1.msra.mxu0 0.0
  %1957 = vmatprep.subr.mxu0 0.0
  %1958 = vmatpush1.msra.mxu0 0.0
  %1959 = vmatprep.subr.mxu0 0.0
  %1960 = vmatpush1.msra.mxu0 0.0
  %1961 = vmatprep.subr.mxu0 0.0
  %1962 = vmatpush1.msra.mxu0 0.0
  %1963 = vmatprep.subr.mxu0 0.0
  %1964 = vmatpush1.msra.mxu0 0.0
  %1965 = vmatprep.mubr.f32.mxu0 0.0
  %1966 = vmatmul.mubr.f32.gmra.mrb[0].mxu0 %v1829
  %v1967 = vpop.f32.mrb[0].mxu0
  %v1968 = vadd.f32 0.0, %v1967
  %v1969 = vpop.f32.mrb[0].mxu0
  %1970 = vdwg.mxu0
  %v1973 = vunpack.c.l.s4 1966171168
  %v1974 = vunpack.c.0.s8 %v1973
  %v1975 = vlaneseq
  %v1976 = vshrl.u32 %v1975, 7
  %v1977 = vsub.s32 %v1974, %v1976
  %v1978 = vrot.slane %v1968, %v1977
  %v1979 = vcombine.high %v1978, %v1978
  %v1981 = vunpack.c.l.s4 1966171168
  %v1982 = vunpack.c.0.s8 %v1981
  %v1983 = vlaneseq
  %v1984 = vshrl.u32 %v1983, 7
  %v1985 = vsub.s32 %v1982, %v1984
  %v1986 = vrot.slane %v1978, %v1985
  %v1988 = vunpack.c.l.s4 1966171168
  %v1989 = vunpack.c.0.s8 %v1988
  %v1990 = vlaneseq
  %v1991 = vshrl.u32 %v1990, 7
  %v1992 = vsub.s32 %v1989, %v1991
  %v1993 = vrot.slane %v1979, %v1992
  %v1994 = vlaneseq
  %v1995 = vshrl.u32 %v1994, 7
  %v1996 = vsub.s32 0, %v1995
  %v1997 = vrot.slane %v1986, %v1996
  %v1998 = vlaneseq
  %v1999 = vshrl.u32 %v1998, 7
  %v2000 = vsub.s32 0, %v1999
  %v2001 = vrot.slane %v1993, %v2000
  %v2004 = vadd.f32 %v388, %v1997
  %v2005 = vadd.f32 %v393, %v2001
  %v2006 = vtanh.pop %v2004
  %v2007 = vtanh.pop %v2005
  %v2008 = vmul.f32 %v2006, %v527
  %v2009 = vmul.f32 %v2007, %v527
  %v2010 = vsel %vm314, %v2008, 0.0
  %2011 = vadd.xlane.f32.xlu0 %v2010
  %v2012 = vpop.xlane.xlu0 %2011
  %v2013 = vsel %vm314, %v2009, 0.0
  %2014 = vadd.xlane.f32.xlu0 %v2013
  %v2015 = vpop.xlane.xlu0 %2014
  %v2018 = vlaneseq
  %v2019 = vshrl.u32 %v2018, 7
  %v2020 = vsub.s32 %v540, %v2019
  %v2021 = vrot.slane %v2012, %v2020
  %v2022 = vlaneseq
  %v2023 = vshrl.u32 %v2022, 7
  %v2024 = vsub.s32 %v540, %v2023
  %v2025 = vrot.slane %v2015, %v2024
  %v2026 = vsel %vm549, %v2025, %v2021
  %v2028 = vsel %vm552, %v2026, -inf
  %2029 = vmax.xlane.f32.xlu0 %v2028
  %v2030 = vpop.xlane.xlu0 %2029
  %v2032 = vlaneseq
  %v2033 = vshrl.u32 %v2032, 7
  %v2034 = vsub.s32 0, %v2033
  %v2035 = vrot.slane %v2030, %v2034
  %v2036 = vlaneseq
  %v2037 = vshrl.u32 %v2036, 7
  %v2038 = vsub.s32 1, %v2037
  %v2039 = vrot.slane %v2030, %v2038
  %v2042 = vsub.f32 %v2012, %v2035
  %v2043 = vsub.f32 %v2015, %v2039
  %v2044 = vmul.f32 %v2042, 1.442695
  %v2045 = vpow.pop %v2044
  %v2046 = vmul.f32 %v2043, 1.442695
  %v2047 = vpow.pop %v2046
  %2050 = vset.pattern.permute.xlu0 0
  %2051 = vperm.xlu0 %2050, %v2045
  %v2052 = vpop.permute.xlu0 %2051
  %2053 = vset.pattern.permute.xlu0 0
  %2054 = vperm.xlu0 %2053, %v2047
  %v2055 = vpop.permute.xlu0 %2054
  %v2056 = vlaneseq
  %v2057 = vshrl.u32 %v2056, 7
  %v2058 = vsub.s32 %v540, %v2057
  %v2059 = vrot.slane %v2052, %v2058
  %v2060 = vlaneseq
  %v2061 = vshrl.u32 %v2060, 7
  %v2062 = vsub.s32 %v540, %v2061
  %v2063 = vrot.slane %v2055, %v2062
  %v2064 = vsel %vm549, %v2063, %v2059
  %v2066 = vsel %vm552, %v2064, 0.0
  %2067 = vadd.xlane.f32.xlu0 %v2066
  %v2068 = vpop.xlane.xlu0 %2067
  %v2069 = vrcp.pop %v2068
  %v2071 = vlaneseq
  %v2072 = vshrl.u32 %v2071, 7
  %v2073 = vsub.s32 0, %v2072
  %v2074 = vrot.slane %v2069, %v2073
  %v2075 = vlaneseq
  %v2076 = vshrl.u32 %v2075, 7
  %v2077 = vsub.s32 1, %v2076
  %v2078 = vrot.slane %v2069, %v2077
  %v2081 = vmul.f32 %v2045, %v2074
  %v2082 = vmul.f32 %v2047, %v2078
  %2084 = vset.pattern.permute.xlu0 0
  %2085 = vperm.xlu0 %2084, %v2081
  %v2086 = vpop.permute.xlu0 %2085
  %2089 = vset.pattern.permute.xlu0 0
  %2090 = vperm.xlu0 %2089, %v2082
  %v2091 = vpop.permute.xlu0 %2090
  %v2093 = vmul.f32 %v2086, %v302
  %v2094 = vmul.f32 %v2091, %v307
  %v2095 = vsel %vm314, %v2093, 0.0
  %v2096 = vrot.slane %v2095, 4
  %v2097 = vadd.f32 %v2095, %v2096
  %v2098 = vrot.slane %v2097, 2
  %v2099 = vadd.f32 %v2097, %v2098
  %v2100 = vrot.slane %v2099, 1
  %v2101 = vadd.f32 %v2099, %v2100
  %v2102 = vsel %vm314, %v2094, 0.0
  %v2103 = vrot.slane %v2102, 4
  %v2104 = vadd.f32 %v2102, %v2103
  %v2105 = vrot.slane %v2104, 2
  %v2106 = vadd.f32 %v2104, %v2105
  %v2107 = vrot.slane %v2106, 1
  %v2108 = vadd.f32 %v2106, %v2107
  %s2109 = scalar_lea.vmem %s1, 8
  %v2110 = vld [vmem:[%s2109] sm:$0x3]
  %v2113 = vsel %vm549, %v2108, %v2101
  %2116 = vrot.lane.b32.xlu0 %v2110, 32
  %v2117 = vpop.permute.xlu0 %2116
  %v2119 = vsel %vm314, %v2113, %v2117
  %v2121 = vsel %vm67, %v2119, 0
  %2123 = vmatprep.subr.mxu0 0.0
  %2124 = vmatpush1.msra.mxu0 %v401
  %2125 = vmatprep.subr.mxu0 0.0
  %2126 = vmatpush1.msra.mxu0 %v402
  %2127 = vmatprep.subr.mxu0 0.0
  %2128 = vmatpush1.msra.mxu0 %v403
  %2129 = vmatprep.subr.mxu0 0.0
  %2130 = vmatpush1.msra.mxu0 %v404
  %2131 = vmatprep.subr.mxu0 0.0
  %2132 = vmatpush1.msra.mxu0 %v405
  %2133 = vmatprep.subr.mxu0 0.0
  %2134 = vmatpush1.msra.mxu0 %v406
  %2135 = vmatprep.subr.mxu0 0.0
  %2136 = vmatpush1.msra.mxu0 0.0
  %2137 = vmatprep.subr.mxu0 0.0
  %2138 = vmatpush1.msra.mxu0 0.0
  %2139 = vmatprep.subr.mxu0 0.0
  %2140 = vmatpush1.msra.mxu0 0.0
  %2141 = vmatprep.subr.mxu0 0.0
  %2142 = vmatpush1.msra.mxu0 0.0
  %2143 = vmatprep.subr.mxu0 0.0
  %2144 = vmatpush1.msra.mxu0 0.0
  %2145 = vmatprep.subr.mxu0 0.0
  %2146 = vmatpush1.msra.mxu0 0.0
  %2147 = vmatprep.subr.mxu0 0.0
  %2148 = vmatpush1.msra.mxu0 0.0
  %2149 = vmatprep.subr.mxu0 0.0
  %2150 = vmatpush1.msra.mxu0 0.0
  %2151 = vmatprep.subr.mxu0 0.0
  %2152 = vmatpush1.msra.mxu0 0.0
  %2153 = vmatprep.subr.mxu0 0.0
  %2154 = vmatpush1.msra.mxu0 0.0
  %2155 = vmatprep.subr.mxu0 0.0
  %2156 = vmatpush1.msra.mxu0 0.0
  %2157 = vmatprep.subr.mxu0 0.0
  %2158 = vmatpush1.msra.mxu0 0.0
  %2159 = vmatprep.subr.mxu0 0.0
  %2160 = vmatpush1.msra.mxu0 0.0
  %2161 = vmatprep.subr.mxu0 0.0
  %2162 = vmatpush1.msra.mxu0 0.0
  %2163 = vmatprep.subr.mxu0 0.0
  %2164 = vmatpush1.msra.mxu0 0.0
  %2165 = vmatprep.subr.mxu0 0.0
  %2166 = vmatpush1.msra.mxu0 0.0
  %2167 = vmatprep.subr.mxu0 0.0
  %2168 = vmatpush1.msra.mxu0 0.0
  %2169 = vmatprep.subr.mxu0 0.0
  %2170 = vmatpush1.msra.mxu0 0.0
  %2171 = vmatprep.subr.mxu0 0.0
  %2172 = vmatpush1.msra.mxu0 0.0
  %2173 = vmatprep.subr.mxu0 0.0
  %2174 = vmatpush1.msra.mxu0 0.0
  %2175 = vmatprep.subr.mxu0 0.0
  %2176 = vmatpush1.msra.mxu0 0.0
  %2177 = vmatprep.subr.mxu0 0.0
  %2178 = vmatpush1.msra.mxu0 0.0
  %2179 = vmatprep.subr.mxu0 0.0
  %2180 = vmatpush1.msra.mxu0 0.0
  %2181 = vmatprep.subr.mxu0 0.0
  %2182 = vmatpush1.msra.mxu0 0.0
  %2183 = vmatprep.subr.mxu0 0.0
  %2184 = vmatpush1.msra.mxu0 0.0
  %2185 = vmatprep.subr.mxu0 0.0
  %2186 = vmatpush1.msra.mxu0 0.0
  %2187 = vmatprep.mubr.f32.mxu0 0.0
  %2188 = vmatmul.mubr.f32.gmra.mrb[0].mxu0 %v2121
  %v2189 = vpop.f32.mrb[0].mxu0
  %v2190 = vadd.f32 %v648, %v2189
  %v2191 = vpop.f32.mrb[0].mxu0
  %2192 = vdwg.mxu0
  %v2193 = vtanh.pop %v2190
  %v2195 = vsel %vm314, %v2193, 0
  %2197 = vmatprep.subr.mxu0 0.0
  %2198 = vmatpush1.msra.mxu0 %v408
  %2199 = vmatprep.subr.mxu0 0.0
  %2200 = vmatpush1.msra.mxu0 %v409
  %2201 = vmatprep.subr.mxu0 0.0
  %2202 = vmatpush1.msra.mxu0 %v410
  %2203 = vmatprep.subr.mxu0 0.0
  %2204 = vmatpush1.msra.mxu0 %v411
  %2205 = vmatprep.subr.mxu0 0.0
  %2206 = vmatpush1.msra.mxu0 0.0
  %2207 = vmatprep.subr.mxu0 0.0
  %2208 = vmatpush1.msra.mxu0 0.0
  %2209 = vmatprep.subr.mxu0 0.0
  %2210 = vmatpush1.msra.mxu0 0.0
  %2211 = vmatprep.subr.mxu0 0.0
  %2212 = vmatpush1.msra.mxu0 0.0
  %2213 = vmatprep.subr.mxu0 0.0
  %2214 = vmatpush1.msra.mxu0 0.0
  %2215 = vmatprep.subr.mxu0 0.0
  %2216 = vmatpush1.msra.mxu0 0.0
  %2217 = vmatprep.subr.mxu0 0.0
  %2218 = vmatpush1.msra.mxu0 0.0
  %2219 = vmatprep.subr.mxu0 0.0
  %2220 = vmatpush1.msra.mxu0 0.0
  %2221 = vmatprep.subr.mxu0 0.0
  %2222 = vmatpush1.msra.mxu0 0.0
  %2223 = vmatprep.subr.mxu0 0.0
  %2224 = vmatpush1.msra.mxu0 0.0
  %2225 = vmatprep.subr.mxu0 0.0
  %2226 = vmatpush1.msra.mxu0 0.0
  %2227 = vmatprep.subr.mxu0 0.0
  %2228 = vmatpush1.msra.mxu0 0.0
  %2229 = vmatprep.subr.mxu0 0.0
  %2230 = vmatpush1.msra.mxu0 0.0
  %2231 = vmatprep.subr.mxu0 0.0
  %2232 = vmatpush1.msra.mxu0 0.0
  %2233 = vmatprep.subr.mxu0 0.0
  %2234 = vmatpush1.msra.mxu0 0.0
  %2235 = vmatprep.subr.mxu0 0.0
  %2236 = vmatpush1.msra.mxu0 0.0
  %2237 = vmatprep.subr.mxu0 0.0
  %2238 = vmatpush1.msra.mxu0 0.0
  %2239 = vmatprep.subr.mxu0 0.0
  %2240 = vmatpush1.msra.mxu0 0.0
  %2241 = vmatprep.subr.mxu0 0.0
  %2242 = vmatpush1.msra.mxu0 0.0
  %2243 = vmatprep.subr.mxu0 0.0
  %2244 = vmatpush1.msra.mxu0 0.0
  %2245 = vmatprep.subr.mxu0 0.0
  %2246 = vmatpush1.msra.mxu0 0.0
  %2247 = vmatprep.subr.mxu0 0.0
  %2248 = vmatpush1.msra.mxu0 0.0
  %2249 = vmatprep.subr.mxu0 0.0
  %2250 = vmatpush1.msra.mxu0 0.0
  %2251 = vmatprep.subr.mxu0 0.0
  %2252 = vmatpush1.msra.mxu0 0.0
  %2253 = vmatprep.subr.mxu0 0.0
  %2254 = vmatpush1.msra.mxu0 0.0
  %2255 = vmatprep.subr.mxu0 0.0
  %2256 = vmatpush1.msra.mxu0 0.0
  %2257 = vmatprep.subr.mxu0 0.0
  %2258 = vmatpush1.msra.mxu0 0.0
  %2259 = vmatprep.subr.mxu0 0.0
  %2260 = vmatpush1.msra.mxu0 0.0
  %2261 = vmatprep.mubr.f32.mxu0 0.0
  %2262 = vmatmul.mubr.f32.gmra.mrb[0].mxu0 %v2195
  %v2263 = vpop.f32.mrb[0].mxu0
  %v2264 = vadd.f32 %v728, %v2263
  %v2265 = vpop.f32.mrb[0].mxu0
  %2266 = vdwg.mxu0
  %2267 = vmatprep.subr.mxu0 0.0
  %2268 = vmatpush1.msra.mxu0 %v397
  %2269 = vmatprep.subr.mxu0 0.0
  %2270 = vmatpush1.msra.mxu0 %v398
  %2271 = vmatprep.subr.mxu0 0.0
  %2272 = vmatpush1.msra.mxu0 %v399
  %2273 = vmatprep.subr.mxu0 0.0
  %2274 = vmatpush1.msra.mxu0 %v400
  %2275 = vmatprep.subr.mxu0 0.0
  %2276 = vmatpush1.msra.mxu0 0.0
  %2277 = vmatprep.subr.mxu0 0.0
  %2278 = vmatpush1.msra.mxu0 0.0
  %2279 = vmatprep.subr.mxu0 0.0
  %2280 = vmatpush1.msra.mxu0 0.0
  %2281 = vmatprep.subr.mxu0 0.0
  %2282 = vmatpush1.msra.mxu0 0.0
  %2283 = vmatprep.subr.mxu0 0.0
  %2284 = vmatpush1.msra.mxu0 0.0
  %2285 = vmatprep.subr.mxu0 0.0
  %2286 = vmatpush1.msra.mxu0 0.0
  %2287 = vmatprep.subr.mxu0 0.0
  %2288 = vmatpush1.msra.mxu0 0.0
  %2289 = vmatprep.subr.mxu0 0.0
  %2290 = vmatpush1.msra.mxu0 0.0
  %2291 = vmatprep.subr.mxu0 0.0
  %2292 = vmatpush1.msra.mxu0 0.0
  %2293 = vmatprep.subr.mxu0 0.0
  %2294 = vmatpush1.msra.mxu0 0.0
  %2295 = vmatprep.subr.mxu0 0.0
  %2296 = vmatpush1.msra.mxu0 0.0
  %2297 = vmatprep.subr.mxu0 0.0
  %2298 = vmatpush1.msra.mxu0 0.0
  %2299 = vmatprep.subr.mxu0 0.0
  %2300 = vmatpush1.msra.mxu0 0.0
  %2301 = vmatprep.subr.mxu0 0.0
  %2302 = vmatpush1.msra.mxu0 0.0
  %2303 = vmatprep.subr.mxu0 0.0
  %2304 = vmatpush1.msra.mxu0 0.0
  %2305 = vmatprep.subr.mxu0 0.0
  %2306 = vmatpush1.msra.mxu0 0.0
  %2307 = vmatprep.subr.mxu0 0.0
  %2308 = vmatpush1.msra.mxu0 0.0
  %2309 = vmatprep.subr.mxu0 0.0
  %2310 = vmatpush1.msra.mxu0 0.0
  %2311 = vmatprep.subr.mxu0 0.0
  %2312 = vmatpush1.msra.mxu0 0.0
  %2313 = vmatprep.subr.mxu0 0.0
  %2314 = vmatpush1.msra.mxu0 0.0
  %2315 = vmatprep.subr.mxu0 0.0
  %2316 = vmatpush1.msra.mxu0 0.0
  %2317 = vmatprep.subr.mxu0 0.0
  %2318 = vmatpush1.msra.mxu0 0.0
  %2319 = vmatprep.subr.mxu0 0.0
  %2320 = vmatpush1.msra.mxu0 0.0
  %2321 = vmatprep.subr.mxu0 0.0
  %2322 = vmatpush1.msra.mxu0 0.0
  %2323 = vmatprep.subr.mxu0 0.0
  %2324 = vmatpush1.msra.mxu0 0.0
  %2325 = vmatprep.subr.mxu0 0.0
  %2326 = vmatpush1.msra.mxu0 0.0
  %2327 = vmatprep.subr.mxu0 0.0
  %2328 = vmatpush1.msra.mxu0 0.0
  %2329 = vmatprep.subr.mxu0 0.0
  %2330 = vmatpush1.msra.mxu0 0.0
  %2331 = vmatprep.mubr.f32.mxu0 0.0
  %2332 = vmatmul.mubr.f32.gmra.mrb[0].mxu0 %v2195
  %v2333 = vpop.f32.mrb[0].mxu0
  %v2334 = vadd.f32 0.0, %v2333
  %v2335 = vpop.f32.mrb[0].mxu0
  %2336 = vdwg.mxu0
  %v2339 = vunpack.c.l.s4 1966171168
  %v2340 = vunpack.c.0.s8 %v2339
  %v2341 = vlaneseq
  %v2342 = vshrl.u32 %v2341, 7
  %v2343 = vsub.s32 %v2340, %v2342
  %v2344 = vrot.slane %v2334, %v2343
  %v2345 = vcombine.high %v2344, %v2344
  %v2347 = vunpack.c.l.s4 1966171168
  %v2348 = vunpack.c.0.s8 %v2347
  %v2349 = vlaneseq
  %v2350 = vshrl.u32 %v2349, 7
  %v2351 = vsub.s32 %v2348, %v2350
  %v2352 = vrot.slane %v2344, %v2351
  %v2354 = vunpack.c.l.s4 1966171168
  %v2355 = vunpack.c.0.s8 %v2354
  %v2356 = vlaneseq
  %v2357 = vshrl.u32 %v2356, 7
  %v2358 = vsub.s32 %v2355, %v2357
  %v2359 = vrot.slane %v2345, %v2358
  %v2360 = vlaneseq
  %v2361 = vshrl.u32 %v2360, 7
  %v2362 = vsub.s32 0, %v2361
  %v2363 = vrot.slane %v2352, %v2362
  %v2364 = vlaneseq
  %v2365 = vshrl.u32 %v2364, 7
  %v2366 = vsub.s32 0, %v2365
  %v2367 = vrot.slane %v2359, %v2366
  %v2370 = vadd.f32 %v388, %v2363
  %v2371 = vadd.f32 %v393, %v2367
  %v2372 = vtanh.pop %v2370
  %v2373 = vtanh.pop %v2371
  %v2374 = vmul.f32 %v2372, %v527
  %v2375 = vmul.f32 %v2373, %v527
  %v2376 = vsel %vm314, %v2374, 0.0
  %2377 = vadd.xlane.f32.xlu0 %v2376
  %v2378 = vpop.xlane.xlu0 %2377
  %v2379 = vsel %vm314, %v2375, 0.0
  %2380 = vadd.xlane.f32.xlu0 %v2379
  %v2381 = vpop.xlane.xlu0 %2380
  %v2384 = vlaneseq
  %v2385 = vshrl.u32 %v2384, 7
  %v2386 = vsub.s32 %v540, %v2385
  %v2387 = vrot.slane %v2378, %v2386
  %v2388 = vlaneseq
  %v2389 = vshrl.u32 %v2388, 7
  %v2390 = vsub.s32 %v540, %v2389
  %v2391 = vrot.slane %v2381, %v2390
  %v2392 = vsel %vm549, %v2391, %v2387
  %v2394 = vsel %vm552, %v2392, -inf
  %2395 = vmax.xlane.f32.xlu0 %v2394
  %v2396 = vpop.xlane.xlu0 %2395
  %v2398 = vlaneseq
  %v2399 = vshrl.u32 %v2398, 7
  %v2400 = vsub.s32 0, %v2399
  %v2401 = vrot.slane %v2396, %v2400
  %v2402 = vlaneseq
  %v2403 = vshrl.u32 %v2402, 7
  %v2404 = vsub.s32 1, %v2403
  %v2405 = vrot.slane %v2396, %v2404
  %v2408 = vsub.f32 %v2378, %v2401
  %v2409 = vsub.f32 %v2381, %v2405
  %v2410 = vmul.f32 %v2408, 1.442695
  %v2411 = vpow.pop %v2410
  %v2412 = vmul.f32 %v2409, 1.442695
  %v2413 = vpow.pop %v2412
  %2416 = vset.pattern.permute.xlu0 0
  %2417 = vperm.xlu0 %2416, %v2411
  %v2418 = vpop.permute.xlu0 %2417
  %2419 = vset.pattern.permute.xlu0 0
  %2420 = vperm.xlu0 %2419, %v2413
  %v2421 = vpop.permute.xlu0 %2420
  %v2422 = vlaneseq
  %v2423 = vshrl.u32 %v2422, 7
  %v2424 = vsub.s32 %v540, %v2423
  %v2425 = vrot.slane %v2418, %v2424
  %v2426 = vlaneseq
  %v2427 = vshrl.u32 %v2426, 7
  %v2428 = vsub.s32 %v540, %v2427
  %v2429 = vrot.slane %v2421, %v2428
  %v2430 = vsel %vm549, %v2429, %v2425
  %v2432 = vsel %vm552, %v2430, 0.0
  %2433 = vadd.xlane.f32.xlu0 %v2432
  %v2434 = vpop.xlane.xlu0 %2433
  %v2435 = vrcp.pop %v2434
  %v2437 = vlaneseq
  %v2438 = vshrl.u32 %v2437, 7
  %v2439 = vsub.s32 0, %v2438
  %v2440 = vrot.slane %v2435, %v2439
  %v2441 = vlaneseq
  %v2442 = vshrl.u32 %v2441, 7
  %v2443 = vsub.s32 1, %v2442
  %v2444 = vrot.slane %v2435, %v2443
  %v2447 = vmul.f32 %v2411, %v2440
  %v2448 = vmul.f32 %v2413, %v2444
  %2450 = vset.pattern.permute.xlu0 0
  %2451 = vperm.xlu0 %2450, %v2447
  %v2452 = vpop.permute.xlu0 %2451
  %2455 = vset.pattern.permute.xlu0 0
  %2456 = vperm.xlu0 %2455, %v2448
  %v2457 = vpop.permute.xlu0 %2456
  %v2459 = vmul.f32 %v2452, %v302
  %v2460 = vmul.f32 %v2457, %v307
  %v2461 = vsel %vm314, %v2459, 0.0
  %v2462 = vrot.slane %v2461, 4
  %v2463 = vadd.f32 %v2461, %v2462
  %v2464 = vrot.slane %v2463, 2
  %v2465 = vadd.f32 %v2463, %v2464
  %v2466 = vrot.slane %v2465, 1
  %v2467 = vadd.f32 %v2465, %v2466
  %v2468 = vsel %vm314, %v2460, 0.0
  %v2469 = vrot.slane %v2468, 4
  %v2470 = vadd.f32 %v2468, %v2469
  %v2471 = vrot.slane %v2470, 2
  %v2472 = vadd.f32 %v2470, %v2471
  %v2473 = vrot.slane %v2472, 1
  %v2474 = vadd.f32 %v2472, %v2473
  %s2475 = scalar_lea.vmem %s1, 10
  %v2476 = vld [vmem:[%s2475] sm:$0x3]
  %v2479 = vsel %vm549, %v2474, %v2467
  %2482 = vrot.lane.b32.xlu0 %v2476, 32
  %v2483 = vpop.permute.xlu0 %2482
  %v2485 = vsel %vm314, %v2479, %v2483
  %v2487 = vsel %vm67, %v2485, 0
  %2489 = vmatprep.subr.mxu0 0.0
  %2490 = vmatpush1.msra.mxu0 %v401
  %2491 = vmatprep.subr.mxu0 0.0
  %2492 = vmatpush1.msra.mxu0 %v402
  %2493 = vmatprep.subr.mxu0 0.0
  %2494 = vmatpush1.msra.mxu0 %v403
  %2495 = vmatprep.subr.mxu0 0.0
  %2496 = vmatpush1.msra.mxu0 %v404
  %2497 = vmatprep.subr.mxu0 0.0
  %2498 = vmatpush1.msra.mxu0 %v405
  %2499 = vmatprep.subr.mxu0 0.0
  %2500 = vmatpush1.msra.mxu0 %v406
  %2501 = vmatprep.subr.mxu0 0.0
  %2502 = vmatpush1.msra.mxu0 0.0
  %2503 = vmatprep.subr.mxu0 0.0
  %2504 = vmatpush1.msra.mxu0 0.0
  %2505 = vmatprep.subr.mxu0 0.0
  %2506 = vmatpush1.msra.mxu0 0.0
  %2507 = vmatprep.subr.mxu0 0.0
  %2508 = vmatpush1.msra.mxu0 0.0
  %2509 = vmatprep.subr.mxu0 0.0
  %2510 = vmatpush1.msra.mxu0 0.0
  %2511 = vmatprep.subr.mxu0 0.0
  %2512 = vmatpush1.msra.mxu0 0.0
  %2513 = vmatprep.subr.mxu0 0.0
  %2514 = vmatpush1.msra.mxu0 0.0
  %2515 = vmatprep.subr.mxu0 0.0
  %2516 = vmatpush1.msra.mxu0 0.0
  %2517 = vmatprep.subr.mxu0 0.0
  %2518 = vmatpush1.msra.mxu0 0.0
  %2519 = vmatprep.subr.mxu0 0.0
  %2520 = vmatpush1.msra.mxu0 0.0
  %2521 = vmatprep.subr.mxu0 0.0
  %2522 = vmatpush1.msra.mxu0 0.0
  %2523 = vmatprep.subr.mxu0 0.0
  %2524 = vmatpush1.msra.mxu0 0.0
  %2525 = vmatprep.subr.mxu0 0.0
  %2526 = vmatpush1.msra.mxu0 0.0
  %2527 = vmatprep.subr.mxu0 0.0
  %2528 = vmatpush1.msra.mxu0 0.0
  %2529 = vmatprep.subr.mxu0 0.0
  %2530 = vmatpush1.msra.mxu0 0.0
  %2531 = vmatprep.subr.mxu0 0.0
  %2532 = vmatpush1.msra.mxu0 0.0
  %2533 = vmatprep.subr.mxu0 0.0
  %2534 = vmatpush1.msra.mxu0 0.0
  %2535 = vmatprep.subr.mxu0 0.0
  %2536 = vmatpush1.msra.mxu0 0.0
  %2537 = vmatprep.subr.mxu0 0.0
  %2538 = vmatpush1.msra.mxu0 0.0
  %2539 = vmatprep.subr.mxu0 0.0
  %2540 = vmatpush1.msra.mxu0 0.0
  %2541 = vmatprep.subr.mxu0 0.0
  %2542 = vmatpush1.msra.mxu0 0.0
  %2543 = vmatprep.subr.mxu0 0.0
  %2544 = vmatpush1.msra.mxu0 0.0
  %2545 = vmatprep.subr.mxu0 0.0
  %2546 = vmatpush1.msra.mxu0 0.0
  %2547 = vmatprep.subr.mxu0 0.0
  %2548 = vmatpush1.msra.mxu0 0.0
  %2549 = vmatprep.subr.mxu0 0.0
  %2550 = vmatpush1.msra.mxu0 0.0
  %2551 = vmatprep.subr.mxu0 0.0
  %2552 = vmatpush1.msra.mxu0 0.0
  %2553 = vmatprep.mubr.f32.mxu0 0.0
  %2554 = vmatmul.mubr.f32.gmra.mrb[0].mxu0 %v2487
  %v2555 = vpop.f32.mrb[0].mxu0
  %v2556 = vadd.f32 %v648, %v2555
  %v2557 = vpop.f32.mrb[0].mxu0
  %2558 = vdwg.mxu0
  %v2559 = vtanh.pop %v2556
  %v2561 = vsel %vm314, %v2559, 0
  %2563 = vmatprep.subr.mxu0 0.0
  %2564 = vmatpush1.msra.mxu0 %v408
  %2565 = vmatprep.subr.mxu0 0.0
  %2566 = vmatpush1.msra.mxu0 %v409
  %2567 = vmatprep.subr.mxu0 0.0
  %2568 = vmatpush1.msra.mxu0 %v410
  %2569 = vmatprep.subr.mxu0 0.0
  %2570 = vmatpush1.msra.mxu0 %v411
  %2571 = vmatprep.subr.mxu0 0.0
  %2572 = vmatpush1.msra.mxu0 0.0
  %2573 = vmatprep.subr.mxu0 0.0
  %2574 = vmatpush1.msra.mxu0 0.0
  %2575 = vmatprep.subr.mxu0 0.0
  %2576 = vmatpush1.msra.mxu0 0.0
  %2577 = vmatprep.subr.mxu0 0.0
  %2578 = vmatpush1.msra.mxu0 0.0
  %2579 = vmatprep.subr.mxu0 0.0
  %2580 = vmatpush1.msra.mxu0 0.0
  %2581 = vmatprep.subr.mxu0 0.0
  %2582 = vmatpush1.msra.mxu0 0.0
  %2583 = vmatprep.subr.mxu0 0.0
  %2584 = vmatpush1.msra.mxu0 0.0
  %2585 = vmatprep.subr.mxu0 0.0
  %2586 = vmatpush1.msra.mxu0 0.0
  %2587 = vmatprep.subr.mxu0 0.0
  %2588 = vmatpush1.msra.mxu0 0.0
  %2589 = vmatprep.subr.mxu0 0.0
  %2590 = vmatpush1.msra.mxu0 0.0
  %2591 = vmatprep.subr.mxu0 0.0
  %2592 = vmatpush1.msra.mxu0 0.0
  %2593 = vmatprep.subr.mxu0 0.0
  %2594 = vmatpush1.msra.mxu0 0.0
  %2595 = vmatprep.subr.mxu0 0.0
  %2596 = vmatpush1.msra.mxu0 0.0
  %2597 = vmatprep.subr.mxu0 0.0
  %2598 = vmatpush1.msra.mxu0 0.0
  %2599 = vmatprep.subr.mxu0 0.0
  %2600 = vmatpush1.msra.mxu0 0.0
  %2601 = vmatprep.subr.mxu0 0.0
  %2602 = vmatpush1.msra.mxu0 0.0
  %2603 = vmatprep.subr.mxu0 0.0
  %2604 = vmatpush1.msra.mxu0 0.0
  %2605 = vmatprep.subr.mxu0 0.0
  %2606 = vmatpush1.msra.mxu0 0.0
  %2607 = vmatprep.subr.mxu0 0.0
  %2608 = vmatpush1.msra.mxu0 0.0
  %2609 = vmatprep.subr.mxu0 0.0
  %2610 = vmatpush1.msra.mxu0 0.0
  %2611 = vmatprep.subr.mxu0 0.0
  %2612 = vmatpush1.msra.mxu0 0.0
  %2613 = vmatprep.subr.mxu0 0.0
  %2614 = vmatpush1.msra.mxu0 0.0
  %2615 = vmatprep.subr.mxu0 0.0
  %2616 = vmatpush1.msra.mxu0 0.0
  %2617 = vmatprep.subr.mxu0 0.0
  %2618 = vmatpush1.msra.mxu0 0.0
  %2619 = vmatprep.subr.mxu0 0.0
  %2620 = vmatpush1.msra.mxu0 0.0
  %2621 = vmatprep.subr.mxu0 0.0
  %2622 = vmatpush1.msra.mxu0 0.0
  %2623 = vmatprep.subr.mxu0 0.0
  %2624 = vmatpush1.msra.mxu0 0.0
  %2625 = vmatprep.subr.mxu0 0.0
  %2626 = vmatpush1.msra.mxu0 0.0
  %2627 = vmatprep.mubr.f32.mxu0 0.0
  %2628 = vmatmul.mubr.f32.gmra.mrb[0].mxu0 %v2561
  %v2629 = vpop.f32.mrb[0].mxu0
  %v2630 = vadd.f32 %v728, %v2629
  %v2631 = vpop.f32.mrb[0].mxu0
  %2632 = vdwg.mxu0
  %2633 = vmatprep.subr.mxu0 0.0
  %2634 = vmatpush1.msra.mxu0 %v397
  %2635 = vmatprep.subr.mxu0 0.0
  %2636 = vmatpush1.msra.mxu0 %v398
  %2637 = vmatprep.subr.mxu0 0.0
  %2638 = vmatpush1.msra.mxu0 %v399
  %2639 = vmatprep.subr.mxu0 0.0
  %2640 = vmatpush1.msra.mxu0 %v400
  %2641 = vmatprep.subr.mxu0 0.0
  %2642 = vmatpush1.msra.mxu0 0.0
  %2643 = vmatprep.subr.mxu0 0.0
  %2644 = vmatpush1.msra.mxu0 0.0
  %2645 = vmatprep.subr.mxu0 0.0
  %2646 = vmatpush1.msra.mxu0 0.0
  %2647 = vmatprep.subr.mxu0 0.0
  %2648 = vmatpush1.msra.mxu0 0.0
  %2649 = vmatprep.subr.mxu0 0.0
  %2650 = vmatpush1.msra.mxu0 0.0
  %2651 = vmatprep.subr.mxu0 0.0
  %2652 = vmatpush1.msra.mxu0 0.0
  %2653 = vmatprep.subr.mxu0 0.0
  %2654 = vmatpush1.msra.mxu0 0.0
  %2655 = vmatprep.subr.mxu0 0.0
  %2656 = vmatpush1.msra.mxu0 0.0
  %2657 = vmatprep.subr.mxu0 0.0
  %2658 = vmatpush1.msra.mxu0 0.0
  %2659 = vmatprep.subr.mxu0 0.0
  %2660 = vmatpush1.msra.mxu0 0.0
  %2661 = vmatprep.subr.mxu0 0.0
  %2662 = vmatpush1.msra.mxu0 0.0
  %2663 = vmatprep.subr.mxu0 0.0
  %2664 = vmatpush1.msra.mxu0 0.0
  %2665 = vmatprep.subr.mxu0 0.0
  %2666 = vmatpush1.msra.mxu0 0.0
  %2667 = vmatprep.subr.mxu0 0.0
  %2668 = vmatpush1.msra.mxu0 0.0
  %2669 = vmatprep.subr.mxu0 0.0
  %2670 = vmatpush1.msra.mxu0 0.0
  %2671 = vmatprep.subr.mxu0 0.0
  %2672 = vmatpush1.msra.mxu0 0.0
  %2673 = vmatprep.subr.mxu0 0.0
  %2674 = vmatpush1.msra.mxu0 0.0
  %2675 = vmatprep.subr.mxu0 0.0
  %2676 = vmatpush1.msra.mxu0 0.0
  %2677 = vmatprep.subr.mxu0 0.0
  %2678 = vmatpush1.msra.mxu0 0.0
  %2679 = vmatprep.subr.mxu0 0.0
  %2680 = vmatpush1.msra.mxu0 0.0
  %2681 = vmatprep.subr.mxu0 0.0
  %2682 = vmatpush1.msra.mxu0 0.0
  %2683 = vmatprep.subr.mxu0 0.0
  %2684 = vmatpush1.msra.mxu0 0.0
  %2685 = vmatprep.subr.mxu0 0.0
  %2686 = vmatpush1.msra.mxu0 0.0
  %2687 = vmatprep.subr.mxu0 0.0
  %2688 = vmatpush1.msra.mxu0 0.0
  %2689 = vmatprep.subr.mxu0 0.0
  %2690 = vmatpush1.msra.mxu0 0.0
  %2691 = vmatprep.subr.mxu0 0.0
  %2692 = vmatpush1.msra.mxu0 0.0
  %2693 = vmatprep.subr.mxu0 0.0
  %2694 = vmatpush1.msra.mxu0 0.0
  %2695 = vmatprep.subr.mxu0 0.0
  %2696 = vmatpush1.msra.mxu0 0.0
  %2697 = vmatprep.mubr.f32.mxu0 0.0
  %2698 = vmatmul.mubr.f32.gmra.mrb[0].mxu0 %v2561
  %v2699 = vpop.f32.mrb[0].mxu0
  %v2700 = vadd.f32 0.0, %v2699
  %v2701 = vpop.f32.mrb[0].mxu0
  %2702 = vdwg.mxu0
  %v2705 = vunpack.c.l.s4 1966171168
  %v2706 = vunpack.c.0.s8 %v2705
  %v2707 = vlaneseq
  %v2708 = vshrl.u32 %v2707, 7
  %v2709 = vsub.s32 %v2706, %v2708
  %v2710 = vrot.slane %v2700, %v2709
  %v2711 = vcombine.high %v2710, %v2710
  %v2713 = vunpack.c.l.s4 1966171168
  %v2714 = vunpack.c.0.s8 %v2713
  %v2715 = vlaneseq
  %v2716 = vshrl.u32 %v2715, 7
  %v2717 = vsub.s32 %v2714, %v2716
  %v2718 = vrot.slane %v2710, %v2717
  %v2720 = vunpack.c.l.s4 1966171168
  %v2721 = vunpack.c.0.s8 %v2720
  %v2722 = vlaneseq
  %v2723 = vshrl.u32 %v2722, 7
  %v2724 = vsub.s32 %v2721, %v2723
  %v2725 = vrot.slane %v2711, %v2724
  %v2726 = vlaneseq
  %v2727 = vshrl.u32 %v2726, 7
  %v2728 = vsub.s32 0, %v2727
  %v2729 = vrot.slane %v2718, %v2728
  %v2730 = vlaneseq
  %v2731 = vshrl.u32 %v2730, 7
  %v2732 = vsub.s32 0, %v2731
  %v2733 = vrot.slane %v2725, %v2732
  %v2736 = vadd.f32 %v388, %v2729
  %v2737 = vadd.f32 %v393, %v2733
  %v2738 = vtanh.pop %v2736
  %v2739 = vtanh.pop %v2737
  %v2740 = vmul.f32 %v2738, %v527
  %v2741 = vmul.f32 %v2739, %v527
  %v2742 = vsel %vm314, %v2740, 0.0
  %2743 = vadd.xlane.f32.xlu0 %v2742
  %v2744 = vpop.xlane.xlu0 %2743
  %v2745 = vsel %vm314, %v2741, 0.0
  %2746 = vadd.xlane.f32.xlu0 %v2745
  %v2747 = vpop.xlane.xlu0 %2746
  %v2750 = vlaneseq
  %v2751 = vshrl.u32 %v2750, 7
  %v2752 = vsub.s32 %v540, %v2751
  %v2753 = vrot.slane %v2744, %v2752
  %v2754 = vlaneseq
  %v2755 = vshrl.u32 %v2754, 7
  %v2756 = vsub.s32 %v540, %v2755
  %v2757 = vrot.slane %v2747, %v2756
  %v2758 = vsel %vm549, %v2757, %v2753
  %v2760 = vsel %vm552, %v2758, -inf
  %2761 = vmax.xlane.f32.xlu0 %v2760
  %v2762 = vpop.xlane.xlu0 %2761
  %v2764 = vlaneseq
  %v2765 = vshrl.u32 %v2764, 7
  %v2766 = vsub.s32 0, %v2765
  %v2767 = vrot.slane %v2762, %v2766
  %v2768 = vlaneseq
  %v2769 = vshrl.u32 %v2768, 7
  %v2770 = vsub.s32 1, %v2769
  %v2771 = vrot.slane %v2762, %v2770
  %v2774 = vsub.f32 %v2744, %v2767
  %v2775 = vsub.f32 %v2747, %v2771
  %v2776 = vmul.f32 %v2774, 1.442695
  %v2777 = vpow.pop %v2776
  %v2778 = vmul.f32 %v2775, 1.442695
  %v2779 = vpow.pop %v2778
  %2782 = vset.pattern.permute.xlu0 0
  %2783 = vperm.xlu0 %2782, %v2777
  %v2784 = vpop.permute.xlu0 %2783
  %2785 = vset.pattern.permute.xlu0 0
  %2786 = vperm.xlu0 %2785, %v2779
  %v2787 = vpop.permute.xlu0 %2786
  %v2788 = vlaneseq
  %v2789 = vshrl.u32 %v2788, 7
  %v2790 = vsub.s32 %v540, %v2789
  %v2791 = vrot.slane %v2784, %v2790
  %v2792 = vlaneseq
  %v2793 = vshrl.u32 %v2792, 7
  %v2794 = vsub.s32 %v540, %v2793
  %v2795 = vrot.slane %v2787, %v2794
  %v2796 = vsel %vm549, %v2795, %v2791
  %v2798 = vsel %vm552, %v2796, 0.0
  %2799 = vadd.xlane.f32.xlu0 %v2798
  %v2800 = vpop.xlane.xlu0 %2799
  %v2801 = vrcp.pop %v2800
  %v2803 = vlaneseq
  %v2804 = vshrl.u32 %v2803, 7
  %v2805 = vsub.s32 0, %v2804
  %v2806 = vrot.slane %v2801, %v2805
  %v2807 = vlaneseq
  %v2808 = vshrl.u32 %v2807, 7
  %v2809 = vsub.s32 1, %v2808
  %v2810 = vrot.slane %v2801, %v2809
  %v2813 = vmul.f32 %v2777, %v2806
  %v2814 = vmul.f32 %v2779, %v2810
  %2816 = vset.pattern.permute.xlu0 0
  %2817 = vperm.xlu0 %2816, %v2813
  %v2818 = vpop.permute.xlu0 %2817
  %2821 = vset.pattern.permute.xlu0 0
  %2822 = vperm.xlu0 %2821, %v2814
  %v2823 = vpop.permute.xlu0 %2822
  %v2825 = vmul.f32 %v2818, %v302
  %v2826 = vmul.f32 %v2823, %v307
  %v2827 = vsel %vm314, %v2825, 0.0
  %v2828 = vrot.slane %v2827, 4
  %v2829 = vadd.f32 %v2827, %v2828
  %v2830 = vrot.slane %v2829, 2
  %v2831 = vadd.f32 %v2829, %v2830
  %v2832 = vrot.slane %v2831, 1
  %v2833 = vadd.f32 %v2831, %v2832
  %v2834 = vsel %vm314, %v2826, 0.0
  %v2835 = vrot.slane %v2834, 4
  %v2836 = vadd.f32 %v2834, %v2835
  %v2837 = vrot.slane %v2836, 2
  %v2838 = vadd.f32 %v2836, %v2837
  %v2839 = vrot.slane %v2838, 1
  %v2840 = vadd.f32 %v2838, %v2839
  %s2841 = scalar_lea.vmem %s1, 12
  %v2842 = vld [vmem:[%s2841] sm:$0x3]
  %v2845 = vsel %vm549, %v2840, %v2833
  %2848 = vrot.lane.b32.xlu0 %v2842, 32
  %v2849 = vpop.permute.xlu0 %2848
  %v2851 = vsel %vm314, %v2845, %v2849
  %v2853 = vsel %vm67, %v2851, 0
  %2855 = vmatprep.subr.mxu0 0.0
  %2856 = vmatpush1.msra.mxu0 %v401
  %2857 = vmatprep.subr.mxu0 0.0
  %2858 = vmatpush1.msra.mxu0 %v402
  %2859 = vmatprep.subr.mxu0 0.0
  %2860 = vmatpush1.msra.mxu0 %v403
  %2861 = vmatprep.subr.mxu0 0.0
  %2862 = vmatpush1.msra.mxu0 %v404
  %2863 = vmatprep.subr.mxu0 0.0
  %2864 = vmatpush1.msra.mxu0 %v405
  %2865 = vmatprep.subr.mxu0 0.0
  %2866 = vmatpush1.msra.mxu0 %v406
  %2867 = vmatprep.subr.mxu0 0.0
  %2868 = vmatpush1.msra.mxu0 0.0
  %2869 = vmatprep.subr.mxu0 0.0
  %2870 = vmatpush1.msra.mxu0 0.0
  %2871 = vmatprep.subr.mxu0 0.0
  %2872 = vmatpush1.msra.mxu0 0.0
  %2873 = vmatprep.subr.mxu0 0.0
  %2874 = vmatpush1.msra.mxu0 0.0
  %2875 = vmatprep.subr.mxu0 0.0
  %2876 = vmatpush1.msra.mxu0 0.0
  %2877 = vmatprep.subr.mxu0 0.0
  %2878 = vmatpush1.msra.mxu0 0.0
  %2879 = vmatprep.subr.mxu0 0.0
  %2880 = vmatpush1.msra.mxu0 0.0
  %2881 = vmatprep.subr.mxu0 0.0
  %2882 = vmatpush1.msra.mxu0 0.0
  %2883 = vmatprep.subr.mxu0 0.0
  %2884 = vmatpush1.msra.mxu0 0.0
  %2885 = vmatprep.subr.mxu0 0.0
  %2886 = vmatpush1.msra.mxu0 0.0
  %2887 = vmatprep.subr.mxu0 0.0
  %2888 = vmatpush1.msra.mxu0 0.0
  %2889 = vmatprep.subr.mxu0 0.0
  %2890 = vmatpush1.msra.mxu0 0.0
  %2891 = vmatprep.subr.mxu0 0.0
  %2892 = vmatpush1.msra.mxu0 0.0
  %2893 = vmatprep.subr.mxu0 0.0
  %2894 = vmatpush1.msra.mxu0 0.0
  %2895 = vmatprep.subr.mxu0 0.0
  %2896 = vmatpush1.msra.mxu0 0.0
  %2897 = vmatprep.subr.mxu0 0.0
  %2898 = vmatpush1.msra.mxu0 0.0
  %2899 = vmatprep.subr.mxu0 0.0
  %2900 = vmatpush1.msra.mxu0 0.0
  %2901 = vmatprep.subr.mxu0 0.0
  %2902 = vmatpush1.msra.mxu0 0.0
  %2903 = vmatprep.subr.mxu0 0.0
  %2904 = vmatpush1.msra.mxu0 0.0
  %2905 = vmatprep.subr.mxu0 0.0
  %2906 = vmatpush1.msra.mxu0 0.0
  %2907 = vmatprep.subr.mxu0 0.0
  %2908 = vmatpush1.msra.mxu0 0.0
  %2909 = vmatprep.subr.mxu0 0.0
  %2910 = vmatpush1.msra.mxu0 0.0
  %2911 = vmatprep.subr.mxu0 0.0
  %2912 = vmatpush1.msra.mxu0 0.0
  %2913 = vmatprep.subr.mxu0 0.0
  %2914 = vmatpush1.msra.mxu0 0.0
  %2915 = vmatprep.subr.mxu0 0.0
  %2916 = vmatpush1.msra.mxu0 0.0
  %2917 = vmatprep.subr.mxu0 0.0
  %2918 = vmatpush1.msra.mxu0 0.0
  %2919 = vmatprep.mubr.f32.mxu0 0.0
  %2920 = vmatmul.mubr.f32.gmra.mrb[0].mxu0 %v2853
  %v2921 = vpop.f32.mrb[0].mxu0
  %v2922 = vadd.f32 %v648, %v2921
  %v2923 = vpop.f32.mrb[0].mxu0
  %2924 = vdwg.mxu0
  %v2925 = vtanh.pop %v2922
  %v2927 = vsel %vm314, %v2925, 0
  %2929 = vmatprep.subr.mxu0 0.0
  %2930 = vmatpush1.msra.mxu0 %v408
  %2931 = vmatprep.subr.mxu0 0.0
  %2932 = vmatpush1.msra.mxu0 %v409
  %2933 = vmatprep.subr.mxu0 0.0
  %2934 = vmatpush1.msra.mxu0 %v410
  %2935 = vmatprep.subr.mxu0 0.0
  %2936 = vmatpush1.msra.mxu0 %v411
  %2937 = vmatprep.subr.mxu0 0.0
  %2938 = vmatpush1.msra.mxu0 0.0
  %2939 = vmatprep.subr.mxu0 0.0
  %2940 = vmatpush1.msra.mxu0 0.0
  %2941 = vmatprep.subr.mxu0 0.0
  %2942 = vmatpush1.msra.mxu0 0.0
  %2943 = vmatprep.subr.mxu0 0.0
  %2944 = vmatpush1.msra.mxu0 0.0
  %2945 = vmatprep.subr.mxu0 0.0
  %2946 = vmatpush1.msra.mxu0 0.0
  %2947 = vmatprep.subr.mxu0 0.0
  %2948 = vmatpush1.msra.mxu0 0.0
  %2949 = vmatprep.subr.mxu0 0.0
  %2950 = vmatpush1.msra.mxu0 0.0
  %2951 = vmatprep.subr.mxu0 0.0
  %2952 = vmatpush1.msra.mxu0 0.0
  %2953 = vmatprep.subr.mxu0 0.0
  %2954 = vmatpush1.msra.mxu0 0.0
  %2955 = vmatprep.subr.mxu0 0.0
  %2956 = vmatpush1.msra.mxu0 0.0
  %2957 = vmatprep.subr.mxu0 0.0
  %2958 = vmatpush1.msra.mxu0 0.0
  %2959 = vmatprep.subr.mxu0 0.0
  %2960 = vmatpush1.msra.mxu0 0.0
  %2961 = vmatprep.subr.mxu0 0.0
  %2962 = vmatpush1.msra.mxu0 0.0
  %2963 = vmatprep.subr.mxu0 0.0
  %2964 = vmatpush1.msra.mxu0 0.0
  %2965 = vmatprep.subr.mxu0 0.0
  %2966 = vmatpush1.msra.mxu0 0.0
  %2967 = vmatprep.subr.mxu0 0.0
  %2968 = vmatpush1.msra.mxu0 0.0
  %2969 = vmatprep.subr.mxu0 0.0
  %2970 = vmatpush1.msra.mxu0 0.0
  %2971 = vmatprep.subr.mxu0 0.0
  %2972 = vmatpush1.msra.mxu0 0.0
  %2973 = vmatprep.subr.mxu0 0.0
  %2974 = vmatpush1.msra.mxu0 0.0
  %2975 = vmatprep.subr.mxu0 0.0
  %2976 = vmatpush1.msra.mxu0 0.0
  %2977 = vmatprep.subr.mxu0 0.0
  %2978 = vmatpush1.msra.mxu0 0.0
  %2979 = vmatprep.subr.mxu0 0.0
  %2980 = vmatpush1.msra.mxu0 0.0
  %2981 = vmatprep.subr.mxu0 0.0
  %2982 = vmatpush1.msra.mxu0 0.0
  %2983 = vmatprep.subr.mxu0 0.0
  %2984 = vmatpush1.msra.mxu0 0.0
  %2985 = vmatprep.subr.mxu0 0.0
  %2986 = vmatpush1.msra.mxu0 0.0
  %2987 = vmatprep.subr.mxu0 0.0
  %2988 = vmatpush1.msra.mxu0 0.0
  %2989 = vmatprep.subr.mxu0 0.0
  %2990 = vmatpush1.msra.mxu0 0.0
  %2991 = vmatprep.subr.mxu0 0.0
  %2992 = vmatpush1.msra.mxu0 0.0
  %2993 = vmatprep.mubr.f32.mxu0 0.0
  %2994 = vmatmul.mubr.f32.gmra.mrb[0].mxu0 %v2927
  %v2995 = vpop.f32.mrb[0].mxu0
  %v2996 = vadd.f32 %v728, %v2995
  %v2997 = vpop.f32.mrb[0].mxu0
  %2998 = vdwg.mxu0
  %2999 = vmatprep.subr.mxu0 0.0
  %3000 = vmatpush1.msra.mxu0 %v397
  %3001 = vmatprep.subr.mxu0 0.0
  %3002 = vmatpush1.msra.mxu0 %v398
  %3003 = vmatprep.subr.mxu0 0.0
  %3004 = vmatpush1.msra.mxu0 %v399
  %3005 = vmatprep.subr.mxu0 0.0
  %3006 = vmatpush1.msra.mxu0 %v400
  %3007 = vmatprep.subr.mxu0 0.0
  %3008 = vmatpush1.msra.mxu0 0.0
  %3009 = vmatprep.subr.mxu0 0.0
  %3010 = vmatpush1.msra.mxu0 0.0
  %3011 = vmatprep.subr.mxu0 0.0
  %3012 = vmatpush1.msra.mxu0 0.0
  %3013 = vmatprep.subr.mxu0 0.0
  %3014 = vmatpush1.msra.mxu0 0.0
  %3015 = vmatprep.subr.mxu0 0.0
  %3016 = vmatpush1.msra.mxu0 0.0
  %3017 = vmatprep.subr.mxu0 0.0
  %3018 = vmatpush1.msra.mxu0 0.0
  %3019 = vmatprep.subr.mxu0 0.0
  %3020 = vmatpush1.msra.mxu0 0.0
  %3021 = vmatprep.subr.mxu0 0.0
  %3022 = vmatpush1.msra.mxu0 0.0
  %3023 = vmatprep.subr.mxu0 0.0
  %3024 = vmatpush1.msra.mxu0 0.0
  %3025 = vmatprep.subr.mxu0 0.0
  %3026 = vmatpush1.msra.mxu0 0.0
  %3027 = vmatprep.subr.mxu0 0.0
  %3028 = vmatpush1.msra.mxu0 0.0
  %3029 = vmatprep.subr.mxu0 0.0
  %3030 = vmatpush1.msra.mxu0 0.0
  %3031 = vmatprep.subr.mxu0 0.0
  %3032 = vmatpush1.msra.mxu0 0.0
  %3033 = vmatprep.subr.mxu0 0.0
  %3034 = vmatpush1.msra.mxu0 0.0
  %3035 = vmatprep.subr.mxu0 0.0
  %3036 = vmatpush1.msra.mxu0 0.0
  %3037 = vmatprep.subr.mxu0 0.0
  %3038 = vmatpush1.msra.mxu0 0.0
  %3039 = vmatprep.subr.mxu0 0.0
  %3040 = vmatpush1.msra.mxu0 0.0
  %3041 = vmatprep.subr.mxu0 0.0
  %3042 = vmatpush1.msra.mxu0 0.0
  %3043 = vmatprep.subr.mxu0 0.0
  %3044 = vmatpush1.msra.mxu0 0.0
  %3045 = vmatprep.subr.mxu0 0.0
  %3046 = vmatpush1.msra.mxu0 0.0
  %3047 = vmatprep.subr.mxu0 0.0
  %3048 = vmatpush1.msra.mxu0 0.0
  %3049 = vmatprep.subr.mxu0 0.0
  %3050 = vmatpush1.msra.mxu0 0.0
  %3051 = vmatprep.subr.mxu0 0.0
  %3052 = vmatpush1.msra.mxu0 0.0
  %3053 = vmatprep.subr.mxu0 0.0
  %3054 = vmatpush1.msra.mxu0 0.0
  %3055 = vmatprep.subr.mxu0 0.0
  %3056 = vmatpush1.msra.mxu0 0.0
  %3057 = vmatprep.subr.mxu0 0.0
  %3058 = vmatpush1.msra.mxu0 0.0
  %3059 = vmatprep.subr.mxu0 0.0
  %3060 = vmatpush1.msra.mxu0 0.0
  %3061 = vmatprep.subr.mxu0 0.0
  %3062 = vmatpush1.msra.mxu0 0.0
  %3063 = vmatprep.mubr.f32.mxu0 0.0
  %3064 = vmatmul.mubr.f32.gmra.mrb[0].mxu0 %v2927
  %v3065 = vpop.f32.mrb[0].mxu0
  %v3066 = vadd.f32 0.0, %v3065
  %v3067 = vpop.f32.mrb[0].mxu0
  %3068 = vdwg.mxu0
  %v3071 = vunpack.c.l.s4 1966171168
  %v3072 = vunpack.c.0.s8 %v3071
  %v3073 = vlaneseq
  %v3074 = vshrl.u32 %v3073, 7
  %v3075 = vsub.s32 %v3072, %v3074
  %v3076 = vrot.slane %v3066, %v3075
  %v3077 = vcombine.high %v3076, %v3076
  %v3079 = vunpack.c.l.s4 1966171168
  %v3080 = vunpack.c.0.s8 %v3079
  %v3081 = vlaneseq
  %v3082 = vshrl.u32 %v3081, 7
  %v3083 = vsub.s32 %v3080, %v3082
  %v3084 = vrot.slane %v3076, %v3083
  %v3086 = vunpack.c.l.s4 1966171168
  %v3087 = vunpack.c.0.s8 %v3086
  %v3088 = vlaneseq
  %v3089 = vshrl.u32 %v3088, 7
  %v3090 = vsub.s32 %v3087, %v3089
  %v3091 = vrot.slane %v3077, %v3090
  %v3092 = vlaneseq
  %v3093 = vshrl.u32 %v3092, 7
  %v3094 = vsub.s32 0, %v3093
  %v3095 = vrot.slane %v3084, %v3094
  %v3096 = vlaneseq
  %v3097 = vshrl.u32 %v3096, 7
  %v3098 = vsub.s32 0, %v3097
  %v3099 = vrot.slane %v3091, %v3098
  %v3102 = vadd.f32 %v388, %v3095
  %v3103 = vadd.f32 %v393, %v3099
  %v3104 = vtanh.pop %v3102
  %v3105 = vtanh.pop %v3103
  %v3106 = vmul.f32 %v3104, %v527
  %v3107 = vmul.f32 %v3105, %v527
  %v3108 = vsel %vm314, %v3106, 0.0
  %3109 = vadd.xlane.f32.xlu0 %v3108
  %v3110 = vpop.xlane.xlu0 %3109
  %v3111 = vsel %vm314, %v3107, 0.0
  %3112 = vadd.xlane.f32.xlu0 %v3111
  %v3113 = vpop.xlane.xlu0 %3112
  %v3116 = vlaneseq
  %v3117 = vshrl.u32 %v3116, 7
  %v3118 = vsub.s32 %v540, %v3117
  %v3119 = vrot.slane %v3110, %v3118
  %v3120 = vlaneseq
  %v3121 = vshrl.u32 %v3120, 7
  %v3122 = vsub.s32 %v540, %v3121
  %v3123 = vrot.slane %v3113, %v3122
  %v3124 = vsel %vm549, %v3123, %v3119
  %v3126 = vsel %vm552, %v3124, -inf
  %3127 = vmax.xlane.f32.xlu0 %v3126
  %v3128 = vpop.xlane.xlu0 %3127
  %v3130 = vlaneseq
  %v3131 = vshrl.u32 %v3130, 7
  %v3132 = vsub.s32 0, %v3131
  %v3133 = vrot.slane %v3128, %v3132
  %v3134 = vlaneseq
  %v3135 = vshrl.u32 %v3134, 7
  %v3136 = vsub.s32 1, %v3135
  %v3137 = vrot.slane %v3128, %v3136
  %v3140 = vsub.f32 %v3110, %v3133
  %v3141 = vsub.f32 %v3113, %v3137
  %v3142 = vmul.f32 %v3140, 1.442695
  %v3143 = vpow.pop %v3142
  %v3144 = vmul.f32 %v3141, 1.442695
  %v3145 = vpow.pop %v3144
  %3148 = vset.pattern.permute.xlu0 0
  %3149 = vperm.xlu0 %3148, %v3143
  %v3150 = vpop.permute.xlu0 %3149
  %3151 = vset.pattern.permute.xlu0 0
  %3152 = vperm.xlu0 %3151, %v3145
  %v3153 = vpop.permute.xlu0 %3152
  %v3154 = vlaneseq
  %v3155 = vshrl.u32 %v3154, 7
  %v3156 = vsub.s32 %v540, %v3155
  %v3157 = vrot.slane %v3150, %v3156
  %v3158 = vlaneseq
  %v3159 = vshrl.u32 %v3158, 7
  %v3160 = vsub.s32 %v540, %v3159
  %v3161 = vrot.slane %v3153, %v3160
  %v3162 = vsel %vm549, %v3161, %v3157
  %v3164 = vsel %vm552, %v3162, 0.0
  %3165 = vadd.xlane.f32.xlu0 %v3164
  %v3166 = vpop.xlane.xlu0 %3165
  %v3167 = vrcp.pop %v3166
  %v3169 = vlaneseq
  %v3170 = vshrl.u32 %v3169, 7
  %v3171 = vsub.s32 0, %v3170
  %v3172 = vrot.slane %v3167, %v3171
  %v3173 = vlaneseq
  %v3174 = vshrl.u32 %v3173, 7
  %v3175 = vsub.s32 1, %v3174
  %v3176 = vrot.slane %v3167, %v3175
  %v3179 = vmul.f32 %v3143, %v3172
  %v3180 = vmul.f32 %v3145, %v3176
  %3182 = vset.pattern.permute.xlu0 0
  %3183 = vperm.xlu0 %3182, %v3179
  %v3184 = vpop.permute.xlu0 %3183
  %3187 = vset.pattern.permute.xlu0 0
  %3188 = vperm.xlu0 %3187, %v3180
  %v3189 = vpop.permute.xlu0 %3188
  %v3191 = vmul.f32 %v3184, %v302
  %v3192 = vmul.f32 %v3189, %v307
  %v3193 = vsel %vm314, %v3191, 0.0
  %v3194 = vrot.slane %v3193, 4
  %v3195 = vadd.f32 %v3193, %v3194
  %v3196 = vrot.slane %v3195, 2
  %v3197 = vadd.f32 %v3195, %v3196
  %v3198 = vrot.slane %v3197, 1
  %v3199 = vadd.f32 %v3197, %v3198
  %v3200 = vsel %vm314, %v3192, 0.0
  %v3201 = vrot.slane %v3200, 4
  %v3202 = vadd.f32 %v3200, %v3201
  %v3203 = vrot.slane %v3202, 2
  %v3204 = vadd.f32 %v3202, %v3203
  %v3205 = vrot.slane %v3204, 1
  %v3206 = vadd.f32 %v3204, %v3205
  %s3207 = scalar_lea.vmem %s1, 14
  %v3208 = vld [vmem:[%s3207] sm:$0x3]
  %v3211 = vsel %vm549, %v3206, %v3199
  %3214 = vrot.lane.b32.xlu0 %v3208, 32
  %v3215 = vpop.permute.xlu0 %3214
  %v3217 = vsel %vm314, %v3211, %v3215
  %v3219 = vsel %vm67, %v3217, 0
  %3221 = vmatprep.subr.mxu0 0.0
  %3222 = vmatpush1.msra.mxu0 %v401
  %3223 = vmatprep.subr.mxu0 0.0
  %3224 = vmatpush1.msra.mxu0 %v402
  %3225 = vmatprep.subr.mxu0 0.0
  %3226 = vmatpush1.msra.mxu0 %v403
  %3227 = vmatprep.subr.mxu0 0.0
  %3228 = vmatpush1.msra.mxu0 %v404
  %3229 = vmatprep.subr.mxu0 0.0
  %3230 = vmatpush1.msra.mxu0 %v405
  %3231 = vmatprep.subr.mxu0 0.0
  %3232 = vmatpush1.msra.mxu0 %v406
  %3233 = vmatprep.subr.mxu0 0.0
  %3234 = vmatpush1.msra.mxu0 0.0
  %3235 = vmatprep.subr.mxu0 0.0
  %3236 = vmatpush1.msra.mxu0 0.0
  %3237 = vmatprep.subr.mxu0 0.0
  %3238 = vmatpush1.msra.mxu0 0.0
  %3239 = vmatprep.subr.mxu0 0.0
  %3240 = vmatpush1.msra.mxu0 0.0
  %3241 = vmatprep.subr.mxu0 0.0
  %3242 = vmatpush1.msra.mxu0 0.0
  %3243 = vmatprep.subr.mxu0 0.0
  %3244 = vmatpush1.msra.mxu0 0.0
  %3245 = vmatprep.subr.mxu0 0.0
  %3246 = vmatpush1.msra.mxu0 0.0
  %3247 = vmatprep.subr.mxu0 0.0
  %3248 = vmatpush1.msra.mxu0 0.0
  %3249 = vmatprep.subr.mxu0 0.0
  %3250 = vmatpush1.msra.mxu0 0.0
  %3251 = vmatprep.subr.mxu0 0.0
  %3252 = vmatpush1.msra.mxu0 0.0
  %3253 = vmatprep.subr.mxu0 0.0
  %3254 = vmatpush1.msra.mxu0 0.0
  %3255 = vmatprep.subr.mxu0 0.0
  %3256 = vmatpush1.msra.mxu0 0.0
  %3257 = vmatprep.subr.mxu0 0.0
  %3258 = vmatpush1.msra.mxu0 0.0
  %3259 = vmatprep.subr.mxu0 0.0
  %3260 = vmatpush1.msra.mxu0 0.0
  %3261 = vmatprep.subr.mxu0 0.0
  %3262 = vmatpush1.msra.mxu0 0.0
  %3263 = vmatprep.subr.mxu0 0.0
  %3264 = vmatpush1.msra.mxu0 0.0
  %3265 = vmatprep.subr.mxu0 0.0
  %3266 = vmatpush1.msra.mxu0 0.0
  %3267 = vmatprep.subr.mxu0 0.0
  %3268 = vmatpush1.msra.mxu0 0.0
  %3269 = vmatprep.subr.mxu0 0.0
  %3270 = vmatpush1.msra.mxu0 0.0
  %3271 = vmatprep.subr.mxu0 0.0
  %3272 = vmatpush1.msra.mxu0 0.0
  %3273 = vmatprep.subr.mxu0 0.0
  %3274 = vmatpush1.msra.mxu0 0.0
  %3275 = vmatprep.subr.mxu0 0.0
  %3276 = vmatpush1.msra.mxu0 0.0
  %3277 = vmatprep.subr.mxu0 0.0
  %3278 = vmatpush1.msra.mxu0 0.0
  %3279 = vmatprep.subr.mxu0 0.0
  %3280 = vmatpush1.msra.mxu0 0.0
  %3281 = vmatprep.subr.mxu0 0.0
  %3282 = vmatpush1.msra.mxu0 0.0
  %3283 = vmatprep.subr.mxu0 0.0
  %3284 = vmatpush1.msra.mxu0 0.0
  %3285 = vmatprep.mubr.f32.mxu0 0.0
  %3286 = vmatmul.mubr.f32.gmra.mrb[0].mxu0 %v3219
  %v3287 = vpop.f32.mrb[0].mxu0
  %v3288 = vadd.f32 %v648, %v3287
  %v3289 = vpop.f32.mrb[0].mxu0
  %3290 = vdwg.mxu0
  %v3291 = vtanh.pop %v3288
  %v3293 = vsel %vm314, %v3291, 0
  %3295 = vmatprep.subr.mxu0 0.0
  %3296 = vmatpush1.msra.mxu0 %v408
  %3297 = vmatprep.subr.mxu0 0.0
  %3298 = vmatpush1.msra.mxu0 %v409
  %3299 = vmatprep.subr.mxu0 0.0
  %3300 = vmatpush1.msra.mxu0 %v410
  %3301 = vmatprep.subr.mxu0 0.0
  %3302 = vmatpush1.msra.mxu0 %v411
  %3303 = vmatprep.subr.mxu0 0.0
  %3304 = vmatpush1.msra.mxu0 0.0
  %3305 = vmatprep.subr.mxu0 0.0
  %3306 = vmatpush1.msra.mxu0 0.0
  %3307 = vmatprep.subr.mxu0 0.0
  %3308 = vmatpush1.msra.mxu0 0.0
  %3309 = vmatprep.subr.mxu0 0.0
  %3310 = vmatpush1.msra.mxu0 0.0
  %3311 = vmatprep.subr.mxu0 0.0
  %3312 = vmatpush1.msra.mxu0 0.0
  %3313 = vmatprep.subr.mxu0 0.0
  %3314 = vmatpush1.msra.mxu0 0.0
  %3315 = vmatprep.subr.mxu0 0.0
  %3316 = vmatpush1.msra.mxu0 0.0
  %3317 = vmatprep.subr.mxu0 0.0
  %3318 = vmatpush1.msra.mxu0 0.0
  %3319 = vmatprep.subr.mxu0 0.0
  %3320 = vmatpush1.msra.mxu0 0.0
  %3321 = vmatprep.subr.mxu0 0.0
  %3322 = vmatpush1.msra.mxu0 0.0
  %3323 = vmatprep.subr.mxu0 0.0
  %3324 = vmatpush1.msra.mxu0 0.0
  %3325 = vmatprep.subr.mxu0 0.0
  %3326 = vmatpush1.msra.mxu0 0.0
  %3327 = vmatprep.subr.mxu0 0.0
  %3328 = vmatpush1.msra.mxu0 0.0
  %3329 = vmatprep.subr.mxu0 0.0
  %3330 = vmatpush1.msra.mxu0 0.0
  %3331 = vmatprep.subr.mxu0 0.0
  %3332 = vmatpush1.msra.mxu0 0.0
  %3333 = vmatprep.subr.mxu0 0.0
  %3334 = vmatpush1.msra.mxu0 0.0
  %3335 = vmatprep.subr.mxu0 0.0
  %3336 = vmatpush1.msra.mxu0 0.0
  %3337 = vmatprep.subr.mxu0 0.0
  %3338 = vmatpush1.msra.mxu0 0.0
  %3339 = vmatprep.subr.mxu0 0.0
  %3340 = vmatpush1.msra.mxu0 0.0
  %3341 = vmatprep.subr.mxu0 0.0
  %3342 = vmatpush1.msra.mxu0 0.0
  %3343 = vmatprep.subr.mxu0 0.0
  %3344 = vmatpush1.msra.mxu0 0.0
  %3345 = vmatprep.subr.mxu0 0.0
  %3346 = vmatpush1.msra.mxu0 0.0
  %3347 = vmatprep.subr.mxu0 0.0
  %3348 = vmatpush1.msra.mxu0 0.0
  %3349 = vmatprep.subr.mxu0 0.0
  %3350 = vmatpush1.msra.mxu0 0.0
  %3351 = vmatprep.subr.mxu0 0.0
  %3352 = vmatpush1.msra.mxu0 0.0
  %3353 = vmatprep.subr.mxu0 0.0
  %3354 = vmatpush1.msra.mxu0 0.0
  %3355 = vmatprep.subr.mxu0 0.0
  %3356 = vmatpush1.msra.mxu0 0.0
  %3357 = vmatprep.subr.mxu0 0.0
  %3358 = vmatpush1.msra.mxu0 0.0
  %3359 = vmatprep.mubr.f32.mxu0 0.0
  %3360 = vmatmul.mubr.f32.gmra.mrb[0].mxu0 %v3293
  %v3361 = vpop.f32.mrb[0].mxu0
  %v3362 = vadd.f32 %v728, %v3361
  %v3363 = vpop.f32.mrb[0].mxu0
  %3364 = vdwg.mxu0
  %3366 = vrot.lane.b32.xlu0 %v1166, 16
  %v3367 = vpop.permute.xlu0 %3366
  %3370 = vrot.lane.b32.xlu0 %v1532, 32
  %v3371 = vpop.permute.xlu0 %3370
  %3374 = vrot.lane.b32.xlu0 %v1898, 48
  %v3375 = vpop.permute.xlu0 %3374
  %3378 = vrot.lane.b32.xlu0 %v2264, 64
  %v3379 = vpop.permute.xlu0 %3378
  %3382 = vrot.lane.b32.xlu0 %v2630, 80
  %v3383 = vpop.permute.xlu0 %3382
  %3386 = vrot.lane.b32.xlu0 %v2996, 96
  %v3387 = vpop.permute.xlu0 %3386
  %3390 = vrot.lane.b32.xlu0 %v3362, 112
  %v3391 = vpop.permute.xlu0 %3390
  %vm3393 = vcmask 130048
  %v3394 = vsel %vm3393, %v800, %v3367
  %v3395 = vsel %vm314, %v3394, %v3371
  %v3396 = vsel %vm67, %v3395, %v3375
  %v3397 = vsel %vm228, %v3396, %v3379
  %vm3398 = vcmask 654336
  %v3399 = vsel %vm3398, %v3397, %v3383
  %vm3400 = vcmask 785408
  %v3401 = vsel %vm3400, %v3399, %v3387
  %vm3402 = vcmask 916480
  %v3403 = vsel %vm3402, %v3401, %v3391
  %3404 = vst [vmem:[%s13] sm:$0x3] %v3403
  // Predicated region
  $region50: #{text_recognition_forward.1} parent=0 // pred_check
    _
  $region51: #{text_recognition_forward.1} parent=0 // pred_check_branch
    %3406 = sbr.rel (0) target = $region53
  $region52: #{text_recognition_forward.1} parent=0 // pred_region
    _
  $region53: #{text_recognition_forward.1} parent=0 // pred_fallthru
    _
  // Predicated region
  $region54: #{text_recognition_forward.1} parent=0 // pred_check
    _
  $region55: #{text_recognition_forward.1} parent=0 // pred_check_branch
    %3408 = sbr.rel (0) target = $region57
  $region56: #{text_recognition_forward.1} parent=0 // pred_region
    _
  $region57: #{text_recognition_forward.1} parent=0 // pred_fallthru
    _
  // Predicated region
  $region58: #{text_recognition_forward.1} parent=0 // pred_check
    _
  $region59: #{text_recognition_forward.1} parent=0 // pred_check_branch
    %3410 = sbr.rel (0) target = $region61
  $region60: #{text_recognition_forward.1} parent=0 // pred_region
    _
  $region61: #{text_recognition_forward.1} parent=0 // pred_fallthru
    _
  // Predicated region
  $region62: #{text_recognition_forward.1} parent=0 // pred_check
    _
  $region63: #{text_recognition_forward.1} parent=0 // pred_check_branch
    %3412 = sbr.rel (0) target = $region65
  $region64: #{text_recognition_forward.1} parent=0 // pred_region
    _
  $region65: #{text_recognition_forward.1} parent=0 // pred_fallthru
    _

</llo_original>
